<compile_context>
chip_gen: v7x
topology: tpu7x:2x2x1
jax: 0.10.0
libtpu: 0.0.40
codegen_flags: <defaults>
</compile_context>

<pallas_src>
import jax
import jax.numpy as jnp
from jax import lax
from jax.experimental import pallas as pl
from jax.experimental.pallas import tpu as pltpu

# ---------------- model sizes (small, consistent with the module) ----------
N_NODES = 8       # nodes per graph
NFEATS = 16       # input node-feature dim
HFEATS = 32       # hidden dim
N_TARGET = 4      # readout targets
NEG_SLOPE = 0.2   # DGL GATConv default leaky_relu slope

LANE = 128        # lane-padded output width
GB = 16           # graphs per grid step
GBN = GB * N_NODES            # nodes per grid step = 128
NEG_MASK = -1e30              # finite mask value (no -inf intermediates)


def net2f_kernel(nfeat_ref, adj_ref, wsmall_ref, wread_ref, out_ref):
    x = nfeat_ref[...]                       # (GBN, NFEATS)
    adj = adj_ref[...]                       # (GBN, GBN) block-diag, adj[dst, src]

    # ---- unpack the small-weight slab (static slices, one VMEM tile) ----
    w0 = wsmall_ref[0:NFEATS, :]             # (NFEATS, H)
    b0 = wsmall_ref[16:17, :]                # (1, H)
    al1 = wsmall_ref[17:18, :]
    al2 = wsmall_ref[18:19, :]
    al3 = wsmall_ref[19:20, :]
    ar1 = wsmall_ref[20:21, :]
    ar2 = wsmall_ref[21:22, :]
    ar3 = wsmall_ref[22:23, :]
    gb1 = wsmall_ref[23:24, :]
    gb2 = wsmall_ref[24:25, :]
    gb3 = wsmall_ref[25:26, :]
    gw1 = wsmall_ref[32:64, :]               # (H, H)
    gw2 = wsmall_ref[64:96, :]
    gw3 = wsmall_ref[96:128, :]

    # nfeat_lin: Linear(nfeats, hfeats) + bias
    h0 = jnp.dot(x, w0, preferred_element_type=jnp.float32) + b0   # (GBN, H)

    def gat(h, gw, al, ar, gb):
        # DGL GATConv, num_heads=1, residual=False, activation=None, bias=True
        z = jnp.dot(h, gw, preferred_element_type=jnp.float32)     # (GBN, H)
        # source term as a (1, GBN) row directly (no sublane->lane transpose)
        el_row = lax.dot_general(al, z, (((1,), (1,)), ((), ())),
                                 preferred_element_type=jnp.float32)  # (1, GBN)
        er = jnp.sum(z * ar, axis=-1, keepdims=True)                # (GBN, 1) per-dst
        e = er + el_row                                             # e[dst, src]
        e = jnp.where(e > 0, e, NEG_SLOPE * e)                      # leaky_relu
        e = jnp.where(adj > 0, e, NEG_MASK)
        m = jnp.max(e, axis=-1, keepdims=True)
        p = jnp.where(adj > 0, jnp.exp(e - m), 0.0)
        denom = jnp.sum(p, axis=-1, keepdims=True)
        denom = jnp.where(denom == 0.0, 1.0, denom)   # zero in-degree -> zero msgs
        alpha = p * pl.reciprocal(denom, approx=True)               # edge softmax
        rst = jnp.dot(alpha, z, preferred_element_type=jnp.float32)
        return rst + gb

    h1 = gat(jnp.maximum(h0, 0.0), gw1, al1, ar1, gb1)
    h2 = gat(jnp.maximum(h1, 0.0), gw2, al2, ar2, gb2)
    h3 = gat(jnp.maximum(h2, 0.0), gw3, al3, ar3, gb3)

    # readout: Linear(3H, n_target) on cat([h1,h2,h3], -1), weight lane-padded
    # to 128 output columns so the store is lane-dense (real targets = first 4).
    hcat = jnp.concatenate([h1, h2, h3], axis=-1)                   # (GBN, 3H)
    wr = wread_ref[0:3 * HFEATS, :]                                 # (3H, 128)
    br = wread_ref[3 * HFEATS:3 * HFEATS + 1, :]                    # (1, 128)
    out = jnp.dot(hcat, wr, preferred_element_type=jnp.float32) + br
    out_ref[...] = jax.nn.sigmoid(out)                              # activation='sig'


def net2f_forward(nfeat_flat, adj_blocks, wsmall, wread):
    """nfeat_flat: (B*N, NFEATS); adj_blocks: (num_blocks, GBN, GBN)."""
    num_blocks = adj_blocks.shape[0]
    out = pl.pallas_call(
        net2f_kernel,
        out_shape=jax.ShapeDtypeStruct((num_blocks * GBN, LANE), jnp.float32),
        grid_spec=pltpu.PrefetchScalarGridSpec(
            num_scalar_prefetch=0,
            grid=(num_blocks,),
            in_specs=[
                pl.BlockSpec((GBN, NFEATS), lambda i: (i, 0)),
                pl.BlockSpec((None, GBN, GBN), lambda i: (i, 0, 0)),
                pl.BlockSpec((128, HFEATS), lambda i: (0, 0)),
                pl.BlockSpec((104, LANE), lambda i: (0, 0)),
            ],
            out_specs=pl.BlockSpec((GBN, LANE), lambda i: (i, 0)),
        ),
        compiler_params=pltpu.CompilerParams(
            dimension_semantics=("parallel",)),
    )(nfeat_flat, adj_blocks, wsmall, wread)
    return out


# ---------------------------- parameter handling ---------------------------
def init_params(key):
    ks = jax.random.split(key, 7)
    scale = 0.1
    w0 = scale * jax.random.normal(ks[0], (NFEATS, HFEATS), jnp.float32)
    b0 = scale * jax.random.normal(ks[1], (1, HFEATS), jnp.float32)

    def gat_params(k):
        k1, k2, k3, k4 = jax.random.split(k, 4)
        w = scale * jax.random.normal(k1, (HFEATS, HFEATS), jnp.float32)   # fc (no bias)
        al = scale * jax.random.normal(k2, (1, HFEATS), jnp.float32)       # attn_l
        ar = scale * jax.random.normal(k3, (1, HFEATS), jnp.float32)       # attn_r
        b = scale * jax.random.normal(k4, (1, HFEATS), jnp.float32)        # bias
        return w, al, ar, b

    gw1, al1, ar1, gb1 = gat_params(ks[2])
    gw2, al2, ar2, gb2 = gat_params(ks[3])
    gw3, al3, ar3, gb3 = gat_params(ks[4])

    wr = scale * jax.random.normal(ks[5], (3 * HFEATS, N_TARGET), jnp.float32)
    br = scale * jax.random.normal(ks[6], (1, N_TARGET), jnp.float32)

    return (w0, b0,
            gw1, al1, ar1, gb1,
            gw2, al2, ar2, gb2,
            gw3, al3, ar3, gb3,
            wr, br)


def pack_params(params):
    (w0, b0,
     gw1, al1, ar1, gb1,
     gw2, al2, ar2, gb2,
     gw3, al3, ar3, gb3,
     wr, br) = params

    # (128, 32) slab: w0, the 10 tiny vectors, and the 3 GAT weights.
    wsmall = jnp.zeros((128, HFEATS), jnp.float32)
    wsmall = wsmall.at[0:NFEATS, :].set(w0)
    vecs = jnp.stack([b0[0],
                      al1[0], al2[0], al3[0],
                      ar1[0], ar2[0], ar3[0],
                      gb1[0], gb2[0], gb3[0]], axis=0)        # (10, 32)
    wsmall = wsmall.at[16:26, :].set(vecs)
    wsmall = wsmall.at[32:64, :].set(gw1)
    wsmall = wsmall.at[64:96, :].set(gw2)
    wsmall = wsmall.at[96:128, :].set(gw3)

    # (104, 128) slab: readout weight/bias zero-padded to 128 lanes.
    wread = jnp.zeros((104, LANE), jnp.float32)
    wread = wread.at[0:3 * HFEATS, 0:N_TARGET].set(wr)
    wread = wread.at[3 * HFEATS:3 * HFEATS + 1, 0:N_TARGET].set(br)
    return wsmall, wread


def block_diag_adjacency(adj, num_blocks):
    """(B, N, N) per-graph adjacency -> (num_blocks, GB*N, GB*N) block-diag."""
    adj_gb = adj.reshape(num_blocks, GB, N_NODES, N_NODES)
    eye = jnp.eye(GB, dtype=adj.dtype)
    big = eye[None, :, None, :, None] * adj_gb[:, :, :, None, :]
    return big.reshape(num_blocks, GBN, GBN)


# ------------------------------ pure-JAX reference --------------------------
def net2f_reference(nfeat, adj, params):
    (w0, b0,
     gw1, al1, ar1, gb1,
     gw2, al2, ar2, gb2,
     gw3, al3, ar3, gb3,
     wr, br) = params

    h0 = nfeat @ w0 + b0

    def gat(h, gw, al, ar, gb):
        z = h @ gw
        el = jnp.sum(z * al, -1)                       # (B, N) per-src
        er = jnp.sum(z * ar, -1)                       # (B, N) per-dst
        e = er[:, :, None] + el[:, None, :]            # e[b, dst, src]
        e = jnp.where(e > 0, e, NEG_SLOPE * e)
        e = jnp.where(adj > 0, e, NEG_MASK)
        m = jnp.max(e, -1, keepdims=True)
        p = jnp.where(adj > 0, jnp.exp(e - m), 0.0)
        d = jnp.sum(p, -1, keepdims=True)
        d = jnp.where(d == 0.0, 1.0, d)
        alpha = p / d
        return jnp.einsum('bij,bjh->bih', alpha, z) + gb

    h1 = gat(jax.nn.relu(h0), gw1, al1, ar1, gb1)
    h2 = gat(jax.nn.relu(h1), gw2, al2, ar2, gb2)
    h3 = gat(jax.nn.relu(h2), gw3, al3, ar3, gb3)
    out = jnp.concatenate([h1, h2, h3], -1) @ wr + br
    return jax.nn.sigmoid(out)


if __name__ == "__main__":
    key = jax.random.PRNGKey(0)
    k_feat, k_adj, k_param = jax.random.split(key, 3)

    B = 64                              # graphs in the batch
    assert B % GB == 0
    num_blocks = B // GB

    # deterministic node features and small random graphs (+ self loops)
    nfeat = jax.random.normal(k_feat, (B, N_NODES, NFEATS), jnp.float32)
    adj = (jax.random.uniform(k_adj, (B, N_NODES, N_NODES)) < 0.3).astype(jnp.float32)
    adj = jnp.maximum(adj, jnp.eye(N_NODES, dtype=jnp.float32))    # adj[b, dst, src]

    params = init_params(k_param)
    wsmall, wread = pack_params(params)

    nfeat_flat = nfeat.reshape(B * N_NODES, NFEATS)
    adj_blocks = block_diag_adjacency(adj, num_blocks)

    out_padded = net2f_forward(nfeat_flat, adj_blocks, wsmall, wread)
    out_padded = jax.block_until_ready(out_padded)

    out = out_padded[:, :N_TARGET].reshape(B, N_NODES, N_TARGET)

    assert out.shape == (B, N_NODES, N_TARGET)
    assert bool(jnp.all(jnp.isfinite(out)))

    # sanity check vs. pure-JAX reference (loose tolerance: approx reciprocal)
    ref = net2f_reference(nfeat, adj, params)
    assert bool(jnp.all(jnp.abs(out - ref) < 1e-2))

    print("KERNEL_OK")
</pallas_src>

<mosaic_0001>
module attributes {stable_mosaic.version = 11 : i64} {
  func.func @net2f_kernel(%arg0: i32, %arg1: memref<128x16xf32, #tpu.memory_space<vmem>>, %arg2: memref<1x128x128xf32, #tpu.memory_space<vmem>>, %arg3: memref<128x32xf32, #tpu.memory_space<vmem>>, %arg4: memref<104x128xf32, #tpu.memory_space<vmem>>, %arg5: memref<128x128xf32, #tpu.memory_space<vmem>>) attributes {dimension_semantics = [#tpu.dimension_semantics<parallel>], iteration_bounds = array<i64: 4>, scalar_prefetch = 0 : i64, scratch_operands = 0 : i64, tpu.core_type = #tpu.core_type<tc>, window_params = [{transform_indices = @transform_0, window_bounds = array<i64: 128, 16>}, {transform_indices = @transform_1, window_bounds = array<i64: 1, 128, 128>}, {pipeline_mode = #tpu.pipeline_mode<synchronous>, transform_indices = @transform_2, window_bounds = array<i64: 128, 32>}, {pipeline_mode = #tpu.pipeline_mode<synchronous>, transform_indices = @transform_3, window_bounds = array<i64: 104, 128>}, {transform_indices = @transform_4, window_bounds = array<i64: 128, 128>}]} {
    %c0 = arith.constant 0 : index
    %c0_0 = arith.constant 0 : index
    %0 = vector.load %arg1[%c0, %c0_0] : memref<128x16xf32, #tpu.memory_space<vmem>>, vector<128x16xf32>
    %c0_1 = arith.constant 0 : index
    %c0_2 = arith.constant 0 : index
    %c0_3 = arith.constant 0 : index
    %1 = vector.load %arg2[%c0_1, %c0_2, %c0_3] : memref<1x128x128xf32, #tpu.memory_space<vmem>>, vector<1x128x128xf32>
    %2 = vector.shape_cast %1 : vector<1x128x128xf32> to vector<128x128xf32>
    %c0_4 = arith.constant 0 : index
    %c0_5 = arith.constant 0 : index
    %3 = vector.load %arg3[%c0_4, %c0_5] : memref<128x32xf32, #tpu.memory_space<vmem>>, vector<16x32xf32>
    %c16 = arith.constant 16 : index
    %c0_6 = arith.constant 0 : index
    %4 = vector.load %arg3[%c16, %c0_6] : memref<128x32xf32, #tpu.memory_space<vmem>>, vector<1x32xf32>
    %c17 = arith.constant 17 : index
    %c0_7 = arith.constant 0 : index
    %5 = vector.load %arg3[%c17, %c0_7] : memref<128x32xf32, #tpu.memory_space<vmem>>, vector<1x32xf32>
    %c18 = arith.constant 18 : index
    %c0_8 = arith.constant 0 : index
    %6 = vector.load %arg3[%c18, %c0_8] : memref<128x32xf32, #tpu.memory_space<vmem>>, vector<1x32xf32>
    %c19 = arith.constant 19 : index
    %c0_9 = arith.constant 0 : index
    %7 = vector.load %arg3[%c19, %c0_9] : memref<128x32xf32, #tpu.memory_space<vmem>>, vector<1x32xf32>
    %c20 = arith.constant 20 : index
    %c0_10 = arith.constant 0 : index
    %8 = vector.load %arg3[%c20, %c0_10] : memref<128x32xf32, #tpu.memory_space<vmem>>, vector<1x32xf32>
    %c21 = arith.constant 21 : index
    %c0_11 = arith.constant 0 : index
    %9 = vector.load %arg3[%c21, %c0_11] : memref<128x32xf32, #tpu.memory_space<vmem>>, vector<1x32xf32>
    %c22 = arith.constant 22 : index
    %c0_12 = arith.constant 0 : index
    %10 = vector.load %arg3[%c22, %c0_12] : memref<128x32xf32, #tpu.memory_space<vmem>>, vector<1x32xf32>
    %c23 = arith.constant 23 : index
    %c0_13 = arith.constant 0 : index
    %11 = vector.load %arg3[%c23, %c0_13] : memref<128x32xf32, #tpu.memory_space<vmem>>, vector<1x32xf32>
    %c24 = arith.constant 24 : index
    %c0_14 = arith.constant 0 : index
    %12 = vector.load %arg3[%c24, %c0_14] : memref<128x32xf32, #tpu.memory_space<vmem>>, vector<1x32xf32>
    %c25 = arith.constant 25 : index
    %c0_15 = arith.constant 0 : index
    %13 = vector.load %arg3[%c25, %c0_15] : memref<128x32xf32, #tpu.memory_space<vmem>>, vector<1x32xf32>
    %c32 = arith.constant 32 : index
    %c0_16 = arith.constant 0 : index
    %14 = vector.load %arg3[%c32, %c0_16] : memref<128x32xf32, #tpu.memory_space<vmem>>, vector<32x32xf32>
    %c64 = arith.constant 64 : index
    %c0_17 = arith.constant 0 : index
    %15 = vector.load %arg3[%c64, %c0_17] : memref<128x32xf32, #tpu.memory_space<vmem>>, vector<32x32xf32>
    %c96 = arith.constant 96 : index
    %c0_18 = arith.constant 0 : index
    %16 = vector.load %arg3[%c96, %c0_18] : memref<128x32xf32, #tpu.memory_space<vmem>>, vector<32x32xf32>
    %cst = arith.constant dense<0.000000e+00> : vector<128x32xf32>
    %17 = tpu.matmul %0, %3, %cst {dimension_numbers = #tpu.dot_dimension_numbers<[1], [0], [0], [1], [0, 0, 1, 1], [], []>} : vector<128x16xf32>, vector<16x32xf32>, vector<128x32xf32> -> vector<128x32xf32>
    %18 = vector.broadcast %4 : vector<1x32xf32> to vector<128x32xf32>
    %19 = arith.addf %17, %18 : vector<128x32xf32>
    %cst_19 = arith.constant 0.000000e+00 : f32
    %20 = vector.broadcast %cst_19 : f32 to vector<128x32xf32>
    %21 = arith.maximumf %19, %20 : vector<128x32xf32>
    %cst_20 = arith.constant dense<0.000000e+00> : vector<128x32xf32>
    %22 = tpu.matmul %21, %14, %cst_20 {dimension_numbers = #tpu.dot_dimension_numbers<[1], [0], [0], [1], [0, 0, 1, 1], [], []>} : vector<128x32xf32>, vector<32x32xf32>, vector<128x32xf32> -> vector<128x32xf32>
    %cst_21 = arith.constant dense<0.000000e+00> : vector<1x128xf32>
    %23 = tpu.matmul %5, %22, %cst_21 {dimension_numbers = #tpu.dot_dimension_numbers<[1], [1], [0], [0], [0, 0, 1, 0], [], []>} : vector<1x32xf32>, vector<128x32xf32>, vector<1x128xf32> -> vector<1x128xf32>
    %24 = vector.broadcast %8 : vector<1x32xf32> to vector<128x32xf32>
    %25 = arith.mulf %22, %24 : vector<128x32xf32>
    %cst_22 = arith.constant dense<0.000000e+00> : vector<128xf32>
    %26 = vector.multi_reduction <add>, %25, %cst_22 [1] : vector<128x32xf32> to vector<128xf32>
    %27 = vector.shape_cast %26 : vector<128xf32> to vector<128x1xf32>
    %28 = vector.broadcast %27 : vector<128x1xf32> to vector<128x128xf32>
    %29 = vector.broadcast %23 : vector<1x128xf32> to vector<128x128xf32>
    %30 = arith.addf %28, %29 : vector<128x128xf32>
    %cst_23 = arith.constant 0.000000e+00 : f32
    %31 = vector.broadcast %cst_23 : f32 to vector<128x128xf32>
    %32 = arith.cmpf ogt, %30, %31 : vector<128x128xf32>
    %cst_24 = arith.constant 2.000000e-01 : f32
    %33 = vector.broadcast %cst_24 : f32 to vector<128x128xf32>
    %34 = arith.mulf %33, %30 : vector<128x128xf32>
    %35 = arith.select %32, %30, %34 : vector<128x128xi1>, vector<128x128xf32>
    %cst_25 = arith.constant 0.000000e+00 : f32
    %36 = vector.broadcast %cst_25 : f32 to vector<128x128xf32>
    %37 = arith.cmpf ogt, %2, %36 : vector<128x128xf32>
    %cst_26 = arith.constant -1.000000e+30 : f32
    %38 = vector.broadcast %cst_26 : f32 to vector<128x128xf32>
    %39 = arith.select %37, %35, %38 : vector<128x128xi1>, vector<128x128xf32>
    %cst_27 = arith.constant dense<0xFF800000> : vector<128xf32>
    %40 = vector.multi_reduction <maximumf>, %39, %cst_27 [1] : vector<128x128xf32> to vector<128xf32>
    %41 = vector.shape_cast %40 : vector<128xf32> to vector<128x1xf32>
    %cst_28 = arith.constant 0.000000e+00 : f32
    %42 = vector.broadcast %cst_28 : f32 to vector<128x128xf32>
    %43 = arith.cmpf ogt, %2, %42 : vector<128x128xf32>
    %44 = vector.broadcast %41 : vector<128x1xf32> to vector<128x128xf32>
    %45 = arith.subf %39, %44 : vector<128x128xf32>
    %46 = math.exp %45 : vector<128x128xf32>
    %cst_29 = arith.constant 0.000000e+00 : f32
    %47 = vector.broadcast %cst_29 : f32 to vector<128x128xf32>
    %48 = arith.select %43, %46, %47 : vector<128x128xi1>, vector<128x128xf32>
    %cst_30 = arith.constant dense<0.000000e+00> : vector<128xf32>
    %49 = vector.multi_reduction <add>, %48, %cst_30 [1] : vector<128x128xf32> to vector<128xf32>
    %50 = vector.shape_cast %49 : vector<128xf32> to vector<128x1xf32>
    %cst_31 = arith.constant 0.000000e+00 : f32
    %51 = vector.broadcast %cst_31 : f32 to vector<128x1xf32>
    %52 = arith.cmpf oeq, %50, %51 : vector<128x1xf32>
    %cst_32 = arith.constant 1.000000e+00 : f32
    %53 = vector.broadcast %cst_32 : f32 to vector<128x1xf32>
    %54 = arith.select %52, %53, %50 : vector<128x1xi1>, vector<128x1xf32>
    %55 = tpu.reciprocal %54 {approx = true} : vector<128x1xf32> -> vector<128x1xf32>
    %56 = vector.broadcast %55 : vector<128x1xf32> to vector<128x128xf32>
    %57 = arith.mulf %48, %56 : vector<128x128xf32>
    %cst_33 = arith.constant dense<0.000000e+00> : vector<128x32xf32>
    %58 = tpu.matmul %57, %22, %cst_33 {dimension_numbers = #tpu.dot_dimension_numbers<[1], [0], [0], [1], [0, 0, 1, 1], [], []>} : vector<128x128xf32>, vector<128x32xf32>, vector<128x32xf32> -> vector<128x32xf32>
    %59 = vector.broadcast %11 : vector<1x32xf32> to vector<128x32xf32>
    %60 = arith.addf %58, %59 : vector<128x32xf32>
    %cst_34 = arith.constant 0.000000e+00 : f32
    %61 = vector.broadcast %cst_34 : f32 to vector<128x32xf32>
    %62 = arith.maximumf %60, %61 : vector<128x32xf32>
    %cst_35 = arith.constant dense<0.000000e+00> : vector<128x32xf32>
    %63 = tpu.matmul %62, %15, %cst_35 {dimension_numbers = #tpu.dot_dimension_numbers<[1], [0], [0], [1], [0, 0, 1, 1], [], []>} : vector<128x32xf32>, vector<32x32xf32>, vector<128x32xf32> -> vector<128x32xf32>
    %cst_36 = arith.constant dense<0.000000e+00> : vector<1x128xf32>
    %64 = tpu.matmul %6, %63, %cst_36 {dimension_numbers = #tpu.dot_dimension_numbers<[1], [1], [0], [0], [0, 0, 1, 0], [], []>} : vector<1x32xf32>, vector<128x32xf32>, vector<1x128xf32> -> vector<1x128xf32>
    %65 = vector.broadcast %9 : vector<1x32xf32> to vector<128x32xf32>
    %66 = arith.mulf %63, %65 : vector<128x32xf32>
    %cst_37 = arith.constant dense<0.000000e+00> : vector<128xf32>
    %67 = vector.multi_reduction <add>, %66, %cst_37 [1] : vector<128x32xf32> to vector<128xf32>
    %68 = vector.shape_cast %67 : vector<128xf32> to vector<128x1xf32>
    %69 = vector.broadcast %68 : vector<128x1xf32> to vector<128x128xf32>
    %70 = vector.broadcast %64 : vector<1x128xf32> to vector<128x128xf32>
    %71 = arith.addf %69, %70 : vector<128x128xf32>
    %cst_38 = arith.constant 0.000000e+00 : f32
    %72 = vector.broadcast %cst_38 : f32 to vector<128x128xf32>
    %73 = arith.cmpf ogt, %71, %72 : vector<128x128xf32>
    %cst_39 = arith.constant 2.000000e-01 : f32
    %74 = vector.broadcast %cst_39 : f32 to vector<128x128xf32>
    %75 = arith.mulf %74, %71 : vector<128x128xf32>
    %76 = arith.select %73, %71, %75 : vector<128x128xi1>, vector<128x128xf32>
    %cst_40 = arith.constant 0.000000e+00 : f32
    %77 = vector.broadcast %cst_40 : f32 to vector<128x128xf32>
    %78 = arith.cmpf ogt, %2, %77 : vector<128x128xf32>
    %cst_41 = arith.constant -1.000000e+30 : f32
    %79 = vector.broadcast %cst_41 : f32 to vector<128x128xf32>
    %80 = arith.select %78, %76, %79 : vector<128x128xi1>, vector<128x128xf32>
    %cst_42 = arith.constant dense<0xFF800000> : vector<128xf32>
    %81 = vector.multi_reduction <maximumf>, %80, %cst_42 [1] : vector<128x128xf32> to vector<128xf32>
    %82 = vector.shape_cast %81 : vector<128xf32> to vector<128x1xf32>
    %cst_43 = arith.constant 0.000000e+00 : f32
    %83 = vector.broadcast %cst_43 : f32 to vector<128x128xf32>
    %84 = arith.cmpf ogt, %2, %83 : vector<128x128xf32>
    %85 = vector.broadcast %82 : vector<128x1xf32> to vector<128x128xf32>
    %86 = arith.subf %80, %85 : vector<128x128xf32>
    %87 = math.exp %86 : vector<128x128xf32>
    %cst_44 = arith.constant 0.000000e+00 : f32
    %88 = vector.broadcast %cst_44 : f32 to vector<128x128xf32>
    %89 = arith.select %84, %87, %88 : vector<128x128xi1>, vector<128x128xf32>
    %cst_45 = arith.constant dense<0.000000e+00> : vector<128xf32>
    %90 = vector.multi_reduction <add>, %89, %cst_45 [1] : vector<128x128xf32> to vector<128xf32>
    %91 = vector.shape_cast %90 : vector<128xf32> to vector<128x1xf32>
    %cst_46 = arith.constant 0.000000e+00 : f32
    %92 = vector.broadcast %cst_46 : f32 to vector<128x1xf32>
    %93 = arith.cmpf oeq, %91, %92 : vector<128x1xf32>
    %cst_47 = arith.constant 1.000000e+00 : f32
    %94 = vector.broadcast %cst_47 : f32 to vector<128x1xf32>
    %95 = arith.select %93, %94, %91 : vector<128x1xi1>, vector<128x1xf32>
    %96 = tpu.reciprocal %95 {approx = true} : vector<128x1xf32> -> vector<128x1xf32>
    %97 = vector.broadcast %96 : vector<128x1xf32> to vector<128x128xf32>
    %98 = arith.mulf %89, %97 : vector<128x128xf32>
    %cst_48 = arith.constant dense<0.000000e+00> : vector<128x32xf32>
    %99 = tpu.matmul %98, %63, %cst_48 {dimension_numbers = #tpu.dot_dimension_numbers<[1], [0], [0], [1], [0, 0, 1, 1], [], []>} : vector<128x128xf32>, vector<128x32xf32>, vector<128x32xf32> -> vector<128x32xf32>
    %100 = vector.broadcast %12 : vector<1x32xf32> to vector<128x32xf32>
    %101 = arith.addf %99, %100 : vector<128x32xf32>
    %cst_49 = arith.constant 0.000000e+00 : f32
    %102 = vector.broadcast %cst_49 : f32 to vector<128x32xf32>
    %103 = arith.maximumf %101, %102 : vector<128x32xf32>
    %cst_50 = arith.constant dense<0.000000e+00> : vector<128x32xf32>
    %104 = tpu.matmul %103, %16, %cst_50 {dimension_numbers = #tpu.dot_dimension_numbers<[1], [0], [0], [1], [0, 0, 1, 1], [], []>} : vector<128x32xf32>, vector<32x32xf32>, vector<128x32xf32> -> vector<128x32xf32>
    %cst_51 = arith.constant dense<0.000000e+00> : vector<1x128xf32>
    %105 = tpu.matmul %7, %104, %cst_51 {dimension_numbers = #tpu.dot_dimension_numbers<[1], [1], [0], [0], [0, 0, 1, 0], [], []>} : vector<1x32xf32>, vector<128x32xf32>, vector<1x128xf32> -> vector<1x128xf32>
    %106 = vector.broadcast %10 : vector<1x32xf32> to vector<128x32xf32>
    %107 = arith.mulf %104, %106 : vector<128x32xf32>
    %cst_52 = arith.constant dense<0.000000e+00> : vector<128xf32>
    %108 = vector.multi_reduction <add>, %107, %cst_52 [1] : vector<128x32xf32> to vector<128xf32>
    %109 = vector.shape_cast %108 : vector<128xf32> to vector<128x1xf32>
    %110 = vector.broadcast %109 : vector<128x1xf32> to vector<128x128xf32>
    %111 = vector.broadcast %105 : vector<1x128xf32> to vector<128x128xf32>
    %112 = arith.addf %110, %111 : vector<128x128xf32>
    %cst_53 = arith.constant 0.000000e+00 : f32
    %113 = vector.broadcast %cst_53 : f32 to vector<128x128xf32>
    %114 = arith.cmpf ogt, %112, %113 : vector<128x128xf32>
    %cst_54 = arith.constant 2.000000e-01 : f32
    %115 = vector.broadcast %cst_54 : f32 to vector<128x128xf32>
    %116 = arith.mulf %115, %112 : vector<128x128xf32>
    %117 = arith.select %114, %112, %116 : vector<128x128xi1>, vector<128x128xf32>
    %cst_55 = arith.constant 0.000000e+00 : f32
    %118 = vector.broadcast %cst_55 : f32 to vector<128x128xf32>
    %119 = arith.cmpf ogt, %2, %118 : vector<128x128xf32>
    %cst_56 = arith.constant -1.000000e+30 : f32
    %120 = vector.broadcast %cst_56 : f32 to vector<128x128xf32>
    %121 = arith.select %119, %117, %120 : vector<128x128xi1>, vector<128x128xf32>
    %cst_57 = arith.constant dense<0xFF800000> : vector<128xf32>
    %122 = vector.multi_reduction <maximumf>, %121, %cst_57 [1] : vector<128x128xf32> to vector<128xf32>
    %123 = vector.shape_cast %122 : vector<128xf32> to vector<128x1xf32>
    %cst_58 = arith.constant 0.000000e+00 : f32
    %124 = vector.broadcast %cst_58 : f32 to vector<128x128xf32>
    %125 = arith.cmpf ogt, %2, %124 : vector<128x128xf32>
    %126 = vector.broadcast %123 : vector<128x1xf32> to vector<128x128xf32>
    %127 = arith.subf %121, %126 : vector<128x128xf32>
    %128 = math.exp %127 : vector<128x128xf32>
    %cst_59 = arith.constant 0.000000e+00 : f32
    %129 = vector.broadcast %cst_59 : f32 to vector<128x128xf32>
    %130 = arith.select %125, %128, %129 : vector<128x128xi1>, vector<128x128xf32>
    %cst_60 = arith.constant dense<0.000000e+00> : vector<128xf32>
    %131 = vector.multi_reduction <add>, %130, %cst_60 [1] : vector<128x128xf32> to vector<128xf32>
    %132 = vector.shape_cast %131 : vector<128xf32> to vector<128x1xf32>
    %cst_61 = arith.constant 0.000000e+00 : f32
    %133 = vector.broadcast %cst_61 : f32 to vector<128x1xf32>
    %134 = arith.cmpf oeq, %132, %133 : vector<128x1xf32>
    %cst_62 = arith.constant 1.000000e+00 : f32
    %135 = vector.broadcast %cst_62 : f32 to vector<128x1xf32>
    %136 = arith.select %134, %135, %132 : vector<128x1xi1>, vector<128x1xf32>
    %137 = tpu.reciprocal %136 {approx = true} : vector<128x1xf32> -> vector<128x1xf32>
    %138 = vector.broadcast %137 : vector<128x1xf32> to vector<128x128xf32>
    %139 = arith.mulf %130, %138 : vector<128x128xf32>
    %cst_63 = arith.constant dense<0.000000e+00> : vector<128x32xf32>
    %140 = tpu.matmul %139, %104, %cst_63 {dimension_numbers = #tpu.dot_dimension_numbers<[1], [0], [0], [1], [0, 0, 1, 1], [], []>} : vector<128x128xf32>, vector<128x32xf32>, vector<128x32xf32> -> vector<128x32xf32>
    %141 = vector.broadcast %13 : vector<1x32xf32> to vector<128x32xf32>
    %142 = arith.addf %140, %141 : vector<128x32xf32>
    %143 = tpu.concatenate %60, %101, %142 in 1 : vector<128x32xf32>, vector<128x32xf32>, vector<128x32xf32> -> vector<128x96xf32>
    %c0_64 = arith.constant 0 : index
    %c0_65 = arith.constant 0 : index
    %144 = vector.load %arg4[%c0_64, %c0_65] : memref<104x128xf32, #tpu.memory_space<vmem>>, vector<96x128xf32>
    %c96_66 = arith.constant 96 : index
    %c0_67 = arith.constant 0 : index
    %145 = vector.load %arg4[%c96_66, %c0_67] : memref<104x128xf32, #tpu.memory_space<vmem>>, vector<1x128xf32>
    %cst_68 = arith.constant dense<0.000000e+00> : vector<128x128xf32>
    %146 = tpu.matmul %143, %144, %cst_68 {dimension_numbers = #tpu.dot_dimension_numbers<[1], [0], [0], [1], [0, 0, 1, 1], [], []>} : vector<128x96xf32>, vector<96x128xf32>, vector<128x128xf32> -> vector<128x128xf32>
    %147 = vector.broadcast %145 : vector<1x128xf32> to vector<128x128xf32>
    %148 = arith.addf %146, %147 : vector<128x128xf32>
    %149 = arith.negf %148 : vector<128x128xf32>
    %150 = math.exp %149 : vector<128x128xf32>
    %cst_69 = arith.constant 1.000000e+00 : f32
    %151 = vector.broadcast %cst_69 : f32 to vector<128x128xf32>
    %152 = arith.addf %151, %150 : vector<128x128xf32>
    %153 = arith.divf %151, %152 : vector<128x128xf32>
    %c0_70 = arith.constant 0 : index
    %c0_71 = arith.constant 0 : index
    %154 = vector.load %arg5[%c0_70, %c0_71] : memref<128x128xf32, #tpu.memory_space<vmem>>, vector<128x128xf32>
    tpu.vector_store %arg5[%c0_70, %c0_71], %153 {strides = array<i32>} : memref<128x128xf32, #tpu.memory_space<vmem>>, vector<128x128xf32>,
    return
  }
  func.func @transform_0(%arg0: i32) -> (i32, i32) {
    %c0_i32 = arith.constant 0 : i32
    %c0_i32_0 = arith.constant 0 : i32
    return %arg0, %c0_i32 : i32, i32
  }
  func.func @transform_1(%arg0: i32) -> (i32, i32, i32) {
    %c0_i32 = arith.constant 0 : i32
    %c0_i32_0 = arith.constant 0 : i32
    %c0_i32_1 = arith.constant 0 : i32
    return %arg0, %c0_i32, %c0_i32_0 : i32, i32, i32
  }
  func.func @transform_2(%arg0: i32) -> (i32, i32) {
    %c0_i32 = arith.constant 0 : i32
    %c0_i32_0 = arith.constant 0 : i32
    %c0_i32_1 = arith.constant 0 : i32
    return %c0_i32, %c0_i32_0 : i32, i32
  }
  func.func @transform_3(%arg0: i32) -> (i32, i32) {
    %c0_i32 = arith.constant 0 : i32
    %c0_i32_0 = arith.constant 0 : i32
    %c0_i32_1 = arith.constant 0 : i32
    return %c0_i32, %c0_i32_0 : i32, i32
  }
  func.func @transform_4(%arg0: i32) -> (i32, i32) {
    %c0_i32 = arith.constant 0 : i32
    %c0_i32_0 = arith.constant 0 : i32
    return %arg0, %c0_i32 : i32, i32
  }
}

</mosaic_0001>

<llo_original>
// kernel: tpu_custom_call.1
$region0: #{tpu_custom_call.1}
  #allocation0 [shape = 'u32[]', space=smem, size = 0x4, offset = 0x4, fixed_abs, tag = 'smem constant byte address 0x4 - core index']
  #allocation1 [shape = 'u32[144,128]{1,0:T(1,128)}', space=vmem, size = 0x12000, scoped, tag = 'internal scratch']
  %s0 = inlined_call_operand.vmem [shape: f32[512,16], index: 0, kind: input, shape index: {}]
  %s1 = inlined_call_operand.vmem [shape: f32[4,128,128], index: 1, kind: input, shape index: {}]
  %s2 = inlined_call_operand.vmem [shape: f32[128,32], index: 2, kind: input, shape index: {}]
  %s3 = inlined_call_operand.vmem [shape: f32[104,128], index: 3, kind: input, shape index: {}]
  %s4 = inlined_call_operand.hbm [shape: f32[512,128], index: 4, kind: output, shape index: {}]
  %s5 = sld [smem:[#allocation0]]
  $region49: #{tpu_custom_call.1} parent=0
    _
  %s7 = ssub.s32 1, %s5
  %s8 = scalar_select 0, %s7, %s5
  $region1: #{tpu_custom_call.1} parent=0
    #allocation2 [shape = 'u8[131072]{0}', space=vmem, size = 0x20000, scoped, tag = 'output window, operand 0']
    #allocation3 [shape = 's32[2]{0}', space=sflag, size = 0x8, scoped, tag = 'scoped memory for tpu_custom_call.1']
    %9 = vsyncpa [#allocation3], 0
    %s10 = scalar_lea.sflag [#allocation3], 1
    %11 = vsyncpa %s10, 0
    loop: start=0, step=1, limit=6
    $region2: #{tpu_custom_call.1} parent=1 // loop_pre_header
      _
    $region3: #{tpu_custom_call.1} parent=1 // loop_header
      %s13 = sphi 0, %s17
      %p14 = scmp.ge.s32.totalorder %s13, 6
      %s23 = sphi 0, %s25
      %s26 = sphi 0, %s23
      %s27 = sphi 0, %s26
      %s43 = sphi 0, %s27
      %s49 = sphi 0, %s51
      %s52 = sphi 0, %s49
      %s53 = sphi 0, %s52
      %s69 = sphi 0, %s53
      %s73 = sphi 0, %s73
      %s75 = sphi 0, %s73
      %s76 = sphi 0, %s75
      %s90 = sphi 0, %s76
      %s94 = sphi 0, %s94
      %s96 = sphi 0, %s94
      %s97 = sphi 0, %s96
      %s111 = sphi 0, %s97
      %s117 = sphi 0, %s119
      %s120 = sphi 0, %s117
      %s121 = sphi 0, %s120
      %s137 = sphi 0, %s121
    $region4: #{tpu_custom_call.1} parent=1 // loop_header_branch
      %16 = sbr.rel (%p14) target = $region8
    $region5: #{tpu_custom_call.1} parent=1 // loop_body
      %s18 = ssub.s32 %s13, 1
      %s19 = ssub.s32 %s13, 2
      %s20 = sadd.s32 %s13, 1
      %s21 = ssub.s32 %s13, %s20
      %p22 = scmp.eq.s32.totalorder %s21, 0
      %s24 = sadd.s32 %s23, 1
      %s25 = scalar_select %p22, %s23, %s24
      %p28 = pneg %p22
      %p29 = scmp.eq.s32.totalorder %s13, 3
      %p30 = por %p28, %p29
      %p31 = scmp.ne.s32.totalorder %s23, %s26
      %p32 = scmp.eq.s32.totalorder %s13, 0
      %p33 = por %p31, %p32
      %p34 = scmp.ne.s32.totalorder %s23, %s26
      %p35 = scmp.eq.s32.totalorder %s18, 3
      %p36 = por %p34, %p35
      %p37 = scmp.ne.s32.totalorder %s26, %s27
      %p38 = scmp.eq.s32.totalorder %s18, 0
      %p39 = por %p37, %p38
      %p40 = scmp.ne.s32.totalorder %s26, %s27
      %p41 = scmp.eq.s32.totalorder %s19, 3
      %p42 = por %p40, %p41
      %p44 = scmp.ne.s32.totalorder %s27, %s43
      %p45 = scmp.eq.s32.totalorder %s19, 0
      %p46 = por %p44, %p45
      %s47 = ssub.s32 %s13, %s20
      %p48 = scmp.eq.s32.totalorder %s47, 0
      %s50 = sadd.s32 %s49, 1
      %s51 = scalar_select %p48, %s49, %s50
      %p54 = pneg %p48
      %p55 = scmp.eq.s32.totalorder %s13, 3
      %p56 = por %p54, %p55
      %p57 = scmp.ne.s32.totalorder %s49, %s52
      %p58 = scmp.eq.s32.totalorder %s13, 0
      %p59 = por %p57, %p58
      %p60 = scmp.ne.s32.totalorder %s49, %s52
      %p61 = scmp.eq.s32.totalorder %s18, 3
      %p62 = por %p60, %p61
      %p63 = scmp.ne.s32.totalorder %s52, %s53
      %p64 = scmp.eq.s32.totalorder %s18, 0
      %p65 = por %p63, %p64
      %p66 = scmp.ne.s32.totalorder %s52, %s53
      %p67 = scmp.eq.s32.totalorder %s19, 3
      %p68 = por %p66, %p67
      %p70 = scmp.ne.s32.totalorder %s53, %s69
      %p71 = scmp.eq.s32.totalorder %s19, 0
      %p72 = por %p70, %p71
      %s74 = sadd.s32 %s73, 1
      %p77 = scmp.eq.s32.totalorder %s13, 3
      %p78 = scmp.ne.s32.totalorder %s73, %s75
      %p79 = scmp.eq.s32.totalorder %s13, 0
      %p80 = por %p78, %p79
      %p81 = scmp.ne.s32.totalorder %s73, %s75
      %p82 = scmp.eq.s32.totalorder %s18, 3
      %p83 = por %p81, %p82
      %p84 = scmp.ne.s32.totalorder %s75, %s76
      %p85 = scmp.eq.s32.totalorder %s18, 0
      %p86 = por %p84, %p85
      %p87 = scmp.ne.s32.totalorder %s75, %s76
      %p88 = scmp.eq.s32.totalorder %s19, 3
      %p89 = por %p87, %p88
      %p91 = scmp.ne.s32.totalorder %s76, %s90
      %p92 = scmp.eq.s32.totalorder %s19, 0
      %p93 = por %p91, %p92
      %s95 = sadd.s32 %s94, 1
      %p98 = scmp.eq.s32.totalorder %s13, 3
      %p99 = scmp.ne.s32.totalorder %s94, %s96
      %p100 = scmp.eq.s32.totalorder %s13, 0
      %p101 = por %p99, %p100
      %p102 = scmp.ne.s32.totalorder %s94, %s96
      %p103 = scmp.eq.s32.totalorder %s18, 3
      %p104 = por %p102, %p103
      %p105 = scmp.ne.s32.totalorder %s96, %s97
      %p106 = scmp.eq.s32.totalorder %s18, 0
      %p107 = por %p105, %p106
      %p108 = scmp.ne.s32.totalorder %s96, %s97
      %p109 = scmp.eq.s32.totalorder %s19, 3
      %p110 = por %p108, %p109
      %p112 = scmp.ne.s32.totalorder %s97, %s111
      %p113 = scmp.eq.s32.totalorder %s19, 0
      %p114 = por %p112, %p113
      %s115 = ssub.s32 %s13, %s20
      %p116 = scmp.eq.s32.totalorder %s115, 0
      %s118 = sadd.s32 %s117, 1
      %s119 = scalar_select %p116, %s117, %s118
      %p122 = pneg %p116
      %p123 = scmp.eq.s32.totalorder %s13, 3
      %p124 = por %p122, %p123
      %p125 = scmp.ne.s32.totalorder %s117, %s120
      %p126 = scmp.eq.s32.totalorder %s13, 0
      %p127 = por %p125, %p126
      %p128 = scmp.ne.s32.totalorder %s117, %s120
      %p129 = scmp.eq.s32.totalorder %s18, 3
      %p130 = por %p128, %p129
      %p131 = scmp.ne.s32.totalorder %s120, %s121
      %p132 = scmp.eq.s32.totalorder %s18, 0
      %p133 = por %p131, %p132
      %p134 = scmp.ne.s32.totalorder %s120, %s121
      %p135 = scmp.eq.s32.totalorder %s19, 3
      %p136 = por %p134, %p135
      %p138 = scmp.ne.s32.totalorder %s121, %s137
      %p139 = scmp.eq.s32.totalorder %s19, 0
      %p140 = por %p138, %p139
      %p141 = scmp.le.s32.totalorder 1, %s13
      %p142 = scmp.lt.s32.totalorder %s13, 5
      %p143 = pnand %p141, %p142
      %p144 = pneg %p143
      // Predicated region
      $region9: #{tpu_custom_call.1} parent=5 // pred_check
        _
      $region10: #{tpu_custom_call.1} parent=5 // pred_check_branch
        %146 = sbr.rel (%p143) target = $region12
      $region11: #{tpu_custom_call.1} parent=5 // pred_region
        %s147 = ssub.s32 %s13, 1
        // Predicated region
        $region13: #{tpu_custom_call.1} parent=11 // pred_check
          %p148 = pneg %p86
        $region14: #{tpu_custom_call.1} parent=11 // pred_check_branch
          %150 = sbr.rel (%p148) target = $region16
        $region15: #{tpu_custom_call.1} parent=11 // pred_region
          _
        $region16: #{tpu_custom_call.1} parent=11 // pred_fallthru
          _
        // Predicated region
        $region17: #{tpu_custom_call.1} parent=11 // pred_check
          %p151 = pneg %p107
        $region18: #{tpu_custom_call.1} parent=11 // pred_check_branch
          %153 = sbr.rel (%p151) target = $region20
        $region19: #{tpu_custom_call.1} parent=11 // pred_region
          _
        $region20: #{tpu_custom_call.1} parent=11 // pred_fallthru
          _
      $region12: #{tpu_custom_call.1} parent=5 // pred_fallthru
        _
      %p154 = scmp.lt.s32.totalorder %s13, 4
      // Predicated region
      $region21: #{tpu_custom_call.1} parent=5 // pred_check
        %p155 = pneg %p154
      $region22: #{tpu_custom_call.1} parent=5 // pred_check_branch
        %157 = sbr.rel (%p155) target = $region24
      $region23: #{tpu_custom_call.1} parent=5 // pred_region
        // Predicated region
        $region25: #{tpu_custom_call.1} parent=23 // pred_check
          %p158 = pneg %p33
        $region26: #{tpu_custom_call.1} parent=23 // pred_check_branch
          %160 = sbr.rel (%p158) target = $region28
        $region27: #{tpu_custom_call.1} parent=23 // pred_region
          %s161 = smul.u32 16, %s13
          %p162 = scmp.lt.s32.totalorder %s161, 63
          %s163 = scalar_select %p162, %s161, 63
          %s164 = smul.addr %s163, 8
          %s165 = scalar_lea.vmem %s0, %s164
          %s166 = smul.u32 16, %s13
        $region28: #{tpu_custom_call.1} parent=23 // pred_fallthru
          _
        // Predicated region
        $region29: #{tpu_custom_call.1} parent=23 // pred_check
          %p167 = pneg %p59
        $region30: #{tpu_custom_call.1} parent=23 // pred_check_branch
          %169 = sbr.rel (%p167) target = $region32
        $region31: #{tpu_custom_call.1} parent=23 // pred_region
          %p170 = scmp.lt.s32.totalorder %s13, 3
          %s171 = scalar_select %p170, %s13, 3
          %s172 = smul.addr %s171, 16
          %s173 = smul.addr %s172, 8
          %s174 = scalar_lea.vmem %s1, %s173
        $region32: #{tpu_custom_call.1} parent=23 // pred_fallthru
          _
      $region24: #{tpu_custom_call.1} parent=5 // pred_fallthru
        _
      %p175 = scmp.le.s32.totalorder 1, %s13
      %p176 = scmp.lt.s32.totalorder %s13, 5
      %p177 = pnand %p175, %p176
      %p178 = pneg %p177
      // Predicated region
      $region33: #{tpu_custom_call.1} parent=5 // pred_check
        _
      $region34: #{tpu_custom_call.1} parent=5 // pred_check_branch
        %180 = sbr.rel (%p177) target = $region36
      $region35: #{tpu_custom_call.1} parent=5 // pred_region
        %s181 = ssub.s32 %s13, 1
        %s182 = smul.u32 16, %s18
        %p183 = scmp.lt.s32.totalorder %s182, 63
        %s184 = scalar_select %p183, %s182, 63
        %s185 = smul.addr %s184, 8
        %s186 = scalar_lea.vmem %s0, %s185
        %p187 = pneg %p39
        %p188 = pneg %p36
        %p189 = scmp.lt.s32.totalorder %s18, 3
        %s190 = scalar_select %p189, %s18, 3
        %s191 = smul.addr %s190, 16
        %s192 = smul.addr %s191, 8
        %s193 = scalar_lea.vmem %s1, %s192
        %p194 = pneg %p65
        %p195 = pneg %p62
        %p196 = pneg %p86
        %p197 = pneg %p83
        %p198 = pneg %p107
        %p199 = pneg %p104
        %p200 = pneg %p133
        %p201 = pneg %p130
        %s202 = sand.u32 %s120, 1
        %s203 = scalar_lea.sflag [#allocation3], %s202
        %s204 = sand.u32 %s120, 1
        %s205 = smul.addr %s204, 128
        %s206 = scalar_lea.vmem [#allocation2], %s205
        %s207 = smul.u32 16, %s18
        %p208 = scmp.lt.s32.totalorder %s207, 63
        %s209 = scalar_select %p208, %s207, 63
        %s210 = smul.addr %s209, 8
        %s211 = scalar_lea.vmem %s0, %s210
        %s212 = smul.u32 16, %s18
        %p213 = scmp.lt.s32.totalorder %s18, 3
        %s214 = scalar_select %p213, %s18, 3
        %s215 = smul.addr %s214, 16
        %s216 = smul.addr %s215, 8
        %s217 = scalar_lea.vmem %s1, %s216
        %s218 = smul.u32 16, %s18
        %v219 = vld [vmem:[%s211] sm:$0xff]
        %v220 = vld [vmem:[%s211 + $0x8] sm:$0xff]
        %v221 = vld [vmem:[%s211 + $0x10] sm:$0xff]
        %v222 = vld [vmem:[%s211 + $0x18] sm:$0xff]
        %v223 = vld [vmem:[%s211 + $0x20] sm:$0xff]
        %v224 = vld [vmem:[%s211 + $0x28] sm:$0xff]
        %v225 = vld [vmem:[%s211 + $0x30] sm:$0xff]
        %v226 = vld [vmem:[%s211 + $0x38] sm:$0xff]
        %v227 = vld [vmem:[%s211 + $0x40] sm:$0xff]
        %v228 = vld [vmem:[%s211 + $0x48] sm:$0xff]
        %v229 = vld [vmem:[%s211 + $0x50] sm:$0xff]
        %v230 = vld [vmem:[%s211 + $0x58] sm:$0xff]
        %v231 = vld [vmem:[%s211 + $0x60] sm:$0xff]
        %v232 = vld [vmem:[%s211 + $0x68] sm:$0xff]
        %v233 = vld [vmem:[%s211 + $0x70] sm:$0xff]
        %v234 = vld [vmem:[%s211 + $0x78] sm:$0xff]
        %v235 = vld [vmem:[%s217] sm:$0xff]
        %v236 = vld [vmem:[%s217 + $0x8] sm:$0xff]
        %v237 = vld [vmem:[%s217 + $0x10] sm:$0xff]
        %v238 = vld [vmem:[%s217 + $0x18] sm:$0xff]
        %v239 = vld [vmem:[%s217 + $0x20] sm:$0xff]
        %v240 = vld [vmem:[%s217 + $0x28] sm:$0xff]
        %v241 = vld [vmem:[%s217 + $0x30] sm:$0xff]
        %v242 = vld [vmem:[%s217 + $0x38] sm:$0xff]
        %v243 = vld [vmem:[%s217 + $0x40] sm:$0xff]
        %v244 = vld [vmem:[%s217 + $0x48] sm:$0xff]
        %v245 = vld [vmem:[%s217 + $0x50] sm:$0xff]
        %v246 = vld [vmem:[%s217 + $0x58] sm:$0xff]
        %v247 = vld [vmem:[%s217 + $0x60] sm:$0xff]
        %v248 = vld [vmem:[%s217 + $0x68] sm:$0xff]
        %v249 = vld [vmem:[%s217 + $0x70] sm:$0xff]
        %v250 = vld [vmem:[%s217 + $0x78] sm:$0xff]
        %v251 = vld [vmem:[%s2] sm:$0xff]
        %v252 = vld [vmem:[%s2 + $0x8] sm:$0xff]
        %v253 = vld [vmem:[%s2 + $0x10] sm:$0x1]
        %v254 = vld [vmem:[%s2 + $0x11] sm:$0x1]
        %v255 = vld [vmem:[%s2 + $0x12] sm:$0x1]
        %v256 = vld [vmem:[%s2 + $0x13] sm:$0x1]
        %v257 = vld [vmem:[%s2 + $0x14] sm:$0x1]
        %v258 = vld [vmem:[%s2 + $0x15] sm:$0x1]
        %v259 = vld [vmem:[%s2 + $0x16] sm:$0x1]
        %v260 = vld [vmem:[%s2 + $0x17] sm:$0x1]
        %v261 = vld [vmem:[%s2 + $0x18] sm:$0x1]
        %v262 = vld [vmem:[%s2 + $0x19] sm:$0x1]
        %v263 = vld [vmem:[%s2 + $0x20] sm:$0xff]
        %v264 = vld [vmem:[%s2 + $0x28] sm:$0xff]
        %v265 = vld [vmem:[%s2 + $0x30] sm:$0xff]
        %v266 = vld [vmem:[%s2 + $0x38] sm:$0xff]
        %v267 = vld [vmem:[%s2 + $0x40] sm:$0xff]
        %v268 = vld [vmem:[%s2 + $0x48] sm:$0xff]
        %v269 = vld [vmem:[%s2 + $0x50] sm:$0xff]
        %v270 = vld [vmem:[%s2 + $0x58] sm:$0xff]
        %v271 = vld [vmem:[%s2 + $0x60] sm:$0xff]
        %v272 = vld [vmem:[%s2 + $0x68] sm:$0xff]
        %v273 = vld [vmem:[%s2 + $0x70] sm:$0xff]
        %v274 = vld [vmem:[%s2 + $0x78] sm:$0xff]
        %v275 = vlaneseq
        %v276 = vshrl.u32 %v275, 7
        %v277 = vsub.s32 0, %v276
        %v278 = vrot.slane %v253, %v277
        %vm279 = vcmask 130048
        %v281 = vsel %vm279, %v219, 0
        %v284 = vsel %vm279, %v220, 0
        %v287 = vsel %vm279, %v221, 0
        %v290 = vsel %vm279, %v222, 0
        %v293 = vsel %vm279, %v223, 0
        %v296 = vsel %vm279, %v224, 0
        %v299 = vsel %vm279, %v225, 0
        %v302 = vsel %vm279, %v226, 0
        %v305 = vsel %vm279, %v227, 0
        %v308 = vsel %vm279, %v228, 0
        %v311 = vsel %vm279, %v229, 0
        %v314 = vsel %vm279, %v230, 0
        %v317 = vsel %vm279, %v231, 0
        %v320 = vsel %vm279, %v232, 0
        %v323 = vsel %vm279, %v233, 0
        %v326 = vsel %vm279, %v234, 0
        %328 = vmatprep.subr.mxu0 0.0
        %329 = vmatpush1.msra.mxu0 %v251
        %330 = vmatprep.subr.mxu0 0.0
        %331 = vmatpush1.msra.mxu0 %v252
        %332 = vmatprep.subr.mxu0 0.0
        %333 = vmatpush1.msra.mxu0 0.0
        %334 = vmatprep.subr.mxu0 0.0
        %335 = vmatpush1.msra.mxu0 0.0
        %336 = vmatprep.subr.mxu0 0.0
        %337 = vmatpush1.msra.mxu0 0.0
        %338 = vmatprep.subr.mxu0 0.0
        %339 = vmatpush1.msra.mxu0 0.0
        %340 = vmatprep.subr.mxu0 0.0
        %341 = vmatpush1.msra.mxu0 0.0
        %342 = vmatprep.subr.mxu0 0.0
        %343 = vmatpush1.msra.mxu0 0.0
        %344 = vmatprep.subr.mxu0 0.0
        %345 = vmatpush1.msra.mxu0 0.0
        %346 = vmatprep.subr.mxu0 0.0
        %347 = vmatpush1.msra.mxu0 0.0
        %348 = vmatprep.subr.mxu0 0.0
        %349 = vmatpush1.msra.mxu0 0.0
        %350 = vmatprep.subr.mxu0 0.0
        %351 = vmatpush1.msra.mxu0 0.0
        %352 = vmatprep.subr.mxu0 0.0
        %353 = vmatpush1.msra.mxu0 0.0
        %354 = vmatprep.subr.mxu0 0.0
        %355 = vmatpush1.msra.mxu0 0.0
        %356 = vmatprep.subr.mxu0 0.0
        %357 = vmatpush1.msra.mxu0 0.0
        %358 = vmatprep.subr.mxu0 0.0
        %359 = vmatpush1.msra.mxu0 0.0
        %360 = vmatprep.subr.mxu0 0.0
        %361 = vmatpush1.msra.mxu0 0.0
        %362 = vmatprep.subr.mxu0 0.0
        %363 = vmatpush1.msra.mxu0 0.0
        %364 = vmatprep.subr.mxu0 0.0
        %365 = vmatpush1.msra.mxu0 0.0
        %366 = vmatprep.subr.mxu0 0.0
        %367 = vmatpush1.msra.mxu0 0.0
        %368 = vmatprep.subr.mxu0 0.0
        %369 = vmatpush1.msra.mxu0 0.0
        %370 = vmatprep.subr.mxu0 0.0
        %371 = vmatpush1.msra.mxu0 0.0
        %372 = vmatprep.subr.mxu0 0.0
        %373 = vmatpush1.msra.mxu0 0.0
        %374 = vmatprep.subr.mxu0 0.0
        %375 = vmatpush1.msra.mxu0 0.0
        %376 = vmatprep.subr.mxu0 0.0
        %377 = vmatpush1.msra.mxu0 0.0
        %378 = vmatprep.subr.mxu0 0.0
        %379 = vmatpush1.msra.mxu0 0.0
        %380 = vmatprep.subr.mxu0 0.0
        %381 = vmatpush1.msra.mxu0 0.0
        %382 = vmatprep.subr.mxu0 0.0
        %383 = vmatpush1.msra.mxu0 0.0
        %384 = vmatprep.subr.mxu0 0.0
        %385 = vmatpush1.msra.mxu0 0.0
        %386 = vmatprep.subr.mxu0 0.0
        %387 = vmatpush1.msra.mxu0 0.0
        %388 = vmatprep.subr.mxu0 0.0
        %389 = vmatpush1.msra.mxu0 0.0
        %390 = vmatprep.subr.mxu0 0.0
        %391 = vmatpush1.msra.mxu0 0.0
        %392 = vmatprep.mubr.f32.mxu0 0.0
        %393 = vmatmul.mubr.f32.gmra.mrb[0].mxu0 %v281
        %v394 = vpop.f32.mrb[0].mxu0
        %v395 = vadd.f32 %v278, %v394
        %v396 = vpop.f32.mrb[0].mxu0
        %397 = vmatprep.mubr.f32.mxu0 0.0
        %398 = vmatmul.mubr.f32.gmra.mrb[0].mxu0 %v284
        %v399 = vpop.f32.mrb[0].mxu0
        %v400 = vadd.f32 %v278, %v399
        %v401 = vpop.f32.mrb[0].mxu0
        %402 = vmatprep.mubr.f32.mxu0 0.0
        %403 = vmatmul.mubr.f32.gmra.mrb[0].mxu0 %v287
        %v404 = vpop.f32.mrb[0].mxu0
        %v405 = vadd.f32 %v278, %v404
        %v406 = vpop.f32.mrb[0].mxu0
        %407 = vmatprep.mubr.f32.mxu0 0.0
        %408 = vmatmul.mubr.f32.gmra.mrb[0].mxu0 %v290
        %v409 = vpop.f32.mrb[0].mxu0
        %v410 = vadd.f32 %v278, %v409
        %v411 = vpop.f32.mrb[0].mxu0
        %412 = vmatprep.mubr.f32.mxu0 0.0
        %413 = vmatmul.mubr.f32.gmra.mrb[0].mxu0 %v293
        %v414 = vpop.f32.mrb[0].mxu0
        %v415 = vadd.f32 %v278, %v414
        %v416 = vpop.f32.mrb[0].mxu0
        %417 = vmatprep.mubr.f32.mxu0 0.0
        %418 = vmatmul.mubr.f32.gmra.mrb[0].mxu0 %v296
        %v419 = vpop.f32.mrb[0].mxu0
        %v420 = vadd.f32 %v278, %v419
        %v421 = vpop.f32.mrb[0].mxu0
        %422 = vmatprep.mubr.f32.mxu0 0.0
        %423 = vmatmul.mubr.f32.gmra.mrb[0].mxu0 %v299
        %v424 = vpop.f32.mrb[0].mxu0
        %v425 = vadd.f32 %v278, %v424
        %v426 = vpop.f32.mrb[0].mxu0
        %427 = vmatprep.mubr.f32.mxu0 0.0
        %428 = vmatmul.mubr.f32.gmra.mrb[0].mxu0 %v302
        %v429 = vpop.f32.mrb[0].mxu0
        %v430 = vadd.f32 %v278, %v429
        %v431 = vpop.f32.mrb[0].mxu0
        %432 = vmatprep.mubr.f32.mxu0 0.0
        %433 = vmatmul.mubr.f32.gmra.mrb[0].mxu0 %v305
        %v434 = vpop.f32.mrb[0].mxu0
        %v435 = vadd.f32 %v278, %v434
        %v436 = vpop.f32.mrb[0].mxu0
        %437 = vmatprep.mubr.f32.mxu0 0.0
        %438 = vmatmul.mubr.f32.gmra.mrb[0].mxu0 %v308
        %v439 = vpop.f32.mrb[0].mxu0
        %v440 = vadd.f32 %v278, %v439
        %v441 = vpop.f32.mrb[0].mxu0
        %442 = vmatprep.mubr.f32.mxu0 0.0
        %443 = vmatmul.mubr.f32.gmra.mrb[0].mxu0 %v311
        %v444 = vpop.f32.mrb[0].mxu0
        %v445 = vadd.f32 %v278, %v444
        %v446 = vpop.f32.mrb[0].mxu0
        %447 = vmatprep.mubr.f32.mxu0 0.0
        %448 = vmatmul.mubr.f32.gmra.mrb[0].mxu0 %v314
        %v449 = vpop.f32.mrb[0].mxu0
        %v450 = vadd.f32 %v278, %v449
        %v451 = vpop.f32.mrb[0].mxu0
        %452 = vmatprep.mubr.f32.mxu0 0.0
        %453 = vmatmul.mubr.f32.gmra.mrb[0].mxu0 %v317
        %v454 = vpop.f32.mrb[0].mxu0
        %v455 = vadd.f32 %v278, %v454
        %v456 = vpop.f32.mrb[0].mxu0
        %457 = vmatprep.mubr.f32.mxu0 0.0
        %458 = vmatmul.mubr.f32.gmra.mrb[0].mxu0 %v320
        %v459 = vpop.f32.mrb[0].mxu0
        %v460 = vadd.f32 %v278, %v459
        %v461 = vpop.f32.mrb[0].mxu0
        %462 = vmatprep.mubr.f32.mxu0 0.0
        %463 = vmatmul.mubr.f32.gmra.mrb[0].mxu0 %v323
        %v464 = vpop.f32.mrb[0].mxu0
        %v465 = vadd.f32 %v278, %v464
        %v466 = vpop.f32.mrb[0].mxu0
        %467 = vmatprep.mubr.f32.mxu0 0.0
        %468 = vmatmul.mubr.f32.gmra.mrb[0].mxu0 %v326
        %v469 = vpop.f32.mrb[0].mxu0
        %v470 = vadd.f32 %v278, %v469
        %v471 = vpop.f32.mrb[0].mxu0
        %472 = vdwg.mxu0
        %v473 = vmax.f32 %v395, 0.0
        %v474 = vmax.f32 %v400, 0.0
        %v475 = vmax.f32 %v405, 0.0
        %v476 = vmax.f32 %v410, 0.0
        %v477 = vmax.f32 %v415, 0.0
        %v478 = vmax.f32 %v420, 0.0
        %v479 = vmax.f32 %v425, 0.0
        %v480 = vmax.f32 %v430, 0.0
        %v481 = vmax.f32 %v435, 0.0
        %v482 = vmax.f32 %v440, 0.0
        %v483 = vmax.f32 %v445, 0.0
        %v484 = vmax.f32 %v450, 0.0
        %v485 = vmax.f32 %v455, 0.0
        %v486 = vmax.f32 %v460, 0.0
        %v487 = vmax.f32 %v465, 0.0
        %v488 = vmax.f32 %v470, 0.0
        %vm489 = vcmask 261120
        %v491 = vsel %vm489, %v473, 0
        %v494 = vsel %vm489, %v474, 0
        %v497 = vsel %vm489, %v475, 0
        %v500 = vsel %vm489, %v476, 0
        %v503 = vsel %vm489, %v477, 0
        %v506 = vsel %vm489, %v478, 0
        %v509 = vsel %vm489, %v479, 0
        %v512 = vsel %vm489, %v480, 0
        %v515 = vsel %vm489, %v481, 0
        %v518 = vsel %vm489, %v482, 0
        %v521 = vsel %vm489, %v483, 0
        %v524 = vsel %vm489, %v484, 0
        %v527 = vsel %vm489, %v485, 0
        %v530 = vsel %vm489, %v486, 0
        %v533 = vsel %vm489, %v487, 0
        %v536 = vsel %vm489, %v488, 0
        %538 = vmatprep.subr.mxu0 0.0
        %539 = vmatpush1.msra.mxu0 %v263
        %540 = vmatprep.subr.mxu0 0.0
        %541 = vmatpush1.msra.mxu0 %v264
        %542 = vmatprep.subr.mxu0 0.0
        %543 = vmatpush1.msra.mxu0 %v265
        %544 = vmatprep.subr.mxu0 0.0
        %545 = vmatpush1.msra.mxu0 %v266
        %546 = vmatprep.subr.mxu0 0.0
        %547 = vmatpush1.msra.mxu0 0.0
        %548 = vmatprep.subr.mxu0 0.0
        %549 = vmatpush1.msra.mxu0 0.0
        %550 = vmatprep.subr.mxu0 0.0
        %551 = vmatpush1.msra.mxu0 0.0
        %552 = vmatprep.subr.mxu0 0.0
        %553 = vmatpush1.msra.mxu0 0.0
        %554 = vmatprep.subr.mxu0 0.0
        %555 = vmatpush1.msra.mxu0 0.0
        %556 = vmatprep.subr.mxu0 0.0
        %557 = vmatpush1.msra.mxu0 0.0
        %558 = vmatprep.subr.mxu0 0.0
        %559 = vmatpush1.msra.mxu0 0.0
        %560 = vmatprep.subr.mxu0 0.0
        %561 = vmatpush1.msra.mxu0 0.0
        %562 = vmatprep.subr.mxu0 0.0
        %563 = vmatpush1.msra.mxu0 0.0
        %564 = vmatprep.subr.mxu0 0.0
        %565 = vmatpush1.msra.mxu0 0.0
        %566 = vmatprep.subr.mxu0 0.0
        %567 = vmatpush1.msra.mxu0 0.0
        %568 = vmatprep.subr.mxu0 0.0
        %569 = vmatpush1.msra.mxu0 0.0
        %570 = vmatprep.subr.mxu0 0.0
        %571 = vmatpush1.msra.mxu0 0.0
        %572 = vmatprep.subr.mxu0 0.0
        %573 = vmatpush1.msra.mxu0 0.0
        %574 = vmatprep.subr.mxu0 0.0
        %575 = vmatpush1.msra.mxu0 0.0
        %576 = vmatprep.subr.mxu0 0.0
        %577 = vmatpush1.msra.mxu0 0.0
        %578 = vmatprep.subr.mxu0 0.0
        %579 = vmatpush1.msra.mxu0 0.0
        %580 = vmatprep.subr.mxu0 0.0
        %581 = vmatpush1.msra.mxu0 0.0
        %582 = vmatprep.subr.mxu0 0.0
        %583 = vmatpush1.msra.mxu0 0.0
        %584 = vmatprep.subr.mxu0 0.0
        %585 = vmatpush1.msra.mxu0 0.0
        %586 = vmatprep.subr.mxu0 0.0
        %587 = vmatpush1.msra.mxu0 0.0
        %588 = vmatprep.subr.mxu0 0.0
        %589 = vmatpush1.msra.mxu0 0.0
        %590 = vmatprep.subr.mxu0 0.0
        %591 = vmatpush1.msra.mxu0 0.0
        %592 = vmatprep.subr.mxu0 0.0
        %593 = vmatpush1.msra.mxu0 0.0
        %594 = vmatprep.subr.mxu0 0.0
        %595 = vmatpush1.msra.mxu0 0.0
        %596 = vmatprep.subr.mxu0 0.0
        %597 = vmatpush1.msra.mxu0 0.0
        %598 = vmatprep.subr.mxu0 0.0
        %599 = vmatpush1.msra.mxu0 0.0
        %600 = vmatprep.subr.mxu0 0.0
        %601 = vmatpush1.msra.mxu0 0.0
        %602 = vmatprep.mubr.f32.mxu0 0.0
        %603 = vmatmul.mubr.f32.gmra.mrb[0].mxu0 %v491
        %v604 = vpop.f32.mrb[0].mxu0
        %v605 = vadd.f32 0.0, %v604
        %v606 = vpop.f32.mrb[0].mxu0
        %607 = vmatprep.mubr.f32.mxu0 0.0
        %608 = vmatmul.mubr.f32.gmra.mrb[0].mxu0 %v494
        %v609 = vpop.f32.mrb[0].mxu0
        %v610 = vadd.f32 0.0, %v609
        %v611 = vpop.f32.mrb[0].mxu0
        %612 = vmatprep.mubr.f32.mxu0 0.0
        %613 = vmatmul.mubr.f32.gmra.mrb[0].mxu0 %v497
        %v614 = vpop.f32.mrb[0].mxu0
        %v615 = vadd.f32 0.0, %v614
        %v616 = vpop.f32.mrb[0].mxu0
        %617 = vmatprep.mubr.f32.mxu0 0.0
        %618 = vmatmul.mubr.f32.gmra.mrb[0].mxu0 %v500
        %v619 = vpop.f32.mrb[0].mxu0
        %v620 = vadd.f32 0.0, %v619
        %v621 = vpop.f32.mrb[0].mxu0
        %622 = vmatprep.mubr.f32.mxu0 0.0
        %623 = vmatmul.mubr.f32.gmra.mrb[0].mxu0 %v503
        %v624 = vpop.f32.mrb[0].mxu0
        %v625 = vadd.f32 0.0, %v624
        %v626 = vpop.f32.mrb[0].mxu0
        %627 = vmatprep.mubr.f32.mxu0 0.0
        %628 = vmatmul.mubr.f32.gmra.mrb[0].mxu0 %v506
        %v629 = vpop.f32.mrb[0].mxu0
        %v630 = vadd.f32 0.0, %v629
        %v631 = vpop.f32.mrb[0].mxu0
        %632 = vmatprep.mubr.f32.mxu0 0.0
        %633 = vmatmul.mubr.f32.gmra.mrb[0].mxu0 %v509
        %v634 = vpop.f32.mrb[0].mxu0
        %v635 = vadd.f32 0.0, %v634
        %v636 = vpop.f32.mrb[0].mxu0
        %637 = vmatprep.mubr.f32.mxu0 0.0
        %638 = vmatmul.mubr.f32.gmra.mrb[0].mxu0 %v512
        %v639 = vpop.f32.mrb[0].mxu0
        %v640 = vadd.f32 0.0, %v639
        %v641 = vpop.f32.mrb[0].mxu0
        %642 = vmatprep.mubr.f32.mxu0 0.0
        %643 = vmatmul.mubr.f32.gmra.mrb[0].mxu0 %v515
        %v644 = vpop.f32.mrb[0].mxu0
        %v645 = vadd.f32 0.0, %v644
        %v646 = vpop.f32.mrb[0].mxu0
        %647 = vmatprep.mubr.f32.mxu0 0.0
        %648 = vmatmul.mubr.f32.gmra.mrb[0].mxu0 %v518
        %v649 = vpop.f32.mrb[0].mxu0
        %v650 = vadd.f32 0.0, %v649
        %v651 = vpop.f32.mrb[0].mxu0
        %652 = vmatprep.mubr.f32.mxu0 0.0
        %653 = vmatmul.mubr.f32.gmra.mrb[0].mxu0 %v521
        %v654 = vpop.f32.mrb[0].mxu0
        %v655 = vadd.f32 0.0, %v654
        %v656 = vpop.f32.mrb[0].mxu0
        %657 = vmatprep.mubr.f32.mxu0 0.0
        %658 = vmatmul.mubr.f32.gmra.mrb[0].mxu0 %v524
        %v659 = vpop.f32.mrb[0].mxu0
        %v660 = vadd.f32 0.0, %v659
        %v661 = vpop.f32.mrb[0].mxu0
        %662 = vmatprep.mubr.f32.mxu0 0.0
        %663 = vmatmul.mubr.f32.gmra.mrb[0].mxu0 %v527
        %v664 = vpop.f32.mrb[0].mxu0
        %v665 = vadd.f32 0.0, %v664
        %v666 = vpop.f32.mrb[0].mxu0
        %667 = vmatprep.mubr.f32.mxu0 0.0
        %668 = vmatmul.mubr.f32.gmra.mrb[0].mxu0 %v530
        %v669 = vpop.f32.mrb[0].mxu0
        %v670 = vadd.f32 0.0, %v669
        %v671 = vpop.f32.mrb[0].mxu0
        %672 = vmatprep.mubr.f32.mxu0 0.0
        %673 = vmatmul.mubr.f32.gmra.mrb[0].mxu0 %v533
        %v674 = vpop.f32.mrb[0].mxu0
        %v675 = vadd.f32 0.0, %v674
        %v676 = vpop.f32.mrb[0].mxu0
        %677 = vmatprep.mubr.f32.mxu0 0.0
        %678 = vmatmul.mubr.f32.gmra.mrb[0].mxu0 %v536
        %v679 = vpop.f32.mrb[0].mxu0
        %v680 = vadd.f32 0.0, %v679
        %v681 = vpop.f32.mrb[0].mxu0
        %682 = vdwg.mxu0
        %v684 = vsel %vm489, %v254, 0
        %v687 = vsel %vm489, %v605, 0
        %v690 = vsel %vm489, %v610, 0
        %v693 = vsel %vm489, %v615, 0
        %v696 = vsel %vm489, %v620, 0
        %v699 = vsel %vm489, %v625, 0
        %v702 = vsel %vm489, %v630, 0
        %v705 = vsel %vm489, %v635, 0
        %v708 = vsel %vm489, %v640, 0
        %v711 = vsel %vm489, %v645, 0
        %v714 = vsel %vm489, %v650, 0
        %v717 = vsel %vm489, %v655, 0
        %v720 = vsel %vm489, %v660, 0
        %v723 = vsel %vm489, %v665, 0
        %v726 = vsel %vm489, %v670, 0
        %v729 = vsel %vm489, %v675, 0
        %v732 = vsel %vm489, %v680, 0
        %734 = vmatprep.subr.mxu0 0.0
        %735 = vmatpush1.xpose.msra.mxu0 %v687
        %736 = vmatprep.subr.mxu0 0.0
        %737 = vmatpush1.xpose.msra.mxu0 %v690
        %738 = vmatprep.subr.mxu0 0.0
        %739 = vmatpush1.xpose.msra.mxu0 %v693
        %740 = vmatprep.subr.mxu0 0.0
        %741 = vmatpush1.xpose.msra.mxu0 %v696
        %742 = vmatprep.subr.mxu0 0.0
        %743 = vmatpush1.xpose.msra.mxu0 %v699
        %744 = vmatprep.subr.mxu0 0.0
        %745 = vmatpush1.xpose.msra.mxu0 %v702
        %746 = vmatprep.subr.mxu0 0.0
        %747 = vmatpush1.xpose.msra.mxu0 %v705
        %748 = vmatprep.subr.mxu0 0.0
        %749 = vmatpush1.xpose.msra.mxu0 %v708
        %750 = vmatprep.subr.mxu0 0.0
        %751 = vmatpush1.xpose.msra.mxu0 %v711
        %752 = vmatprep.subr.mxu0 0.0
        %753 = vmatpush1.xpose.msra.mxu0 %v714
        %754 = vmatprep.subr.mxu0 0.0
        %755 = vmatpush1.xpose.msra.mxu0 %v717
        %756 = vmatprep.subr.mxu0 0.0
        %757 = vmatpush1.xpose.msra.mxu0 %v720
        %758 = vmatprep.subr.mxu0 0.0
        %759 = vmatpush1.xpose.msra.mxu0 %v723
        %760 = vmatprep.subr.mxu0 0.0
        %761 = vmatpush1.xpose.msra.mxu0 %v726
        %762 = vmatprep.subr.mxu0 0.0
        %763 = vmatpush1.xpose.msra.mxu0 %v729
        %764 = vmatprep.subr.mxu0 0.0
        %765 = vmatpush1.xpose.msra.mxu0 %v732
        %766 = vmatprep.subr.mxu0 0.0
        %767 = vmatpush1.xpose.msra.mxu0 0.0
        %768 = vmatprep.subr.mxu0 0.0
        %769 = vmatpush1.xpose.msra.mxu0 0.0
        %770 = vmatprep.subr.mxu0 0.0
        %771 = vmatpush1.xpose.msra.mxu0 0.0
        %772 = vmatprep.subr.mxu0 0.0
        %773 = vmatpush1.xpose.msra.mxu0 0.0
        %774 = vmatprep.subr.mxu0 0.0
        %775 = vmatpush1.xpose.msra.mxu0 0.0
        %776 = vmatprep.subr.mxu0 0.0
        %777 = vmatpush1.xpose.msra.mxu0 0.0
        %778 = vmatprep.subr.mxu0 0.0
        %779 = vmatpush1.xpose.msra.mxu0 0.0
        %780 = vmatprep.subr.mxu0 0.0
        %781 = vmatpush1.xpose.msra.mxu0 0.0
        %782 = vmatprep.subr.mxu0 0.0
        %783 = vmatpush1.xpose.msra.mxu0 0.0
        %784 = vmatprep.subr.mxu0 0.0
        %785 = vmatpush1.xpose.msra.mxu0 0.0
        %786 = vmatprep.subr.mxu0 0.0
        %787 = vmatpush1.xpose.msra.mxu0 0.0
        %788 = vmatprep.subr.mxu0 0.0
        %789 = vmatpush1.xpose.msra.mxu0 0.0
        %790 = vmatprep.subr.mxu0 0.0
        %791 = vmatpush1.xpose.msra.mxu0 0.0
        %792 = vmatprep.subr.mxu0 0.0
        %793 = vmatpush1.xpose.msra.mxu0 0.0
        %794 = vmatprep.subr.mxu0 0.0
        %795 = vmatpush1.xpose.msra.mxu0 0.0
        %796 = vmatprep.subr.mxu0 0.0
        %797 = vmatpush1.xpose.msra.mxu0 0.0
        %798 = vmatprep.mubr.f32.mxu0 0.0
        %799 = vmatmul.mubr.f32.gmra.mrb[0].mxu0 %v684
        %v800 = vpop.f32.mrb[0].mxu0
        %v801 = vadd.f32 0.0, %v800
        %v802 = vpop.f32.mrb[0].mxu0
        %803 = vdwg.mxu0
        %v804 = vlaneseq
        %v805 = vshrl.u32 %v804, 7
        %v806 = vsub.s32 0, %v805
        %v807 = vrot.slane %v257, %v806
        %v808 = vmul.f32 %v605, %v807
        %v809 = vmul.f32 %v610, %v807
        %v810 = vmul.f32 %v615, %v807
        %v811 = vmul.f32 %v620, %v807
        %v812 = vmul.f32 %v625, %v807
        %v813 = vmul.f32 %v630, %v807
        %v814 = vmul.f32 %v635, %v807
        %v815 = vmul.f32 %v640, %v807
        %v816 = vmul.f32 %v645, %v807
        %v817 = vmul.f32 %v650, %v807
        %v818 = vmul.f32 %v655, %v807
        %v819 = vmul.f32 %v660, %v807
        %v820 = vmul.f32 %v665, %v807
        %v821 = vmul.f32 %v670, %v807
        %v822 = vmul.f32 %v675, %v807
        %v823 = vmul.f32 %v680, %v807
        %v824 = vsel %vm489, %v808, 0.0
        %825 = vadd.xlane.f32.xlu0 %v824
        %v826 = vpop.xlane.xlu0 %825
        %v827 = vsel %vm489, %v809, 0.0
        %828 = vadd.xlane.f32.xlu0 %v827
        %v829 = vpop.xlane.xlu0 %828
        %v830 = vsel %vm489, %v810, 0.0
        %831 = vadd.xlane.f32.xlu0 %v830
        %v832 = vpop.xlane.xlu0 %831
        %v833 = vsel %vm489, %v811, 0.0
        %834 = vadd.xlane.f32.xlu0 %v833
        %v835 = vpop.xlane.xlu0 %834
        %v836 = vsel %vm489, %v812, 0.0
        %837 = vadd.xlane.f32.xlu0 %v836
        %v838 = vpop.xlane.xlu0 %837
        %v839 = vsel %vm489, %v813, 0.0
        %840 = vadd.xlane.f32.xlu0 %v839
        %v841 = vpop.xlane.xlu0 %840
        %v842 = vsel %vm489, %v814, 0.0
        %843 = vadd.xlane.f32.xlu0 %v842
        %v844 = vpop.xlane.xlu0 %843
        %v845 = vsel %vm489, %v815, 0.0
        %846 = vadd.xlane.f32.xlu0 %v845
        %v847 = vpop.xlane.xlu0 %846
        %v848 = vsel %vm489, %v816, 0.0
        %849 = vadd.xlane.f32.xlu0 %v848
        %v850 = vpop.xlane.xlu0 %849
        %v851 = vsel %vm489, %v817, 0.0
        %852 = vadd.xlane.f32.xlu0 %v851
        %v853 = vpop.xlane.xlu0 %852
        %v854 = vsel %vm489, %v818, 0.0
        %855 = vadd.xlane.f32.xlu0 %v854
        %v856 = vpop.xlane.xlu0 %855
        %v857 = vsel %vm489, %v819, 0.0
        %858 = vadd.xlane.f32.xlu0 %v857
        %v859 = vpop.xlane.xlu0 %858
        %v860 = vsel %vm489, %v820, 0.0
        %861 = vadd.xlane.f32.xlu0 %v860
        %v862 = vpop.xlane.xlu0 %861
        %v863 = vsel %vm489, %v821, 0.0
        %864 = vadd.xlane.f32.xlu0 %v863
        %v865 = vpop.xlane.xlu0 %864
        %v866 = vsel %vm489, %v822, 0.0
        %867 = vadd.xlane.f32.xlu0 %v866
        %v868 = vpop.xlane.xlu0 %867
        %v869 = vsel %vm489, %v823, 0.0
        %870 = vadd.xlane.f32.xlu0 %v869
        %v871 = vpop.xlane.xlu0 %870
        %v872 = vlaneseq
        %v873 = vshrl.u32 %v872, 7
        %v874 = vsub.s32 0, %v873
        %v875 = vrot.slane %v801, %v874
        %v876 = vadd.f32 %v826, %v875
        %v877 = vadd.f32 %v829, %v875
        %v878 = vadd.f32 %v832, %v875
        %v879 = vadd.f32 %v835, %v875
        %v880 = vadd.f32 %v838, %v875
        %v881 = vadd.f32 %v841, %v875
        %v882 = vadd.f32 %v844, %v875
        %v883 = vadd.f32 %v847, %v875
        %v884 = vadd.f32 %v850, %v875
        %v885 = vadd.f32 %v853, %v875
        %v886 = vadd.f32 %v856, %v875
        %v887 = vadd.f32 %v859, %v875
        %v888 = vadd.f32 %v862, %v875
        %v889 = vadd.f32 %v865, %v875
        %v890 = vadd.f32 %v868, %v875
        %v891 = vadd.f32 %v871, %v875
        %vm892 = vcmp.gt.f32.partialorder %v876, 0.0
        %vm893 = vcmp.gt.f32.partialorder %v877, 0.0
        %vm894 = vcmp.gt.f32.partialorder %v878, 0.0
        %vm895 = vcmp.gt.f32.partialorder %v879, 0.0
        %vm896 = vcmp.gt.f32.partialorder %v880, 0.0
        %vm897 = vcmp.gt.f32.partialorder %v881, 0.0
        %vm898 = vcmp.gt.f32.partialorder %v882, 0.0
        %vm899 = vcmp.gt.f32.partialorder %v883, 0.0
        %vm900 = vcmp.gt.f32.partialorder %v884, 0.0
        %vm901 = vcmp.gt.f32.partialorder %v885, 0.0
        %vm902 = vcmp.gt.f32.partialorder %v886, 0.0
        %vm903 = vcmp.gt.f32.partialorder %v887, 0.0
        %vm904 = vcmp.gt.f32.partialorder %v888, 0.0
        %vm905 = vcmp.gt.f32.partialorder %v889, 0.0
        %vm906 = vcmp.gt.f32.partialorder %v890, 0.0
        %vm907 = vcmp.gt.f32.partialorder %v891, 0.0
        %v908 = vmul.f32 %v876, 0.2
        %v909 = vmul.f32 %v877, 0.2
        %v910 = vmul.f32 %v878, 0.2
        %v911 = vmul.f32 %v879, 0.2
        %v912 = vmul.f32 %v880, 0.2
        %v913 = vmul.f32 %v881, 0.2
        %v914 = vmul.f32 %v882, 0.2
        %v915 = vmul.f32 %v883, 0.2
        %v916 = vmul.f32 %v884, 0.2
        %v917 = vmul.f32 %v885, 0.2
        %v918 = vmul.f32 %v886, 0.2
        %v919 = vmul.f32 %v887, 0.2
        %v920 = vmul.f32 %v888, 0.2
        %v921 = vmul.f32 %v889, 0.2
        %v922 = vmul.f32 %v890, 0.2
        %v923 = vmul.f32 %v891, 0.2
        %v924 = vsel %vm892, %v876, %v908
        %v925 = vsel %vm893, %v877, %v909
        %v926 = vsel %vm894, %v878, %v910
        %v927 = vsel %vm895, %v879, %v911
        %v928 = vsel %vm896, %v880, %v912
        %v929 = vsel %vm897, %v881, %v913
        %v930 = vsel %vm898, %v882, %v914
        %v931 = vsel %vm899, %v883, %v915
        %v932 = vsel %vm900, %v884, %v916
        %v933 = vsel %vm901, %v885, %v917
        %v934 = vsel %vm902, %v886, %v918
        %v935 = vsel %vm903, %v887, %v919
        %v936 = vsel %vm904, %v888, %v920
        %v937 = vsel %vm905, %v889, %v921
        %v938 = vsel %vm906, %v890, %v922
        %v939 = vsel %vm907, %v891, %v923
        %vm940 = vcmp.gt.f32.partialorder %v235, 0.0
        %vm941 = vcmp.gt.f32.partialorder %v236, 0.0
        %vm942 = vcmp.gt.f32.partialorder %v237, 0.0
        %vm943 = vcmp.gt.f32.partialorder %v238, 0.0
        %vm944 = vcmp.gt.f32.partialorder %v239, 0.0
        %vm945 = vcmp.gt.f32.partialorder %v240, 0.0
        %vm946 = vcmp.gt.f32.partialorder %v241, 0.0
        %vm947 = vcmp.gt.f32.partialorder %v242, 0.0
        %vm948 = vcmp.gt.f32.partialorder %v243, 0.0
        %vm949 = vcmp.gt.f32.partialorder %v244, 0.0
        %vm950 = vcmp.gt.f32.partialorder %v245, 0.0
        %vm951 = vcmp.gt.f32.partialorder %v246, 0.0
        %vm952 = vcmp.gt.f32.partialorder %v247, 0.0
        %vm953 = vcmp.gt.f32.partialorder %v248, 0.0
        %vm954 = vcmp.gt.f32.partialorder %v249, 0.0
        %vm955 = vcmp.gt.f32.partialorder %v250, 0.0
        %v956 = vsel %vm940, %v924, -1e+30
        %v957 = vsel %vm941, %v925, -1e+30
        %v958 = vsel %vm942, %v926, -1e+30
        %v959 = vsel %vm943, %v927, -1e+30
        %v960 = vsel %vm944, %v928, -1e+30
        %v961 = vsel %vm945, %v929, -1e+30
        %v962 = vsel %vm946, %v930, -1e+30
        %v963 = vsel %vm947, %v931, -1e+30
        %v964 = vsel %vm948, %v932, -1e+30
        %v965 = vsel %vm949, %v933, -1e+30
        %v966 = vsel %vm950, %v934, -1e+30
        %v967 = vsel %vm951, %v935, -1e+30
        %v968 = vsel %vm952, %v936, -1e+30
        %v969 = vsel %vm953, %v937, -1e+30
        %v970 = vsel %vm954, %v938, -1e+30
        %v971 = vsel %vm955, %v939, -1e+30
        %972 = vmax.xlane.f32.xlu0 %v956
        %v973 = vpop.xlane.xlu0 %972
        %974 = vmax.xlane.f32.xlu0 %v957
        %v975 = vpop.xlane.xlu0 %974
        %976 = vmax.xlane.f32.xlu0 %v958
        %v977 = vpop.xlane.xlu0 %976
        %978 = vmax.xlane.f32.xlu0 %v959
        %v979 = vpop.xlane.xlu0 %978
        %980 = vmax.xlane.f32.xlu0 %v960
        %v981 = vpop.xlane.xlu0 %980
        %982 = vmax.xlane.f32.xlu0 %v961
        %v983 = vpop.xlane.xlu0 %982
        %984 = vmax.xlane.f32.xlu0 %v962
        %v985 = vpop.xlane.xlu0 %984
        %986 = vmax.xlane.f32.xlu0 %v963
        %v987 = vpop.xlane.xlu0 %986
        %988 = vmax.xlane.f32.xlu0 %v964
        %v989 = vpop.xlane.xlu0 %988
        %990 = vmax.xlane.f32.xlu0 %v965
        %v991 = vpop.xlane.xlu0 %990
        %992 = vmax.xlane.f32.xlu0 %v966
        %v993 = vpop.xlane.xlu0 %992
        %994 = vmax.xlane.f32.xlu0 %v967
        %v995 = vpop.xlane.xlu0 %994
        %996 = vmax.xlane.f32.xlu0 %v968
        %v997 = vpop.xlane.xlu0 %996
        %998 = vmax.xlane.f32.xlu0 %v969
        %v999 = vpop.xlane.xlu0 %998
        %1000 = vmax.xlane.f32.xlu0 %v970
        %v1001 = vpop.xlane.xlu0 %1000
        %1002 = vmax.xlane.f32.xlu0 %v971
        %v1003 = vpop.xlane.xlu0 %1002
        %v1004 = vsub.f32 %v956, %v973
        %v1005 = vsub.f32 %v957, %v975
        %v1006 = vsub.f32 %v958, %v977
        %v1007 = vsub.f32 %v959, %v979
        %v1008 = vsub.f32 %v960, %v981
        %v1009 = vsub.f32 %v961, %v983
        %v1010 = vsub.f32 %v962, %v985
        %v1011 = vsub.f32 %v963, %v987
        %v1012 = vsub.f32 %v964, %v989
        %v1013 = vsub.f32 %v965, %v991
        %v1014 = vsub.f32 %v966, %v993
        %v1015 = vsub.f32 %v967, %v995
        %v1016 = vsub.f32 %v968, %v997
        %v1017 = vsub.f32 %v969, %v999
        %v1018 = vsub.f32 %v970, %v1001
        %v1019 = vsub.f32 %v971, %v1003
        %v1020 = vmul.f32 %v1004, 1.442695
        %v1021 = vpow.pop %v1020
        %v1022 = vmul.f32 %v1005, 1.442695
        %v1023 = vpow.pop %v1022
        %v1024 = vmul.f32 %v1006, 1.442695
        %v1025 = vpow.pop %v1024
        %v1026 = vmul.f32 %v1007, 1.442695
        %v1027 = vpow.pop %v1026
        %v1028 = vmul.f32 %v1008, 1.442695
        %v1029 = vpow.pop %v1028
        %v1030 = vmul.f32 %v1009, 1.442695
        %v1031 = vpow.pop %v1030
        %v1032 = vmul.f32 %v1010, 1.442695
        %v1033 = vpow.pop %v1032
        %v1034 = vmul.f32 %v1011, 1.442695
        %v1035 = vpow.pop %v1034
        %v1036 = vmul.f32 %v1012, 1.442695
        %v1037 = vpow.pop %v1036
        %v1038 = vmul.f32 %v1013, 1.442695
        %v1039 = vpow.pop %v1038
        %v1040 = vmul.f32 %v1014, 1.442695
        %v1041 = vpow.pop %v1040
        %v1042 = vmul.f32 %v1015, 1.442695
        %v1043 = vpow.pop %v1042
        %v1044 = vmul.f32 %v1016, 1.442695
        %v1045 = vpow.pop %v1044
        %v1046 = vmul.f32 %v1017, 1.442695
        %v1047 = vpow.pop %v1046
        %v1048 = vmul.f32 %v1018, 1.442695
        %v1049 = vpow.pop %v1048
        %v1050 = vmul.f32 %v1019, 1.442695
        %v1051 = vpow.pop %v1050
        %v1052 = vsel %vm940, %v1021, 0.0
        %v1053 = vsel %vm941, %v1023, 0.0
        %v1054 = vsel %vm942, %v1025, 0.0
        %v1055 = vsel %vm943, %v1027, 0.0
        %v1056 = vsel %vm944, %v1029, 0.0
        %v1057 = vsel %vm945, %v1031, 0.0
        %v1058 = vsel %vm946, %v1033, 0.0
        %v1059 = vsel %vm947, %v1035, 0.0
        %v1060 = vsel %vm948, %v1037, 0.0
        %v1061 = vsel %vm949, %v1039, 0.0
        %v1062 = vsel %vm950, %v1041, 0.0
        %v1063 = vsel %vm951, %v1043, 0.0
        %v1064 = vsel %vm952, %v1045, 0.0
        %v1065 = vsel %vm953, %v1047, 0.0
        %v1066 = vsel %vm954, %v1049, 0.0
        %v1067 = vsel %vm955, %v1051, 0.0
        %1068 = vadd.xlane.f32.xlu0 %v1052
        %v1069 = vpop.xlane.xlu0 %1068
        %1070 = vadd.xlane.f32.xlu0 %v1053
        %v1071 = vpop.xlane.xlu0 %1070
        %1072 = vadd.xlane.f32.xlu0 %v1054
        %v1073 = vpop.xlane.xlu0 %1072
        %1074 = vadd.xlane.f32.xlu0 %v1055
        %v1075 = vpop.xlane.xlu0 %1074
        %1076 = vadd.xlane.f32.xlu0 %v1056
        %v1077 = vpop.xlane.xlu0 %1076
        %1078 = vadd.xlane.f32.xlu0 %v1057
        %v1079 = vpop.xlane.xlu0 %1078
        %1080 = vadd.xlane.f32.xlu0 %v1058
        %v1081 = vpop.xlane.xlu0 %1080
        %1082 = vadd.xlane.f32.xlu0 %v1059
        %v1083 = vpop.xlane.xlu0 %1082
        %1084 = vadd.xlane.f32.xlu0 %v1060
        %v1085 = vpop.xlane.xlu0 %1084
        %1086 = vadd.xlane.f32.xlu0 %v1061
        %v1087 = vpop.xlane.xlu0 %1086
        %1088 = vadd.xlane.f32.xlu0 %v1062
        %v1089 = vpop.xlane.xlu0 %1088
        %1090 = vadd.xlane.f32.xlu0 %v1063
        %v1091 = vpop.xlane.xlu0 %1090
        %1092 = vadd.xlane.f32.xlu0 %v1064
        %v1093 = vpop.xlane.xlu0 %1092
        %1094 = vadd.xlane.f32.xlu0 %v1065
        %v1095 = vpop.xlane.xlu0 %1094
        %1096 = vadd.xlane.f32.xlu0 %v1066
        %v1097 = vpop.xlane.xlu0 %1096
        %1098 = vadd.xlane.f32.xlu0 %v1067
        %v1099 = vpop.xlane.xlu0 %1098
        %vm1100 = vcmp.eq.f32.partialorder %v1069, 0.0
        %vm1101 = vcmp.eq.f32.partialorder %v1071, 0.0
        %vm1102 = vcmp.eq.f32.partialorder %v1073, 0.0
        %vm1103 = vcmp.eq.f32.partialorder %v1075, 0.0
        %vm1104 = vcmp.eq.f32.partialorder %v1077, 0.0
        %vm1105 = vcmp.eq.f32.partialorder %v1079, 0.0
        %vm1106 = vcmp.eq.f32.partialorder %v1081, 0.0
        %vm1107 = vcmp.eq.f32.partialorder %v1083, 0.0
        %vm1108 = vcmp.eq.f32.partialorder %v1085, 0.0
        %vm1109 = vcmp.eq.f32.partialorder %v1087, 0.0
        %vm1110 = vcmp.eq.f32.partialorder %v1089, 0.0
        %vm1111 = vcmp.eq.f32.partialorder %v1091, 0.0
        %vm1112 = vcmp.eq.f32.partialorder %v1093, 0.0
        %vm1113 = vcmp.eq.f32.partialorder %v1095, 0.0
        %vm1114 = vcmp.eq.f32.partialorder %v1097, 0.0
        %vm1115 = vcmp.eq.f32.partialorder %v1099, 0.0
        %v1116 = vsel %vm1100, 1.0, %v1069
        %v1117 = vsel %vm1101, 1.0, %v1071
        %v1118 = vsel %vm1102, 1.0, %v1073
        %v1119 = vsel %vm1103, 1.0, %v1075
        %v1120 = vsel %vm1104, 1.0, %v1077
        %v1121 = vsel %vm1105, 1.0, %v1079
        %v1122 = vsel %vm1106, 1.0, %v1081
        %v1123 = vsel %vm1107, 1.0, %v1083
        %v1124 = vsel %vm1108, 1.0, %v1085
        %v1125 = vsel %vm1109, 1.0, %v1087
        %v1126 = vsel %vm1110, 1.0, %v1089
        %v1127 = vsel %vm1111, 1.0, %v1091
        %v1128 = vsel %vm1112, 1.0, %v1093
        %v1129 = vsel %vm1113, 1.0, %v1095
        %v1130 = vsel %vm1114, 1.0, %v1097
        %v1131 = vsel %vm1115, 1.0, %v1099
        %v1132 = vrcp.pop %v1116
        %v1133 = vrcp.pop %v1117
        %v1134 = vrcp.pop %v1118
        %v1135 = vrcp.pop %v1119
        %v1136 = vrcp.pop %v1120
        %v1137 = vrcp.pop %v1121
        %v1138 = vrcp.pop %v1122
        %v1139 = vrcp.pop %v1123
        %v1140 = vrcp.pop %v1124
        %v1141 = vrcp.pop %v1125
        %v1142 = vrcp.pop %v1126
        %v1143 = vrcp.pop %v1127
        %v1144 = vrcp.pop %v1128
        %v1145 = vrcp.pop %v1129
        %v1146 = vrcp.pop %v1130
        %v1147 = vrcp.pop %v1131
        %v1148 = vmul.f32 %v1052, %v1132
        %v1149 = vmul.f32 %v1053, %v1133
        %v1150 = vmul.f32 %v1054, %v1134
        %v1151 = vmul.f32 %v1055, %v1135
        %v1152 = vmul.f32 %v1056, %v1136
        %v1153 = vmul.f32 %v1057, %v1137
        %v1154 = vmul.f32 %v1058, %v1138
        %v1155 = vmul.f32 %v1059, %v1139
        %v1156 = vmul.f32 %v1060, %v1140
        %v1157 = vmul.f32 %v1061, %v1141
        %v1158 = vmul.f32 %v1062, %v1142
        %v1159 = vmul.f32 %v1063, %v1143
        %v1160 = vmul.f32 %v1064, %v1144
        %v1161 = vmul.f32 %v1065, %v1145
        %v1162 = vmul.f32 %v1066, %v1146
        %v1163 = vmul.f32 %v1067, %v1147
        %v1164 = vlaneseq
        %v1165 = vshrl.u32 %v1164, 7
        %v1166 = vsub.s32 0, %v1165
        %v1167 = vrot.slane %v260, %v1166
        %1168 = vmatprep.subr.mxu0 0.0
        %1169 = vmatpush1.msra.mxu0 %v605
        %1170 = vmatprep.subr.mxu0 0.0
        %1171 = vmatpush1.msra.mxu0 %v610
        %1172 = vmatprep.subr.mxu0 0.0
        %1173 = vmatpush1.msra.mxu0 %v615
        %1174 = vmatprep.subr.mxu0 0.0
        %1175 = vmatpush1.msra.mxu0 %v620
        %1176 = vmatprep.subr.mxu0 0.0
        %1177 = vmatpush1.msra.mxu0 %v625
        %1178 = vmatprep.subr.mxu0 0.0
        %1179 = vmatpush1.msra.mxu0 %v630
        %1180 = vmatprep.subr.mxu0 0.0
        %1181 = vmatpush1.msra.mxu0 %v635
        %1182 = vmatprep.subr.mxu0 0.0
        %1183 = vmatpush1.msra.mxu0 %v640
        %1184 = vmatprep.subr.mxu0 0.0
        %1185 = vmatpush1.msra.mxu0 %v645
        %1186 = vmatprep.subr.mxu0 0.0
        %1187 = vmatpush1.msra.mxu0 %v650
        %1188 = vmatprep.subr.mxu0 0.0
        %1189 = vmatpush1.msra.mxu0 %v655
        %1190 = vmatprep.subr.mxu0 0.0
        %1191 = vmatpush1.msra.mxu0 %v660
        %1192 = vmatprep.subr.mxu0 0.0
        %1193 = vmatpush1.msra.mxu0 %v665
        %1194 = vmatprep.subr.mxu0 0.0
        %1195 = vmatpush1.msra.mxu0 %v670
        %1196 = vmatprep.subr.mxu0 0.0
        %1197 = vmatpush1.msra.mxu0 %v675
        %1198 = vmatprep.subr.mxu0 0.0
        %1199 = vmatpush1.msra.mxu0 %v680
        %1200 = vmatprep.subr.mxu0 0.0
        %1201 = vmatpush1.msra.mxu0 0.0
        %1202 = vmatprep.subr.mxu0 0.0
        %1203 = vmatpush1.msra.mxu0 0.0
        %1204 = vmatprep.subr.mxu0 0.0
        %1205 = vmatpush1.msra.mxu0 0.0
        %1206 = vmatprep.subr.mxu0 0.0
        %1207 = vmatpush1.msra.mxu0 0.0
        %1208 = vmatprep.subr.mxu0 0.0
        %1209 = vmatpush1.msra.mxu0 0.0
        %1210 = vmatprep.subr.mxu0 0.0
        %1211 = vmatpush1.msra.mxu0 0.0
        %1212 = vmatprep.subr.mxu0 0.0
        %1213 = vmatpush1.msra.mxu0 0.0
        %1214 = vmatprep.subr.mxu0 0.0
        %1215 = vmatpush1.msra.mxu0 0.0
        %1216 = vmatprep.subr.mxu0 0.0
        %1217 = vmatpush1.msra.mxu0 0.0
        %1218 = vmatprep.subr.mxu0 0.0
        %1219 = vmatpush1.msra.mxu0 0.0
        %1220 = vmatprep.subr.mxu0 0.0
        %1221 = vmatpush1.msra.mxu0 0.0
        %1222 = vmatprep.subr.mxu0 0.0
        %1223 = vmatpush1.msra.mxu0 0.0
        %1224 = vmatprep.subr.mxu0 0.0
        %1225 = vmatpush1.msra.mxu0 0.0
        %1226 = vmatprep.subr.mxu0 0.0
        %1227 = vmatpush1.msra.mxu0 0.0
        %1228 = vmatprep.subr.mxu0 0.0
        %1229 = vmatpush1.msra.mxu0 0.0
        %1230 = vmatprep.subr.mxu0 0.0
        %1231 = vmatpush1.msra.mxu0 0.0
        %1232 = vmatprep.mubr.f32.mxu0 0.0
        %1233 = vmatmul.mubr.f32.gmra.mrb[0].mxu0 %v1148
        %v1234 = vpop.f32.mrb[0].mxu0
        %v1235 = vadd.f32 %v1167, %v1234
        %v1236 = vpop.f32.mrb[0].mxu0
        %1237 = vmatprep.mubr.f32.mxu0 0.0
        %1238 = vmatmul.mubr.f32.gmra.mrb[0].mxu0 %v1149
        %v1239 = vpop.f32.mrb[0].mxu0
        %v1240 = vadd.f32 %v1167, %v1239
        %v1241 = vpop.f32.mrb[0].mxu0
        %1242 = vmatprep.mubr.f32.mxu0 0.0
        %1243 = vmatmul.mubr.f32.gmra.mrb[0].mxu0 %v1150
        %v1244 = vpop.f32.mrb[0].mxu0
        %v1245 = vadd.f32 %v1167, %v1244
        %v1246 = vpop.f32.mrb[0].mxu0
        %1247 = vmatprep.mubr.f32.mxu0 0.0
        %1248 = vmatmul.mubr.f32.gmra.mrb[0].mxu0 %v1151
        %v1249 = vpop.f32.mrb[0].mxu0
        %v1250 = vadd.f32 %v1167, %v1249
        %v1251 = vpop.f32.mrb[0].mxu0
        %1252 = vmatprep.mubr.f32.mxu0 0.0
        %1253 = vmatmul.mubr.f32.gmra.mrb[0].mxu0 %v1152
        %v1254 = vpop.f32.mrb[0].mxu0
        %v1255 = vadd.f32 %v1167, %v1254
        %v1256 = vpop.f32.mrb[0].mxu0
        %1257 = vmatprep.mubr.f32.mxu0 0.0
        %1258 = vmatmul.mubr.f32.gmra.mrb[0].mxu0 %v1153
        %v1259 = vpop.f32.mrb[0].mxu0
        %v1260 = vadd.f32 %v1167, %v1259
        %v1261 = vpop.f32.mrb[0].mxu0
        %1262 = vmatprep.mubr.f32.mxu0 0.0
        %1263 = vmatmul.mubr.f32.gmra.mrb[0].mxu0 %v1154
        %v1264 = vpop.f32.mrb[0].mxu0
        %v1265 = vadd.f32 %v1167, %v1264
        %v1266 = vpop.f32.mrb[0].mxu0
        %1267 = vmatprep.mubr.f32.mxu0 0.0
        %1268 = vmatmul.mubr.f32.gmra.mrb[0].mxu0 %v1155
        %v1269 = vpop.f32.mrb[0].mxu0
        %v1270 = vadd.f32 %v1167, %v1269
        %v1271 = vpop.f32.mrb[0].mxu0
        %1272 = vmatprep.mubr.f32.mxu0 0.0
        %1273 = vmatmul.mubr.f32.gmra.mrb[0].mxu0 %v1156
        %v1274 = vpop.f32.mrb[0].mxu0
        %v1275 = vadd.f32 %v1167, %v1274
        %v1276 = vpop.f32.mrb[0].mxu0
        %1277 = vmatprep.mubr.f32.mxu0 0.0
        %1278 = vmatmul.mubr.f32.gmra.mrb[0].mxu0 %v1157
        %v1279 = vpop.f32.mrb[0].mxu0
        %v1280 = vadd.f32 %v1167, %v1279
        %v1281 = vpop.f32.mrb[0].mxu0
        %1282 = vmatprep.mubr.f32.mxu0 0.0
        %1283 = vmatmul.mubr.f32.gmra.mrb[0].mxu0 %v1158
        %v1284 = vpop.f32.mrb[0].mxu0
        %v1285 = vadd.f32 %v1167, %v1284
        %v1286 = vpop.f32.mrb[0].mxu0
        %1287 = vmatprep.mubr.f32.mxu0 0.0
        %1288 = vmatmul.mubr.f32.gmra.mrb[0].mxu0 %v1159
        %v1289 = vpop.f32.mrb[0].mxu0
        %v1290 = vadd.f32 %v1167, %v1289
        %v1291 = vpop.f32.mrb[0].mxu0
        %1292 = vmatprep.mubr.f32.mxu0 0.0
        %1293 = vmatmul.mubr.f32.gmra.mrb[0].mxu0 %v1160
        %v1294 = vpop.f32.mrb[0].mxu0
        %v1295 = vadd.f32 %v1167, %v1294
        %v1296 = vpop.f32.mrb[0].mxu0
        %1297 = vmatprep.mubr.f32.mxu0 0.0
        %1298 = vmatmul.mubr.f32.gmra.mrb[0].mxu0 %v1161
        %v1299 = vpop.f32.mrb[0].mxu0
        %v1300 = vadd.f32 %v1167, %v1299
        %v1301 = vpop.f32.mrb[0].mxu0
        %1302 = vmatprep.mubr.f32.mxu0 0.0
        %1303 = vmatmul.mubr.f32.gmra.mrb[0].mxu0 %v1162
        %v1304 = vpop.f32.mrb[0].mxu0
        %v1305 = vadd.f32 %v1167, %v1304
        %v1306 = vpop.f32.mrb[0].mxu0
        %1307 = vmatprep.mubr.f32.mxu0 0.0
        %1308 = vmatmul.mubr.f32.gmra.mrb[0].mxu0 %v1163
        %v1309 = vpop.f32.mrb[0].mxu0
        %v1310 = vadd.f32 %v1167, %v1309
        %v1311 = vpop.f32.mrb[0].mxu0
        %1312 = vdwg.mxu0
        %v1313 = vmax.f32 %v1235, 0.0
        %v1314 = vmax.f32 %v1240, 0.0
        %v1315 = vmax.f32 %v1245, 0.0
        %v1316 = vmax.f32 %v1250, 0.0
        %v1317 = vmax.f32 %v1255, 0.0
        %v1318 = vmax.f32 %v1260, 0.0
        %v1319 = vmax.f32 %v1265, 0.0
        %v1320 = vmax.f32 %v1270, 0.0
        %v1321 = vmax.f32 %v1275, 0.0
        %v1322 = vmax.f32 %v1280, 0.0
        %v1323 = vmax.f32 %v1285, 0.0
        %v1324 = vmax.f32 %v1290, 0.0
        %v1325 = vmax.f32 %v1295, 0.0
        %v1326 = vmax.f32 %v1300, 0.0
        %v1327 = vmax.f32 %v1305, 0.0
        %v1328 = vmax.f32 %v1310, 0.0
        %v1330 = vsel %vm489, %v1313, 0
        %v1333 = vsel %vm489, %v1314, 0
        %v1336 = vsel %vm489, %v1315, 0
        %v1339 = vsel %vm489, %v1316, 0
        %v1342 = vsel %vm489, %v1317, 0
        %v1345 = vsel %vm489, %v1318, 0
        %v1348 = vsel %vm489, %v1319, 0
        %v1351 = vsel %vm489, %v1320, 0
        %v1354 = vsel %vm489, %v1321, 0
        %v1357 = vsel %vm489, %v1322, 0
        %v1360 = vsel %vm489, %v1323, 0
        %v1363 = vsel %vm489, %v1324, 0
        %v1366 = vsel %vm489, %v1325, 0
        %v1369 = vsel %vm489, %v1326, 0
        %v1372 = vsel %vm489, %v1327, 0
        %v1375 = vsel %vm489, %v1328, 0
        %1377 = vmatprep.subr.mxu0 0.0
        %1378 = vmatpush1.msra.mxu0 %v267
        %1379 = vmatprep.subr.mxu0 0.0
        %1380 = vmatpush1.msra.mxu0 %v268
        %1381 = vmatprep.subr.mxu0 0.0
        %1382 = vmatpush1.msra.mxu0 %v269
        %1383 = vmatprep.subr.mxu0 0.0
        %1384 = vmatpush1.msra.mxu0 %v270
        %1385 = vmatprep.subr.mxu0 0.0
        %1386 = vmatpush1.msra.mxu0 0.0
        %1387 = vmatprep.subr.mxu0 0.0
        %1388 = vmatpush1.msra.mxu0 0.0
        %1389 = vmatprep.subr.mxu0 0.0
        %1390 = vmatpush1.msra.mxu0 0.0
        %1391 = vmatprep.subr.mxu0 0.0
        %1392 = vmatpush1.msra.mxu0 0.0
        %1393 = vmatprep.subr.mxu0 0.0
        %1394 = vmatpush1.msra.mxu0 0.0
        %1395 = vmatprep.subr.mxu0 0.0
        %1396 = vmatpush1.msra.mxu0 0.0
        %1397 = vmatprep.subr.mxu0 0.0
        %1398 = vmatpush1.msra.mxu0 0.0
        %1399 = vmatprep.subr.mxu0 0.0
        %1400 = vmatpush1.msra.mxu0 0.0
        %1401 = vmatprep.subr.mxu0 0.0
        %1402 = vmatpush1.msra.mxu0 0.0
        %1403 = vmatprep.subr.mxu0 0.0
        %1404 = vmatpush1.msra.mxu0 0.0
        %1405 = vmatprep.subr.mxu0 0.0
        %1406 = vmatpush1.msra.mxu0 0.0
        %1407 = vmatprep.subr.mxu0 0.0
        %1408 = vmatpush1.msra.mxu0 0.0
        %1409 = vmatprep.subr.mxu0 0.0
        %1410 = vmatpush1.msra.mxu0 0.0
        %1411 = vmatprep.subr.mxu0 0.0
        %1412 = vmatpush1.msra.mxu0 0.0
        %1413 = vmatprep.subr.mxu0 0.0
        %1414 = vmatpush1.msra.mxu0 0.0
        %1415 = vmatprep.subr.mxu0 0.0
        %1416 = vmatpush1.msra.mxu0 0.0
        %1417 = vmatprep.subr.mxu0 0.0
        %1418 = vmatpush1.msra.mxu0 0.0
        %1419 = vmatprep.subr.mxu0 0.0
        %1420 = vmatpush1.msra.mxu0 0.0
        %1421 = vmatprep.subr.mxu0 0.0
        %1422 = vmatpush1.msra.mxu0 0.0
        %1423 = vmatprep.subr.mxu0 0.0
        %1424 = vmatpush1.msra.mxu0 0.0
        %1425 = vmatprep.subr.mxu0 0.0
        %1426 = vmatpush1.msra.mxu0 0.0
        %1427 = vmatprep.subr.mxu0 0.0
        %1428 = vmatpush1.msra.mxu0 0.0
        %1429 = vmatprep.subr.mxu0 0.0
        %1430 = vmatpush1.msra.mxu0 0.0
        %1431 = vmatprep.subr.mxu0 0.0
        %1432 = vmatpush1.msra.mxu0 0.0
        %1433 = vmatprep.subr.mxu0 0.0
        %1434 = vmatpush1.msra.mxu0 0.0
        %1435 = vmatprep.subr.mxu0 0.0
        %1436 = vmatpush1.msra.mxu0 0.0
        %1437 = vmatprep.subr.mxu0 0.0
        %1438 = vmatpush1.msra.mxu0 0.0
        %1439 = vmatprep.subr.mxu0 0.0
        %1440 = vmatpush1.msra.mxu0 0.0
        %1441 = vmatprep.mubr.f32.mxu0 0.0
        %1442 = vmatmul.mubr.f32.gmra.mrb[0].mxu0 %v1330
        %v1443 = vpop.f32.mrb[0].mxu0
        %v1444 = vadd.f32 0.0, %v1443
        %v1445 = vpop.f32.mrb[0].mxu0
        %1446 = vmatprep.mubr.f32.mxu0 0.0
        %1447 = vmatmul.mubr.f32.gmra.mrb[0].mxu0 %v1333
        %v1448 = vpop.f32.mrb[0].mxu0
        %v1449 = vadd.f32 0.0, %v1448
        %v1450 = vpop.f32.mrb[0].mxu0
        %1451 = vmatprep.mubr.f32.mxu0 0.0
        %1452 = vmatmul.mubr.f32.gmra.mrb[0].mxu0 %v1336
        %v1453 = vpop.f32.mrb[0].mxu0
        %v1454 = vadd.f32 0.0, %v1453
        %v1455 = vpop.f32.mrb[0].mxu0
        %1456 = vmatprep.mubr.f32.mxu0 0.0
        %1457 = vmatmul.mubr.f32.gmra.mrb[0].mxu0 %v1339
        %v1458 = vpop.f32.mrb[0].mxu0
        %v1459 = vadd.f32 0.0, %v1458
        %v1460 = vpop.f32.mrb[0].mxu0
        %1461 = vmatprep.mubr.f32.mxu0 0.0
        %1462 = vmatmul.mubr.f32.gmra.mrb[0].mxu0 %v1342
        %v1463 = vpop.f32.mrb[0].mxu0
        %v1464 = vadd.f32 0.0, %v1463
        %v1465 = vpop.f32.mrb[0].mxu0
        %1466 = vmatprep.mubr.f32.mxu0 0.0
        %1467 = vmatmul.mubr.f32.gmra.mrb[0].mxu0 %v1345
        %v1468 = vpop.f32.mrb[0].mxu0
        %v1469 = vadd.f32 0.0, %v1468
        %v1470 = vpop.f32.mrb[0].mxu0
        %1471 = vmatprep.mubr.f32.mxu0 0.0
        %1472 = vmatmul.mubr.f32.gmra.mrb[0].mxu0 %v1348
        %v1473 = vpop.f32.mrb[0].mxu0
        %v1474 = vadd.f32 0.0, %v1473
        %v1475 = vpop.f32.mrb[0].mxu0
        %1476 = vmatprep.mubr.f32.mxu0 0.0
        %1477 = vmatmul.mubr.f32.gmra.mrb[0].mxu0 %v1351
        %v1478 = vpop.f32.mrb[0].mxu0
        %v1479 = vadd.f32 0.0, %v1478
        %v1480 = vpop.f32.mrb[0].mxu0
        %1481 = vmatprep.mubr.f32.mxu0 0.0
        %1482 = vmatmul.mubr.f32.gmra.mrb[0].mxu0 %v1354
        %v1483 = vpop.f32.mrb[0].mxu0
        %v1484 = vadd.f32 0.0, %v1483
        %v1485 = vpop.f32.mrb[0].mxu0
        %1486 = vmatprep.mubr.f32.mxu0 0.0
        %1487 = vmatmul.mubr.f32.gmra.mrb[0].mxu0 %v1357
        %v1488 = vpop.f32.mrb[0].mxu0
        %v1489 = vadd.f32 0.0, %v1488
        %v1490 = vpop.f32.mrb[0].mxu0
        %1491 = vmatprep.mubr.f32.mxu0 0.0
        %1492 = vmatmul.mubr.f32.gmra.mrb[0].mxu0 %v1360
        %v1493 = vpop.f32.mrb[0].mxu0
        %v1494 = vadd.f32 0.0, %v1493
        %v1495 = vpop.f32.mrb[0].mxu0
        %1496 = vmatprep.mubr.f32.mxu0 0.0
        %1497 = vmatmul.mubr.f32.gmra.mrb[0].mxu0 %v1363
        %v1498 = vpop.f32.mrb[0].mxu0
        %v1499 = vadd.f32 0.0, %v1498
        %v1500 = vpop.f32.mrb[0].mxu0
        %1501 = vmatprep.mubr.f32.mxu0 0.0
        %1502 = vmatmul.mubr.f32.gmra.mrb[0].mxu0 %v1366
        %v1503 = vpop.f32.mrb[0].mxu0
        %v1504 = vadd.f32 0.0, %v1503
        %v1505 = vpop.f32.mrb[0].mxu0
        %1506 = vmatprep.mubr.f32.mxu0 0.0
        %1507 = vmatmul.mubr.f32.gmra.mrb[0].mxu0 %v1369
        %v1508 = vpop.f32.mrb[0].mxu0
        %v1509 = vadd.f32 0.0, %v1508
        %v1510 = vpop.f32.mrb[0].mxu0
        %1511 = vmatprep.mubr.f32.mxu0 0.0
        %1512 = vmatmul.mubr.f32.gmra.mrb[0].mxu0 %v1372
        %v1513 = vpop.f32.mrb[0].mxu0
        %v1514 = vadd.f32 0.0, %v1513
        %v1515 = vpop.f32.mrb[0].mxu0
        %1516 = vmatprep.mubr.f32.mxu0 0.0
        %1517 = vmatmul.mubr.f32.gmra.mrb[0].mxu0 %v1375
        %v1518 = vpop.f32.mrb[0].mxu0
        %v1519 = vadd.f32 0.0, %v1518
        %v1520 = vpop.f32.mrb[0].mxu0
        %1521 = vdwg.mxu0
        %v1523 = vsel %vm489, %v255, 0
        %v1526 = vsel %vm489, %v1444, 0
        %v1529 = vsel %vm489, %v1449, 0
        %v1532 = vsel %vm489, %v1454, 0
        %v1535 = vsel %vm489, %v1459, 0
        %v1538 = vsel %vm489, %v1464, 0
        %v1541 = vsel %vm489, %v1469, 0
        %v1544 = vsel %vm489, %v1474, 0
        %v1547 = vsel %vm489, %v1479, 0
        %v1550 = vsel %vm489, %v1484, 0
        %v1553 = vsel %vm489, %v1489, 0
        %v1556 = vsel %vm489, %v1494, 0
        %v1559 = vsel %vm489, %v1499, 0
        %v1562 = vsel %vm489, %v1504, 0
        %v1565 = vsel %vm489, %v1509, 0
        %v1568 = vsel %vm489, %v1514, 0
        %v1571 = vsel %vm489, %v1519, 0
        %1573 = vmatprep.subr.mxu0 0.0
        %1574 = vmatpush1.xpose.msra.mxu0 %v1526
        %1575 = vmatprep.subr.mxu0 0.0
        %1576 = vmatpush1.xpose.msra.mxu0 %v1529
        %1577 = vmatprep.subr.mxu0 0.0
        %1578 = vmatpush1.xpose.msra.mxu0 %v1532
        %1579 = vmatprep.subr.mxu0 0.0
        %1580 = vmatpush1.xpose.msra.mxu0 %v1535
        %1581 = vmatprep.subr.mxu0 0.0
        %1582 = vmatpush1.xpose.msra.mxu0 %v1538
        %1583 = vmatprep.subr.mxu0 0.0
        %1584 = vmatpush1.xpose.msra.mxu0 %v1541
        %1585 = vmatprep.subr.mxu0 0.0
        %1586 = vmatpush1.xpose.msra.mxu0 %v1544
        %1587 = vmatprep.subr.mxu0 0.0
        %1588 = vmatpush1.xpose.msra.mxu0 %v1547
        %1589 = vmatprep.subr.mxu0 0.0
        %1590 = vmatpush1.xpose.msra.mxu0 %v1550
        %1591 = vmatprep.subr.mxu0 0.0
        %1592 = vmatpush1.xpose.msra.mxu0 %v1553
        %1593 = vmatprep.subr.mxu0 0.0
        %1594 = vmatpush1.xpose.msra.mxu0 %v1556
        %1595 = vmatprep.subr.mxu0 0.0
        %1596 = vmatpush1.xpose.msra.mxu0 %v1559
        %1597 = vmatprep.subr.mxu0 0.0
        %1598 = vmatpush1.xpose.msra.mxu0 %v1562
        %1599 = vmatprep.subr.mxu0 0.0
        %1600 = vmatpush1.xpose.msra.mxu0 %v1565
        %1601 = vmatprep.subr.mxu0 0.0
        %1602 = vmatpush1.xpose.msra.mxu0 %v1568
        %1603 = vmatprep.subr.mxu0 0.0
        %1604 = vmatpush1.xpose.msra.mxu0 %v1571
        %1605 = vmatprep.subr.mxu0 0.0
        %1606 = vmatpush1.xpose.msra.mxu0 0.0
        %1607 = vmatprep.subr.mxu0 0.0
        %1608 = vmatpush1.xpose.msra.mxu0 0.0
        %1609 = vmatprep.subr.mxu0 0.0
        %1610 = vmatpush1.xpose.msra.mxu0 0.0
        %1611 = vmatprep.subr.mxu0 0.0
        %1612 = vmatpush1.xpose.msra.mxu0 0.0
        %1613 = vmatprep.subr.mxu0 0.0
        %1614 = vmatpush1.xpose.msra.mxu0 0.0
        %1615 = vmatprep.subr.mxu0 0.0
        %1616 = vmatpush1.xpose.msra.mxu0 0.0
        %1617 = vmatprep.subr.mxu0 0.0
        %1618 = vmatpush1.xpose.msra.mxu0 0.0
        %1619 = vmatprep.subr.mxu0 0.0
        %1620 = vmatpush1.xpose.msra.mxu0 0.0
        %1621 = vmatprep.subr.mxu0 0.0
        %1622 = vmatpush1.xpose.msra.mxu0 0.0
        %1623 = vmatprep.subr.mxu0 0.0
        %1624 = vmatpush1.xpose.msra.mxu0 0.0
        %1625 = vmatprep.subr.mxu0 0.0
        %1626 = vmatpush1.xpose.msra.mxu0 0.0
        %1627 = vmatprep.subr.mxu0 0.0
        %1628 = vmatpush1.xpose.msra.mxu0 0.0
        %1629 = vmatprep.subr.mxu0 0.0
        %1630 = vmatpush1.xpose.msra.mxu0 0.0
        %1631 = vmatprep.subr.mxu0 0.0
        %1632 = vmatpush1.xpose.msra.mxu0 0.0
        %1633 = vmatprep.subr.mxu0 0.0
        %1634 = vmatpush1.xpose.msra.mxu0 0.0
        %1635 = vmatprep.subr.mxu0 0.0
        %1636 = vmatpush1.xpose.msra.mxu0 0.0
        %1637 = vmatprep.mubr.f32.mxu0 0.0
        %1638 = vmatmul.mubr.f32.gmra.mrb[0].mxu0 %v1523
        %v1639 = vpop.f32.mrb[0].mxu0
        %v1640 = vadd.f32 0.0, %v1639
        %v1641 = vpop.f32.mrb[0].mxu0
        %1642 = vdwg.mxu0
        %v1643 = vlaneseq
        %v1644 = vshrl.u32 %v1643, 7
        %v1645 = vsub.s32 0, %v1644
        %v1646 = vrot.slane %v258, %v1645
        %v1647 = vmul.f32 %v1444, %v1646
        %v1648 = vmul.f32 %v1449, %v1646
        %v1649 = vmul.f32 %v1454, %v1646
        %v1650 = vmul.f32 %v1459, %v1646
        %v1651 = vmul.f32 %v1464, %v1646
        %v1652 = vmul.f32 %v1469, %v1646
        %v1653 = vmul.f32 %v1474, %v1646
        %v1654 = vmul.f32 %v1479, %v1646
        %v1655 = vmul.f32 %v1484, %v1646
        %v1656 = vmul.f32 %v1489, %v1646
        %v1657 = vmul.f32 %v1494, %v1646
        %v1658 = vmul.f32 %v1499, %v1646
        %v1659 = vmul.f32 %v1504, %v1646
        %v1660 = vmul.f32 %v1509, %v1646
        %v1661 = vmul.f32 %v1514, %v1646
        %v1662 = vmul.f32 %v1519, %v1646
        %v1663 = vsel %vm489, %v1647, 0.0
        %1664 = vadd.xlane.f32.xlu0 %v1663
        %v1665 = vpop.xlane.xlu0 %1664
        %v1666 = vsel %vm489, %v1648, 0.0
        %1667 = vadd.xlane.f32.xlu0 %v1666
        %v1668 = vpop.xlane.xlu0 %1667
        %v1669 = vsel %vm489, %v1649, 0.0
        %1670 = vadd.xlane.f32.xlu0 %v1669
        %v1671 = vpop.xlane.xlu0 %1670
        %v1672 = vsel %vm489, %v1650, 0.0
        %1673 = vadd.xlane.f32.xlu0 %v1672
        %v1674 = vpop.xlane.xlu0 %1673
        %v1675 = vsel %vm489, %v1651, 0.0
        %1676 = vadd.xlane.f32.xlu0 %v1675
        %v1677 = vpop.xlane.xlu0 %1676
        %v1678 = vsel %vm489, %v1652, 0.0
        %1679 = vadd.xlane.f32.xlu0 %v1678
        %v1680 = vpop.xlane.xlu0 %1679
        %v1681 = vsel %vm489, %v1653, 0.0
        %1682 = vadd.xlane.f32.xlu0 %v1681
        %v1683 = vpop.xlane.xlu0 %1682
        %v1684 = vsel %vm489, %v1654, 0.0
        %1685 = vadd.xlane.f32.xlu0 %v1684
        %v1686 = vpop.xlane.xlu0 %1685
        %v1687 = vsel %vm489, %v1655, 0.0
        %1688 = vadd.xlane.f32.xlu0 %v1687
        %v1689 = vpop.xlane.xlu0 %1688
        %v1690 = vsel %vm489, %v1656, 0.0
        %1691 = vadd.xlane.f32.xlu0 %v1690
        %v1692 = vpop.xlane.xlu0 %1691
        %v1693 = vsel %vm489, %v1657, 0.0
        %1694 = vadd.xlane.f32.xlu0 %v1693
        %v1695 = vpop.xlane.xlu0 %1694
        %v1696 = vsel %vm489, %v1658, 0.0
        %1697 = vadd.xlane.f32.xlu0 %v1696
        %v1698 = vpop.xlane.xlu0 %1697
        %v1699 = vsel %vm489, %v1659, 0.0
        %1700 = vadd.xlane.f32.xlu0 %v1699
        %v1701 = vpop.xlane.xlu0 %1700
        %v1702 = vsel %vm489, %v1660, 0.0
        %1703 = vadd.xlane.f32.xlu0 %v1702
        %v1704 = vpop.xlane.xlu0 %1703
        %v1705 = vsel %vm489, %v1661, 0.0
        %1706 = vadd.xlane.f32.xlu0 %v1705
        %v1707 = vpop.xlane.xlu0 %1706
        %v1708 = vsel %vm489, %v1662, 0.0
        %1709 = vadd.xlane.f32.xlu0 %v1708
        %v1710 = vpop.xlane.xlu0 %1709
        %v1711 = vlaneseq
        %v1712 = vshrl.u32 %v1711, 7
        %v1713 = vsub.s32 0, %v1712
        %v1714 = vrot.slane %v1640, %v1713
        %v1715 = vadd.f32 %v1665, %v1714
        %v1716 = vadd.f32 %v1668, %v1714
        %v1717 = vadd.f32 %v1671, %v1714
        %v1718 = vadd.f32 %v1674, %v1714
        %v1719 = vadd.f32 %v1677, %v1714
        %v1720 = vadd.f32 %v1680, %v1714
        %v1721 = vadd.f32 %v1683, %v1714
        %v1722 = vadd.f32 %v1686, %v1714
        %v1723 = vadd.f32 %v1689, %v1714
        %v1724 = vadd.f32 %v1692, %v1714
        %v1725 = vadd.f32 %v1695, %v1714
        %v1726 = vadd.f32 %v1698, %v1714
        %v1727 = vadd.f32 %v1701, %v1714
        %v1728 = vadd.f32 %v1704, %v1714
        %v1729 = vadd.f32 %v1707, %v1714
        %v1730 = vadd.f32 %v1710, %v1714
        %vm1731 = vcmp.gt.f32.partialorder %v1715, 0.0
        %vm1732 = vcmp.gt.f32.partialorder %v1716, 0.0
        %vm1733 = vcmp.gt.f32.partialorder %v1717, 0.0
        %vm1734 = vcmp.gt.f32.partialorder %v1718, 0.0
        %vm1735 = vcmp.gt.f32.partialorder %v1719, 0.0
        %vm1736 = vcmp.gt.f32.partialorder %v1720, 0.0
        %vm1737 = vcmp.gt.f32.partialorder %v1721, 0.0
        %vm1738 = vcmp.gt.f32.partialorder %v1722, 0.0
        %vm1739 = vcmp.gt.f32.partialorder %v1723, 0.0
        %vm1740 = vcmp.gt.f32.partialorder %v1724, 0.0
        %vm1741 = vcmp.gt.f32.partialorder %v1725, 0.0
        %vm1742 = vcmp.gt.f32.partialorder %v1726, 0.0
        %vm1743 = vcmp.gt.f32.partialorder %v1727, 0.0
        %vm1744 = vcmp.gt.f32.partialorder %v1728, 0.0
        %vm1745 = vcmp.gt.f32.partialorder %v1729, 0.0
        %vm1746 = vcmp.gt.f32.partialorder %v1730, 0.0
        %v1747 = vmul.f32 %v1715, 0.2
        %v1748 = vmul.f32 %v1716, 0.2
        %v1749 = vmul.f32 %v1717, 0.2
        %v1750 = vmul.f32 %v1718, 0.2
        %v1751 = vmul.f32 %v1719, 0.2
        %v1752 = vmul.f32 %v1720, 0.2
        %v1753 = vmul.f32 %v1721, 0.2
        %v1754 = vmul.f32 %v1722, 0.2
        %v1755 = vmul.f32 %v1723, 0.2
        %v1756 = vmul.f32 %v1724, 0.2
        %v1757 = vmul.f32 %v1725, 0.2
        %v1758 = vmul.f32 %v1726, 0.2
        %v1759 = vmul.f32 %v1727, 0.2
        %v1760 = vmul.f32 %v1728, 0.2
        %v1761 = vmul.f32 %v1729, 0.2
        %v1762 = vmul.f32 %v1730, 0.2
        %v1763 = vsel %vm1731, %v1715, %v1747
        %v1764 = vsel %vm1732, %v1716, %v1748
        %v1765 = vsel %vm1733, %v1717, %v1749
        %v1766 = vsel %vm1734, %v1718, %v1750
        %v1767 = vsel %vm1735, %v1719, %v1751
        %v1768 = vsel %vm1736, %v1720, %v1752
        %v1769 = vsel %vm1737, %v1721, %v1753
        %v1770 = vsel %vm1738, %v1722, %v1754
        %v1771 = vsel %vm1739, %v1723, %v1755
        %v1772 = vsel %vm1740, %v1724, %v1756
        %v1773 = vsel %vm1741, %v1725, %v1757
        %v1774 = vsel %vm1742, %v1726, %v1758
        %v1775 = vsel %vm1743, %v1727, %v1759
        %v1776 = vsel %vm1744, %v1728, %v1760
        %v1777 = vsel %vm1745, %v1729, %v1761
        %v1778 = vsel %vm1746, %v1730, %v1762
        %v1779 = vsel %vm940, %v1763, -1e+30
        %v1780 = vsel %vm941, %v1764, -1e+30
        %v1781 = vsel %vm942, %v1765, -1e+30
        %v1782 = vsel %vm943, %v1766, -1e+30
        %v1783 = vsel %vm944, %v1767, -1e+30
        %v1784 = vsel %vm945, %v1768, -1e+30
        %v1785 = vsel %vm946, %v1769, -1e+30
        %v1786 = vsel %vm947, %v1770, -1e+30
        %v1787 = vsel %vm948, %v1771, -1e+30
        %v1788 = vsel %vm949, %v1772, -1e+30
        %v1789 = vsel %vm950, %v1773, -1e+30
        %v1790 = vsel %vm951, %v1774, -1e+30
        %v1791 = vsel %vm952, %v1775, -1e+30
        %v1792 = vsel %vm953, %v1776, -1e+30
        %v1793 = vsel %vm954, %v1777, -1e+30
        %v1794 = vsel %vm955, %v1778, -1e+30
        %1795 = vmax.xlane.f32.xlu0 %v1779
        %v1796 = vpop.xlane.xlu0 %1795
        %1797 = vmax.xlane.f32.xlu0 %v1780
        %v1798 = vpop.xlane.xlu0 %1797
        %1799 = vmax.xlane.f32.xlu0 %v1781
        %v1800 = vpop.xlane.xlu0 %1799
        %1801 = vmax.xlane.f32.xlu0 %v1782
        %v1802 = vpop.xlane.xlu0 %1801
        %1803 = vmax.xlane.f32.xlu0 %v1783
        %v1804 = vpop.xlane.xlu0 %1803
        %1805 = vmax.xlane.f32.xlu0 %v1784
        %v1806 = vpop.xlane.xlu0 %1805
        %1807 = vmax.xlane.f32.xlu0 %v1785
        %v1808 = vpop.xlane.xlu0 %1807
        %1809 = vmax.xlane.f32.xlu0 %v1786
        %v1810 = vpop.xlane.xlu0 %1809
        %1811 = vmax.xlane.f32.xlu0 %v1787
        %v1812 = vpop.xlane.xlu0 %1811
        %1813 = vmax.xlane.f32.xlu0 %v1788
        %v1814 = vpop.xlane.xlu0 %1813
        %1815 = vmax.xlane.f32.xlu0 %v1789
        %v1816 = vpop.xlane.xlu0 %1815
        %1817 = vmax.xlane.f32.xlu0 %v1790
        %v1818 = vpop.xlane.xlu0 %1817
        %1819 = vmax.xlane.f32.xlu0 %v1791
        %v1820 = vpop.xlane.xlu0 %1819
        %1821 = vmax.xlane.f32.xlu0 %v1792
        %v1822 = vpop.xlane.xlu0 %1821
        %1823 = vmax.xlane.f32.xlu0 %v1793
        %v1824 = vpop.xlane.xlu0 %1823
        %1825 = vmax.xlane.f32.xlu0 %v1794
        %v1826 = vpop.xlane.xlu0 %1825
        %v1827 = vsub.f32 %v1779, %v1796
        %v1828 = vsub.f32 %v1780, %v1798
        %v1829 = vsub.f32 %v1781, %v1800
        %v1830 = vsub.f32 %v1782, %v1802
        %v1831 = vsub.f32 %v1783, %v1804
        %v1832 = vsub.f32 %v1784, %v1806
        %v1833 = vsub.f32 %v1785, %v1808
        %v1834 = vsub.f32 %v1786, %v1810
        %v1835 = vsub.f32 %v1787, %v1812
        %v1836 = vsub.f32 %v1788, %v1814
        %v1837 = vsub.f32 %v1789, %v1816
        %v1838 = vsub.f32 %v1790, %v1818
        %v1839 = vsub.f32 %v1791, %v1820
        %v1840 = vsub.f32 %v1792, %v1822
        %v1841 = vsub.f32 %v1793, %v1824
        %v1842 = vsub.f32 %v1794, %v1826
        %v1843 = vmul.f32 %v1827, 1.442695
        %v1844 = vpow.pop %v1843
        %v1845 = vmul.f32 %v1828, 1.442695
        %v1846 = vpow.pop %v1845
        %v1847 = vmul.f32 %v1829, 1.442695
        %v1848 = vpow.pop %v1847
        %v1849 = vmul.f32 %v1830, 1.442695
        %v1850 = vpow.pop %v1849
        %v1851 = vmul.f32 %v1831, 1.442695
        %v1852 = vpow.pop %v1851
        %v1853 = vmul.f32 %v1832, 1.442695
        %v1854 = vpow.pop %v1853
        %v1855 = vmul.f32 %v1833, 1.442695
        %v1856 = vpow.pop %v1855
        %v1857 = vmul.f32 %v1834, 1.442695
        %v1858 = vpow.pop %v1857
        %v1859 = vmul.f32 %v1835, 1.442695
        %v1860 = vpow.pop %v1859
        %v1861 = vmul.f32 %v1836, 1.442695
        %v1862 = vpow.pop %v1861
        %v1863 = vmul.f32 %v1837, 1.442695
        %v1864 = vpow.pop %v1863
        %v1865 = vmul.f32 %v1838, 1.442695
        %v1866 = vpow.pop %v1865
        %v1867 = vmul.f32 %v1839, 1.442695
        %v1868 = vpow.pop %v1867
        %v1869 = vmul.f32 %v1840, 1.442695
        %v1870 = vpow.pop %v1869
        %v1871 = vmul.f32 %v1841, 1.442695
        %v1872 = vpow.pop %v1871
        %v1873 = vmul.f32 %v1842, 1.442695
        %v1874 = vpow.pop %v1873
        %v1875 = vsel %vm940, %v1844, 0.0
        %v1876 = vsel %vm941, %v1846, 0.0
        %v1877 = vsel %vm942, %v1848, 0.0
        %v1878 = vsel %vm943, %v1850, 0.0
        %v1879 = vsel %vm944, %v1852, 0.0
        %v1880 = vsel %vm945, %v1854, 0.0
        %v1881 = vsel %vm946, %v1856, 0.0
        %v1882 = vsel %vm947, %v1858, 0.0
        %v1883 = vsel %vm948, %v1860, 0.0
        %v1884 = vsel %vm949, %v1862, 0.0
        %v1885 = vsel %vm950, %v1864, 0.0
        %v1886 = vsel %vm951, %v1866, 0.0
        %v1887 = vsel %vm952, %v1868, 0.0
        %v1888 = vsel %vm953, %v1870, 0.0
        %v1889 = vsel %vm954, %v1872, 0.0
        %v1890 = vsel %vm955, %v1874, 0.0
        %1891 = vadd.xlane.f32.xlu0 %v1875
        %v1892 = vpop.xlane.xlu0 %1891
        %1893 = vadd.xlane.f32.xlu0 %v1876
        %v1894 = vpop.xlane.xlu0 %1893
        %1895 = vadd.xlane.f32.xlu0 %v1877
        %v1896 = vpop.xlane.xlu0 %1895
        %1897 = vadd.xlane.f32.xlu0 %v1878
        %v1898 = vpop.xlane.xlu0 %1897
        %1899 = vadd.xlane.f32.xlu0 %v1879
        %v1900 = vpop.xlane.xlu0 %1899
        %1901 = vadd.xlane.f32.xlu0 %v1880
        %v1902 = vpop.xlane.xlu0 %1901
        %1903 = vadd.xlane.f32.xlu0 %v1881
        %v1904 = vpop.xlane.xlu0 %1903
        %1905 = vadd.xlane.f32.xlu0 %v1882
        %v1906 = vpop.xlane.xlu0 %1905
        %1907 = vadd.xlane.f32.xlu0 %v1883
        %v1908 = vpop.xlane.xlu0 %1907
        %1909 = vadd.xlane.f32.xlu0 %v1884
        %v1910 = vpop.xlane.xlu0 %1909
        %1911 = vadd.xlane.f32.xlu0 %v1885
        %v1912 = vpop.xlane.xlu0 %1911
        %1913 = vadd.xlane.f32.xlu0 %v1886
        %v1914 = vpop.xlane.xlu0 %1913
        %1915 = vadd.xlane.f32.xlu0 %v1887
        %v1916 = vpop.xlane.xlu0 %1915
        %1917 = vadd.xlane.f32.xlu0 %v1888
        %v1918 = vpop.xlane.xlu0 %1917
        %1919 = vadd.xlane.f32.xlu0 %v1889
        %v1920 = vpop.xlane.xlu0 %1919
        %1921 = vadd.xlane.f32.xlu0 %v1890
        %v1922 = vpop.xlane.xlu0 %1921
        %vm1923 = vcmp.eq.f32.partialorder %v1892, 0.0
        %vm1924 = vcmp.eq.f32.partialorder %v1894, 0.0
        %vm1925 = vcmp.eq.f32.partialorder %v1896, 0.0
        %vm1926 = vcmp.eq.f32.partialorder %v1898, 0.0
        %vm1927 = vcmp.eq.f32.partialorder %v1900, 0.0
        %vm1928 = vcmp.eq.f32.partialorder %v1902, 0.0
        %vm1929 = vcmp.eq.f32.partialorder %v1904, 0.0
        %vm1930 = vcmp.eq.f32.partialorder %v1906, 0.0
        %vm1931 = vcmp.eq.f32.partialorder %v1908, 0.0
        %vm1932 = vcmp.eq.f32.partialorder %v1910, 0.0
        %vm1933 = vcmp.eq.f32.partialorder %v1912, 0.0
        %vm1934 = vcmp.eq.f32.partialorder %v1914, 0.0
        %vm1935 = vcmp.eq.f32.partialorder %v1916, 0.0
        %vm1936 = vcmp.eq.f32.partialorder %v1918, 0.0
        %vm1937 = vcmp.eq.f32.partialorder %v1920, 0.0
        %vm1938 = vcmp.eq.f32.partialorder %v1922, 0.0
        %v1939 = vsel %vm1923, 1.0, %v1892
        %v1940 = vsel %vm1924, 1.0, %v1894
        %v1941 = vsel %vm1925, 1.0, %v1896
        %v1942 = vsel %vm1926, 1.0, %v1898
        %v1943 = vsel %vm1927, 1.0, %v1900
        %v1944 = vsel %vm1928, 1.0, %v1902
        %v1945 = vsel %vm1929, 1.0, %v1904
        %v1946 = vsel %vm1930, 1.0, %v1906
        %v1947 = vsel %vm1931, 1.0, %v1908
        %v1948 = vsel %vm1932, 1.0, %v1910
        %v1949 = vsel %vm1933, 1.0, %v1912
        %v1950 = vsel %vm1934, 1.0, %v1914
        %v1951 = vsel %vm1935, 1.0, %v1916
        %v1952 = vsel %vm1936, 1.0, %v1918
        %v1953 = vsel %vm1937, 1.0, %v1920
        %v1954 = vsel %vm1938, 1.0, %v1922
        %v1955 = vrcp.pop %v1939
        %v1956 = vrcp.pop %v1940
        %v1957 = vrcp.pop %v1941
        %v1958 = vrcp.pop %v1942
        %v1959 = vrcp.pop %v1943
        %v1960 = vrcp.pop %v1944
        %v1961 = vrcp.pop %v1945
        %v1962 = vrcp.pop %v1946
        %v1963 = vrcp.pop %v1947
        %v1964 = vrcp.pop %v1948
        %v1965 = vrcp.pop %v1949
        %v1966 = vrcp.pop %v1950
        %v1967 = vrcp.pop %v1951
        %v1968 = vrcp.pop %v1952
        %v1969 = vrcp.pop %v1953
        %v1970 = vrcp.pop %v1954
        %v1971 = vmul.f32 %v1875, %v1955
        %v1972 = vmul.f32 %v1876, %v1956
        %v1973 = vmul.f32 %v1877, %v1957
        %v1974 = vmul.f32 %v1878, %v1958
        %v1975 = vmul.f32 %v1879, %v1959
        %v1976 = vmul.f32 %v1880, %v1960
        %v1977 = vmul.f32 %v1881, %v1961
        %v1978 = vmul.f32 %v1882, %v1962
        %v1979 = vmul.f32 %v1883, %v1963
        %v1980 = vmul.f32 %v1884, %v1964
        %v1981 = vmul.f32 %v1885, %v1965
        %v1982 = vmul.f32 %v1886, %v1966
        %v1983 = vmul.f32 %v1887, %v1967
        %v1984 = vmul.f32 %v1888, %v1968
        %v1985 = vmul.f32 %v1889, %v1969
        %v1986 = vmul.f32 %v1890, %v1970
        %v1987 = vlaneseq
        %v1988 = vshrl.u32 %v1987, 7
        %v1989 = vsub.s32 0, %v1988
        %v1990 = vrot.slane %v261, %v1989
        %1991 = vmatprep.subr.mxu0 0.0
        %1992 = vmatpush1.msra.mxu0 %v1444
        %1993 = vmatprep.subr.mxu0 0.0
        %1994 = vmatpush1.msra.mxu0 %v1449
        %1995 = vmatprep.subr.mxu0 0.0
        %1996 = vmatpush1.msra.mxu0 %v1454
        %1997 = vmatprep.subr.mxu0 0.0
        %1998 = vmatpush1.msra.mxu0 %v1459
        %1999 = vmatprep.subr.mxu0 0.0
        %2000 = vmatpush1.msra.mxu0 %v1464
        %2001 = vmatprep.subr.mxu0 0.0
        %2002 = vmatpush1.msra.mxu0 %v1469
        %2003 = vmatprep.subr.mxu0 0.0
        %2004 = vmatpush1.msra.mxu0 %v1474
        %2005 = vmatprep.subr.mxu0 0.0
        %2006 = vmatpush1.msra.mxu0 %v1479
        %2007 = vmatprep.subr.mxu0 0.0
        %2008 = vmatpush1.msra.mxu0 %v1484
        %2009 = vmatprep.subr.mxu0 0.0
        %2010 = vmatpush1.msra.mxu0 %v1489
        %2011 = vmatprep.subr.mxu0 0.0
        %2012 = vmatpush1.msra.mxu0 %v1494
        %2013 = vmatprep.subr.mxu0 0.0
        %2014 = vmatpush1.msra.mxu0 %v1499
        %2015 = vmatprep.subr.mxu0 0.0
        %2016 = vmatpush1.msra.mxu0 %v1504
        %2017 = vmatprep.subr.mxu0 0.0
        %2018 = vmatpush1.msra.mxu0 %v1509
        %2019 = vmatprep.subr.mxu0 0.0
        %2020 = vmatpush1.msra.mxu0 %v1514
        %2021 = vmatprep.subr.mxu0 0.0
        %2022 = vmatpush1.msra.mxu0 %v1519
        %2023 = vmatprep.subr.mxu0 0.0
        %2024 = vmatpush1.msra.mxu0 0.0
        %2025 = vmatprep.subr.mxu0 0.0
        %2026 = vmatpush1.msra.mxu0 0.0
        %2027 = vmatprep.subr.mxu0 0.0
        %2028 = vmatpush1.msra.mxu0 0.0
        %2029 = vmatprep.subr.mxu0 0.0
        %2030 = vmatpush1.msra.mxu0 0.0
        %2031 = vmatprep.subr.mxu0 0.0
        %2032 = vmatpush1.msra.mxu0 0.0
        %2033 = vmatprep.subr.mxu0 0.0
        %2034 = vmatpush1.msra.mxu0 0.0
        %2035 = vmatprep.subr.mxu0 0.0
        %2036 = vmatpush1.msra.mxu0 0.0
        %2037 = vmatprep.subr.mxu0 0.0
        %2038 = vmatpush1.msra.mxu0 0.0
        %2039 = vmatprep.subr.mxu0 0.0
        %2040 = vmatpush1.msra.mxu0 0.0
        %2041 = vmatprep.subr.mxu0 0.0
        %2042 = vmatpush1.msra.mxu0 0.0
        %2043 = vmatprep.subr.mxu0 0.0
        %2044 = vmatpush1.msra.mxu0 0.0
        %2045 = vmatprep.subr.mxu0 0.0
        %2046 = vmatpush1.msra.mxu0 0.0
        %2047 = vmatprep.subr.mxu0 0.0
        %2048 = vmatpush1.msra.mxu0 0.0
        %2049 = vmatprep.subr.mxu0 0.0
        %2050 = vmatpush1.msra.mxu0 0.0
        %2051 = vmatprep.subr.mxu0 0.0
        %2052 = vmatpush1.msra.mxu0 0.0
        %2053 = vmatprep.subr.mxu0 0.0
        %2054 = vmatpush1.msra.mxu0 0.0
        %2055 = vmatprep.mubr.f32.mxu0 0.0
        %2056 = vmatmul.mubr.f32.gmra.mrb[0].mxu0 %v1971
        %v2057 = vpop.f32.mrb[0].mxu0
        %v2058 = vadd.f32 %v1990, %v2057
        %v2059 = vpop.f32.mrb[0].mxu0
        %2060 = vmatprep.mubr.f32.mxu0 0.0
        %2061 = vmatmul.mubr.f32.gmra.mrb[0].mxu0 %v1972
        %v2062 = vpop.f32.mrb[0].mxu0
        %v2063 = vadd.f32 %v1990, %v2062
        %v2064 = vpop.f32.mrb[0].mxu0
        %2065 = vmatprep.mubr.f32.mxu0 0.0
        %2066 = vmatmul.mubr.f32.gmra.mrb[0].mxu0 %v1973
        %v2067 = vpop.f32.mrb[0].mxu0
        %v2068 = vadd.f32 %v1990, %v2067
        %v2069 = vpop.f32.mrb[0].mxu0
        %2070 = vmatprep.mubr.f32.mxu0 0.0
        %2071 = vmatmul.mubr.f32.gmra.mrb[0].mxu0 %v1974
        %v2072 = vpop.f32.mrb[0].mxu0
        %v2073 = vadd.f32 %v1990, %v2072
        %v2074 = vpop.f32.mrb[0].mxu0
        %2075 = vmatprep.mubr.f32.mxu0 0.0
        %2076 = vmatmul.mubr.f32.gmra.mrb[0].mxu0 %v1975
        %v2077 = vpop.f32.mrb[0].mxu0
        %v2078 = vadd.f32 %v1990, %v2077
        %v2079 = vpop.f32.mrb[0].mxu0
        %2080 = vmatprep.mubr.f32.mxu0 0.0
        %2081 = vmatmul.mubr.f32.gmra.mrb[0].mxu0 %v1976
        %v2082 = vpop.f32.mrb[0].mxu0
        %v2083 = vadd.f32 %v1990, %v2082
        %v2084 = vpop.f32.mrb[0].mxu0
        %2085 = vmatprep.mubr.f32.mxu0 0.0
        %2086 = vmatmul.mubr.f32.gmra.mrb[0].mxu0 %v1977
        %v2087 = vpop.f32.mrb[0].mxu0
        %v2088 = vadd.f32 %v1990, %v2087
        %v2089 = vpop.f32.mrb[0].mxu0
        %2090 = vmatprep.mubr.f32.mxu0 0.0
        %2091 = vmatmul.mubr.f32.gmra.mrb[0].mxu0 %v1978
        %v2092 = vpop.f32.mrb[0].mxu0
        %v2093 = vadd.f32 %v1990, %v2092
        %v2094 = vpop.f32.mrb[0].mxu0
        %2095 = vmatprep.mubr.f32.mxu0 0.0
        %2096 = vmatmul.mubr.f32.gmra.mrb[0].mxu0 %v1979
        %v2097 = vpop.f32.mrb[0].mxu0
        %v2098 = vadd.f32 %v1990, %v2097
        %v2099 = vpop.f32.mrb[0].mxu0
        %2100 = vmatprep.mubr.f32.mxu0 0.0
        %2101 = vmatmul.mubr.f32.gmra.mrb[0].mxu0 %v1980
        %v2102 = vpop.f32.mrb[0].mxu0
        %v2103 = vadd.f32 %v1990, %v2102
        %v2104 = vpop.f32.mrb[0].mxu0
        %2105 = vmatprep.mubr.f32.mxu0 0.0
        %2106 = vmatmul.mubr.f32.gmra.mrb[0].mxu0 %v1981
        %v2107 = vpop.f32.mrb[0].mxu0
        %v2108 = vadd.f32 %v1990, %v2107
        %v2109 = vpop.f32.mrb[0].mxu0
        %2110 = vmatprep.mubr.f32.mxu0 0.0
        %2111 = vmatmul.mubr.f32.gmra.mrb[0].mxu0 %v1982
        %v2112 = vpop.f32.mrb[0].mxu0
        %v2113 = vadd.f32 %v1990, %v2112
        %v2114 = vpop.f32.mrb[0].mxu0
        %2115 = vmatprep.mubr.f32.mxu0 0.0
        %2116 = vmatmul.mubr.f32.gmra.mrb[0].mxu0 %v1983
        %v2117 = vpop.f32.mrb[0].mxu0
        %v2118 = vadd.f32 %v1990, %v2117
        %v2119 = vpop.f32.mrb[0].mxu0
        %2120 = vmatprep.mubr.f32.mxu0 0.0
        %2121 = vmatmul.mubr.f32.gmra.mrb[0].mxu0 %v1984
        %v2122 = vpop.f32.mrb[0].mxu0
        %v2123 = vadd.f32 %v1990, %v2122
        %v2124 = vpop.f32.mrb[0].mxu0
        %2125 = vmatprep.mubr.f32.mxu0 0.0
        %2126 = vmatmul.mubr.f32.gmra.mrb[0].mxu0 %v1985
        %v2127 = vpop.f32.mrb[0].mxu0
        %v2128 = vadd.f32 %v1990, %v2127
        %v2129 = vpop.f32.mrb[0].mxu0
        %2130 = vmatprep.mubr.f32.mxu0 0.0
        %2131 = vmatmul.mubr.f32.gmra.mrb[0].mxu0 %v1986
        %v2132 = vpop.f32.mrb[0].mxu0
        %v2133 = vadd.f32 %v1990, %v2132
        %v2134 = vpop.f32.mrb[0].mxu0
        %2135 = vdwg.mxu0
        %v2136 = vmax.f32 %v2058, 0.0
        %v2137 = vmax.f32 %v2063, 0.0
        %v2138 = vmax.f32 %v2068, 0.0
        %v2139 = vmax.f32 %v2073, 0.0
        %v2140 = vmax.f32 %v2078, 0.0
        %v2141 = vmax.f32 %v2083, 0.0
        %v2142 = vmax.f32 %v2088, 0.0
        %v2143 = vmax.f32 %v2093, 0.0
        %v2144 = vmax.f32 %v2098, 0.0
        %v2145 = vmax.f32 %v2103, 0.0
        %v2146 = vmax.f32 %v2108, 0.0
        %v2147 = vmax.f32 %v2113, 0.0
        %v2148 = vmax.f32 %v2118, 0.0
        %v2149 = vmax.f32 %v2123, 0.0
        %v2150 = vmax.f32 %v2128, 0.0
        %v2151 = vmax.f32 %v2133, 0.0
        %v2153 = vsel %vm489, %v2136, 0
        %v2156 = vsel %vm489, %v2137, 0
        %v2159 = vsel %vm489, %v2138, 0
        %v2162 = vsel %vm489, %v2139, 0
        %v2165 = vsel %vm489, %v2140, 0
        %v2168 = vsel %vm489, %v2141, 0
        %v2171 = vsel %vm489, %v2142, 0
        %v2174 = vsel %vm489, %v2143, 0
        %v2177 = vsel %vm489, %v2144, 0
        %v2180 = vsel %vm489, %v2145, 0
        %v2183 = vsel %vm489, %v2146, 0
        %v2186 = vsel %vm489, %v2147, 0
        %v2189 = vsel %vm489, %v2148, 0
        %v2192 = vsel %vm489, %v2149, 0
        %v2195 = vsel %vm489, %v2150, 0
        %v2198 = vsel %vm489, %v2151, 0
        %2200 = vmatprep.subr.mxu0 0.0
        %2201 = vmatpush1.msra.mxu0 %v271
        %2202 = vmatprep.subr.mxu0 0.0
        %2203 = vmatpush1.msra.mxu0 %v272
        %2204 = vmatprep.subr.mxu0 0.0
        %2205 = vmatpush1.msra.mxu0 %v273
        %2206 = vmatprep.subr.mxu0 0.0
        %2207 = vmatpush1.msra.mxu0 %v274
        %2208 = vmatprep.subr.mxu0 0.0
        %2209 = vmatpush1.msra.mxu0 0.0
        %2210 = vmatprep.subr.mxu0 0.0
        %2211 = vmatpush1.msra.mxu0 0.0
        %2212 = vmatprep.subr.mxu0 0.0
        %2213 = vmatpush1.msra.mxu0 0.0
        %2214 = vmatprep.subr.mxu0 0.0
        %2215 = vmatpush1.msra.mxu0 0.0
        %2216 = vmatprep.subr.mxu0 0.0
        %2217 = vmatpush1.msra.mxu0 0.0
        %2218 = vmatprep.subr.mxu0 0.0
        %2219 = vmatpush1.msra.mxu0 0.0
        %2220 = vmatprep.subr.mxu0 0.0
        %2221 = vmatpush1.msra.mxu0 0.0
        %2222 = vmatprep.subr.mxu0 0.0
        %2223 = vmatpush1.msra.mxu0 0.0
        %2224 = vmatprep.subr.mxu0 0.0
        %2225 = vmatpush1.msra.mxu0 0.0
        %2226 = vmatprep.subr.mxu0 0.0
        %2227 = vmatpush1.msra.mxu0 0.0
        %2228 = vmatprep.subr.mxu0 0.0
        %2229 = vmatpush1.msra.mxu0 0.0
        %2230 = vmatprep.subr.mxu0 0.0
        %2231 = vmatpush1.msra.mxu0 0.0
        %2232 = vmatprep.subr.mxu0 0.0
        %2233 = vmatpush1.msra.mxu0 0.0
        %2234 = vmatprep.subr.mxu0 0.0
        %2235 = vmatpush1.msra.mxu0 0.0
        %2236 = vmatprep.subr.mxu0 0.0
        %2237 = vmatpush1.msra.mxu0 0.0
        %2238 = vmatprep.subr.mxu0 0.0
        %2239 = vmatpush1.msra.mxu0 0.0
        %2240 = vmatprep.subr.mxu0 0.0
        %2241 = vmatpush1.msra.mxu0 0.0
        %2242 = vmatprep.subr.mxu0 0.0
        %2243 = vmatpush1.msra.mxu0 0.0
        %2244 = vmatprep.subr.mxu0 0.0
        %2245 = vmatpush1.msra.mxu0 0.0
        %2246 = vmatprep.subr.mxu0 0.0
        %2247 = vmatpush1.msra.mxu0 0.0
        %2248 = vmatprep.subr.mxu0 0.0
        %2249 = vmatpush1.msra.mxu0 0.0
        %2250 = vmatprep.subr.mxu0 0.0
        %2251 = vmatpush1.msra.mxu0 0.0
        %2252 = vmatprep.subr.mxu0 0.0
        %2253 = vmatpush1.msra.mxu0 0.0
        %2254 = vmatprep.subr.mxu0 0.0
        %2255 = vmatpush1.msra.mxu0 0.0
        %2256 = vmatprep.subr.mxu0 0.0
        %2257 = vmatpush1.msra.mxu0 0.0
        %2258 = vmatprep.subr.mxu0 0.0
        %2259 = vmatpush1.msra.mxu0 0.0
        %2260 = vmatprep.subr.mxu0 0.0
        %2261 = vmatpush1.msra.mxu0 0.0
        %2262 = vmatprep.subr.mxu0 0.0
        %2263 = vmatpush1.msra.mxu0 0.0
        %2264 = vmatprep.mubr.f32.mxu0 0.0
        %2265 = vmatmul.mubr.f32.gmra.mrb[0].mxu0 %v2153
        %v2266 = vpop.f32.mrb[0].mxu0
        %v2267 = vadd.f32 0.0, %v2266
        %v2268 = vpop.f32.mrb[0].mxu0
        %2269 = vmatprep.mubr.f32.mxu0 0.0
        %2270 = vmatmul.mubr.f32.gmra.mrb[0].mxu0 %v2156
        %v2271 = vpop.f32.mrb[0].mxu0
        %v2272 = vadd.f32 0.0, %v2271
        %v2273 = vpop.f32.mrb[0].mxu0
        %2274 = vmatprep.mubr.f32.mxu0 0.0
        %2275 = vmatmul.mubr.f32.gmra.mrb[0].mxu0 %v2159
        %v2276 = vpop.f32.mrb[0].mxu0
        %v2277 = vadd.f32 0.0, %v2276
        %v2278 = vpop.f32.mrb[0].mxu0
        %2279 = vmatprep.mubr.f32.mxu0 0.0
        %2280 = vmatmul.mubr.f32.gmra.mrb[0].mxu0 %v2162
        %v2281 = vpop.f32.mrb[0].mxu0
        %v2282 = vadd.f32 0.0, %v2281
        %v2283 = vpop.f32.mrb[0].mxu0
        %2284 = vmatprep.mubr.f32.mxu0 0.0
        %2285 = vmatmul.mubr.f32.gmra.mrb[0].mxu0 %v2165
        %v2286 = vpop.f32.mrb[0].mxu0
        %v2287 = vadd.f32 0.0, %v2286
        %v2288 = vpop.f32.mrb[0].mxu0
        %2289 = vmatprep.mubr.f32.mxu0 0.0
        %2290 = vmatmul.mubr.f32.gmra.mrb[0].mxu0 %v2168
        %v2291 = vpop.f32.mrb[0].mxu0
        %v2292 = vadd.f32 0.0, %v2291
        %v2293 = vpop.f32.mrb[0].mxu0
        %2294 = vmatprep.mubr.f32.mxu0 0.0
        %2295 = vmatmul.mubr.f32.gmra.mrb[0].mxu0 %v2171
        %v2296 = vpop.f32.mrb[0].mxu0
        %v2297 = vadd.f32 0.0, %v2296
        %v2298 = vpop.f32.mrb[0].mxu0
        %2299 = vmatprep.mubr.f32.mxu0 0.0
        %2300 = vmatmul.mubr.f32.gmra.mrb[0].mxu0 %v2174
        %v2301 = vpop.f32.mrb[0].mxu0
        %v2302 = vadd.f32 0.0, %v2301
        %v2303 = vpop.f32.mrb[0].mxu0
        %2304 = vmatprep.mubr.f32.mxu0 0.0
        %2305 = vmatmul.mubr.f32.gmra.mrb[0].mxu0 %v2177
        %v2306 = vpop.f32.mrb[0].mxu0
        %v2307 = vadd.f32 0.0, %v2306
        %v2308 = vpop.f32.mrb[0].mxu0
        %2309 = vmatprep.mubr.f32.mxu0 0.0
        %2310 = vmatmul.mubr.f32.gmra.mrb[0].mxu0 %v2180
        %v2311 = vpop.f32.mrb[0].mxu0
        %v2312 = vadd.f32 0.0, %v2311
        %v2313 = vpop.f32.mrb[0].mxu0
        %2314 = vmatprep.mubr.f32.mxu0 0.0
        %2315 = vmatmul.mubr.f32.gmra.mrb[0].mxu0 %v2183
        %v2316 = vpop.f32.mrb[0].mxu0
        %v2317 = vadd.f32 0.0, %v2316
        %v2318 = vpop.f32.mrb[0].mxu0
        %2319 = vmatprep.mubr.f32.mxu0 0.0
        %2320 = vmatmul.mubr.f32.gmra.mrb[0].mxu0 %v2186
        %v2321 = vpop.f32.mrb[0].mxu0
        %v2322 = vadd.f32 0.0, %v2321
        %v2323 = vpop.f32.mrb[0].mxu0
        %2324 = vmatprep.mubr.f32.mxu0 0.0
        %2325 = vmatmul.mubr.f32.gmra.mrb[0].mxu0 %v2189
        %v2326 = vpop.f32.mrb[0].mxu0
        %v2327 = vadd.f32 0.0, %v2326
        %v2328 = vpop.f32.mrb[0].mxu0
        %2329 = vmatprep.mubr.f32.mxu0 0.0
        %2330 = vmatmul.mubr.f32.gmra.mrb[0].mxu0 %v2192
        %v2331 = vpop.f32.mrb[0].mxu0
        %v2332 = vadd.f32 0.0, %v2331
        %v2333 = vpop.f32.mrb[0].mxu0
        %2334 = vmatprep.mubr.f32.mxu0 0.0
        %2335 = vmatmul.mubr.f32.gmra.mrb[0].mxu0 %v2195
        %v2336 = vpop.f32.mrb[0].mxu0
        %v2337 = vadd.f32 0.0, %v2336
        %v2338 = vpop.f32.mrb[0].mxu0
        %2339 = vmatprep.mubr.f32.mxu0 0.0
        %2340 = vmatmul.mubr.f32.gmra.mrb[0].mxu0 %v2198
        %v2341 = vpop.f32.mrb[0].mxu0
        %v2342 = vadd.f32 0.0, %v2341
        %v2343 = vpop.f32.mrb[0].mxu0
        %2344 = vdwg.mxu0
        %v2346 = vsel %vm489, %v256, 0
        %v2349 = vsel %vm489, %v2267, 0
        %v2352 = vsel %vm489, %v2272, 0
        %v2355 = vsel %vm489, %v2277, 0
        %v2358 = vsel %vm489, %v2282, 0
        %v2361 = vsel %vm489, %v2287, 0
        %v2364 = vsel %vm489, %v2292, 0
        %v2367 = vsel %vm489, %v2297, 0
        %v2370 = vsel %vm489, %v2302, 0
        %v2373 = vsel %vm489, %v2307, 0
        %v2376 = vsel %vm489, %v2312, 0
        %v2379 = vsel %vm489, %v2317, 0
        %v2382 = vsel %vm489, %v2322, 0
        %v2385 = vsel %vm489, %v2327, 0
        %v2388 = vsel %vm489, %v2332, 0
        %v2391 = vsel %vm489, %v2337, 0
        %v2394 = vsel %vm489, %v2342, 0
        %2396 = vmatprep.subr.mxu0 0.0
        %2397 = vmatpush1.xpose.msra.mxu0 %v2349
        %2398 = vmatprep.subr.mxu0 0.0
        %2399 = vmatpush1.xpose.msra.mxu0 %v2352
        %2400 = vmatprep.subr.mxu0 0.0
        %2401 = vmatpush1.xpose.msra.mxu0 %v2355
        %2402 = vmatprep.subr.mxu0 0.0
        %2403 = vmatpush1.xpose.msra.mxu0 %v2358
        %2404 = vmatprep.subr.mxu0 0.0
        %2405 = vmatpush1.xpose.msra.mxu0 %v2361
        %2406 = vmatprep.subr.mxu0 0.0
        %2407 = vmatpush1.xpose.msra.mxu0 %v2364
        %2408 = vmatprep.subr.mxu0 0.0
        %2409 = vmatpush1.xpose.msra.mxu0 %v2367
        %2410 = vmatprep.subr.mxu0 0.0
        %2411 = vmatpush1.xpose.msra.mxu0 %v2370
        %2412 = vmatprep.subr.mxu0 0.0
        %2413 = vmatpush1.xpose.msra.mxu0 %v2373
        %2414 = vmatprep.subr.mxu0 0.0
        %2415 = vmatpush1.xpose.msra.mxu0 %v2376
        %2416 = vmatprep.subr.mxu0 0.0
        %2417 = vmatpush1.xpose.msra.mxu0 %v2379
        %2418 = vmatprep.subr.mxu0 0.0
        %2419 = vmatpush1.xpose.msra.mxu0 %v2382
        %2420 = vmatprep.subr.mxu0 0.0
        %2421 = vmatpush1.xpose.msra.mxu0 %v2385
        %2422 = vmatprep.subr.mxu0 0.0
        %2423 = vmatpush1.xpose.msra.mxu0 %v2388
        %2424 = vmatprep.subr.mxu0 0.0
        %2425 = vmatpush1.xpose.msra.mxu0 %v2391
        %2426 = vmatprep.subr.mxu0 0.0
        %2427 = vmatpush1.xpose.msra.mxu0 %v2394
        %2428 = vmatprep.subr.mxu0 0.0
        %2429 = vmatpush1.xpose.msra.mxu0 0.0
        %2430 = vmatprep.subr.mxu0 0.0
        %2431 = vmatpush1.xpose.msra.mxu0 0.0
        %2432 = vmatprep.subr.mxu0 0.0
        %2433 = vmatpush1.xpose.msra.mxu0 0.0
        %2434 = vmatprep.subr.mxu0 0.0
        %2435 = vmatpush1.xpose.msra.mxu0 0.0
        %2436 = vmatprep.subr.mxu0 0.0
        %2437 = vmatpush1.xpose.msra.mxu0 0.0
        %2438 = vmatprep.subr.mxu0 0.0
        %2439 = vmatpush1.xpose.msra.mxu0 0.0
        %2440 = vmatprep.subr.mxu0 0.0
        %2441 = vmatpush1.xpose.msra.mxu0 0.0
        %2442 = vmatprep.subr.mxu0 0.0
        %2443 = vmatpush1.xpose.msra.mxu0 0.0
        %2444 = vmatprep.subr.mxu0 0.0
        %2445 = vmatpush1.xpose.msra.mxu0 0.0
        %2446 = vmatprep.subr.mxu0 0.0
        %2447 = vmatpush1.xpose.msra.mxu0 0.0
        %2448 = vmatprep.subr.mxu0 0.0
        %2449 = vmatpush1.xpose.msra.mxu0 0.0
        %2450 = vmatprep.subr.mxu0 0.0
        %2451 = vmatpush1.xpose.msra.mxu0 0.0
        %2452 = vmatprep.subr.mxu0 0.0
        %2453 = vmatpush1.xpose.msra.mxu0 0.0
        %2454 = vmatprep.subr.mxu0 0.0
        %2455 = vmatpush1.xpose.msra.mxu0 0.0
        %2456 = vmatprep.subr.mxu0 0.0
        %2457 = vmatpush1.xpose.msra.mxu0 0.0
        %2458 = vmatprep.subr.mxu0 0.0
        %2459 = vmatpush1.xpose.msra.mxu0 0.0
        %2460 = vmatprep.mubr.f32.mxu0 0.0
        %2461 = vmatmul.mubr.f32.gmra.mrb[0].mxu0 %v2346
        %v2462 = vpop.f32.mrb[0].mxu0
        %v2463 = vadd.f32 0.0, %v2462
        %v2464 = vpop.f32.mrb[0].mxu0
        %2465 = vdwg.mxu0
        %v2466 = vlaneseq
        %v2467 = vshrl.u32 %v2466, 7
        %v2468 = vsub.s32 0, %v2467
        %v2469 = vrot.slane %v259, %v2468
        %v2470 = vmul.f32 %v2267, %v2469
        %v2471 = vmul.f32 %v2272, %v2469
        %v2472 = vmul.f32 %v2277, %v2469
        %v2473 = vmul.f32 %v2282, %v2469
        %v2474 = vmul.f32 %v2287, %v2469
        %v2475 = vmul.f32 %v2292, %v2469
        %v2476 = vmul.f32 %v2297, %v2469
        %v2477 = vmul.f32 %v2302, %v2469
        %v2478 = vmul.f32 %v2307, %v2469
        %v2479 = vmul.f32 %v2312, %v2469
        %v2480 = vmul.f32 %v2317, %v2469
        %v2481 = vmul.f32 %v2322, %v2469
        %v2482 = vmul.f32 %v2327, %v2469
        %v2483 = vmul.f32 %v2332, %v2469
        %v2484 = vmul.f32 %v2337, %v2469
        %v2485 = vmul.f32 %v2342, %v2469
        %v2486 = vsel %vm489, %v2470, 0.0
        %2487 = vadd.xlane.f32.xlu0 %v2486
        %v2488 = vpop.xlane.xlu0 %2487
        %v2489 = vsel %vm489, %v2471, 0.0
        %2490 = vadd.xlane.f32.xlu0 %v2489
        %v2491 = vpop.xlane.xlu0 %2490
        %v2492 = vsel %vm489, %v2472, 0.0
        %2493 = vadd.xlane.f32.xlu0 %v2492
        %v2494 = vpop.xlane.xlu0 %2493
        %v2495 = vsel %vm489, %v2473, 0.0
        %2496 = vadd.xlane.f32.xlu0 %v2495
        %v2497 = vpop.xlane.xlu0 %2496
        %v2498 = vsel %vm489, %v2474, 0.0
        %2499 = vadd.xlane.f32.xlu0 %v2498
        %v2500 = vpop.xlane.xlu0 %2499
        %v2501 = vsel %vm489, %v2475, 0.0
        %2502 = vadd.xlane.f32.xlu0 %v2501
        %v2503 = vpop.xlane.xlu0 %2502
        %v2504 = vsel %vm489, %v2476, 0.0
        %2505 = vadd.xlane.f32.xlu0 %v2504
        %v2506 = vpop.xlane.xlu0 %2505
        %v2507 = vsel %vm489, %v2477, 0.0
        %2508 = vadd.xlane.f32.xlu0 %v2507
        %v2509 = vpop.xlane.xlu0 %2508
        %v2510 = vsel %vm489, %v2478, 0.0
        %2511 = vadd.xlane.f32.xlu0 %v2510
        %v2512 = vpop.xlane.xlu0 %2511
        %v2513 = vsel %vm489, %v2479, 0.0
        %2514 = vadd.xlane.f32.xlu0 %v2513
        %v2515 = vpop.xlane.xlu0 %2514
        %v2516 = vsel %vm489, %v2480, 0.0
        %2517 = vadd.xlane.f32.xlu0 %v2516
        %v2518 = vpop.xlane.xlu0 %2517
        %v2519 = vsel %vm489, %v2481, 0.0
        %2520 = vadd.xlane.f32.xlu0 %v2519
        %v2521 = vpop.xlane.xlu0 %2520
        %v2522 = vsel %vm489, %v2482, 0.0
        %2523 = vadd.xlane.f32.xlu0 %v2522
        %v2524 = vpop.xlane.xlu0 %2523
        %v2525 = vsel %vm489, %v2483, 0.0
        %2526 = vadd.xlane.f32.xlu0 %v2525
        %v2527 = vpop.xlane.xlu0 %2526
        %v2528 = vsel %vm489, %v2484, 0.0
        %2529 = vadd.xlane.f32.xlu0 %v2528
        %v2530 = vpop.xlane.xlu0 %2529
        %v2531 = vsel %vm489, %v2485, 0.0
        %2532 = vadd.xlane.f32.xlu0 %v2531
        %v2533 = vpop.xlane.xlu0 %2532
        %v2534 = vlaneseq
        %v2535 = vshrl.u32 %v2534, 7
        %v2536 = vsub.s32 0, %v2535
        %v2537 = vrot.slane %v2463, %v2536
        %v2538 = vadd.f32 %v2488, %v2537
        %v2539 = vadd.f32 %v2491, %v2537
        %v2540 = vadd.f32 %v2494, %v2537
        %v2541 = vadd.f32 %v2497, %v2537
        %v2542 = vadd.f32 %v2500, %v2537
        %v2543 = vadd.f32 %v2503, %v2537
        %v2544 = vadd.f32 %v2506, %v2537
        %v2545 = vadd.f32 %v2509, %v2537
        %v2546 = vadd.f32 %v2512, %v2537
        %v2547 = vadd.f32 %v2515, %v2537
        %v2548 = vadd.f32 %v2518, %v2537
        %v2549 = vadd.f32 %v2521, %v2537
        %v2550 = vadd.f32 %v2524, %v2537
        %v2551 = vadd.f32 %v2527, %v2537
        %v2552 = vadd.f32 %v2530, %v2537
        %v2553 = vadd.f32 %v2533, %v2537
        %vm2554 = vcmp.gt.f32.partialorder %v2538, 0.0
        %vm2555 = vcmp.gt.f32.partialorder %v2539, 0.0
        %vm2556 = vcmp.gt.f32.partialorder %v2540, 0.0
        %vm2557 = vcmp.gt.f32.partialorder %v2541, 0.0
        %vm2558 = vcmp.gt.f32.partialorder %v2542, 0.0
        %vm2559 = vcmp.gt.f32.partialorder %v2543, 0.0
        %vm2560 = vcmp.gt.f32.partialorder %v2544, 0.0
        %vm2561 = vcmp.gt.f32.partialorder %v2545, 0.0
        %vm2562 = vcmp.gt.f32.partialorder %v2546, 0.0
        %vm2563 = vcmp.gt.f32.partialorder %v2547, 0.0
        %vm2564 = vcmp.gt.f32.partialorder %v2548, 0.0
        %vm2565 = vcmp.gt.f32.partialorder %v2549, 0.0
        %vm2566 = vcmp.gt.f32.partialorder %v2550, 0.0
        %vm2567 = vcmp.gt.f32.partialorder %v2551, 0.0
        %vm2568 = vcmp.gt.f32.partialorder %v2552, 0.0
        %vm2569 = vcmp.gt.f32.partialorder %v2553, 0.0
        %v2570 = vmul.f32 %v2538, 0.2
        %v2571 = vmul.f32 %v2539, 0.2
        %v2572 = vmul.f32 %v2540, 0.2
        %v2573 = vmul.f32 %v2541, 0.2
        %v2574 = vmul.f32 %v2542, 0.2
        %v2575 = vmul.f32 %v2543, 0.2
        %v2576 = vmul.f32 %v2544, 0.2
        %v2577 = vmul.f32 %v2545, 0.2
        %v2578 = vmul.f32 %v2546, 0.2
        %v2579 = vmul.f32 %v2547, 0.2
        %v2580 = vmul.f32 %v2548, 0.2
        %v2581 = vmul.f32 %v2549, 0.2
        %v2582 = vmul.f32 %v2550, 0.2
        %v2583 = vmul.f32 %v2551, 0.2
        %v2584 = vmul.f32 %v2552, 0.2
        %v2585 = vmul.f32 %v2553, 0.2
        %v2586 = vsel %vm2554, %v2538, %v2570
        %v2587 = vsel %vm2555, %v2539, %v2571
        %v2588 = vsel %vm2556, %v2540, %v2572
        %v2589 = vsel %vm2557, %v2541, %v2573
        %v2590 = vsel %vm2558, %v2542, %v2574
        %v2591 = vsel %vm2559, %v2543, %v2575
        %v2592 = vsel %vm2560, %v2544, %v2576
        %v2593 = vsel %vm2561, %v2545, %v2577
        %v2594 = vsel %vm2562, %v2546, %v2578
        %v2595 = vsel %vm2563, %v2547, %v2579
        %v2596 = vsel %vm2564, %v2548, %v2580
        %v2597 = vsel %vm2565, %v2549, %v2581
        %v2598 = vsel %vm2566, %v2550, %v2582
        %v2599 = vsel %vm2567, %v2551, %v2583
        %v2600 = vsel %vm2568, %v2552, %v2584
        %v2601 = vsel %vm2569, %v2553, %v2585
        %v2602 = vsel %vm940, %v2586, -1e+30
        %v2603 = vsel %vm941, %v2587, -1e+30
        %v2604 = vsel %vm942, %v2588, -1e+30
        %v2605 = vsel %vm943, %v2589, -1e+30
        %v2606 = vsel %vm944, %v2590, -1e+30
        %v2607 = vsel %vm945, %v2591, -1e+30
        %v2608 = vsel %vm946, %v2592, -1e+30
        %v2609 = vsel %vm947, %v2593, -1e+30
        %v2610 = vsel %vm948, %v2594, -1e+30
        %v2611 = vsel %vm949, %v2595, -1e+30
        %v2612 = vsel %vm950, %v2596, -1e+30
        %v2613 = vsel %vm951, %v2597, -1e+30
        %v2614 = vsel %vm952, %v2598, -1e+30
        %v2615 = vsel %vm953, %v2599, -1e+30
        %v2616 = vsel %vm954, %v2600, -1e+30
        %v2617 = vsel %vm955, %v2601, -1e+30
        %2618 = vmax.xlane.f32.xlu0 %v2602
        %v2619 = vpop.xlane.xlu0 %2618
        %2620 = vmax.xlane.f32.xlu0 %v2603
        %v2621 = vpop.xlane.xlu0 %2620
        %2622 = vmax.xlane.f32.xlu0 %v2604
        %v2623 = vpop.xlane.xlu0 %2622
        %2624 = vmax.xlane.f32.xlu0 %v2605
        %v2625 = vpop.xlane.xlu0 %2624
        %2626 = vmax.xlane.f32.xlu0 %v2606
        %v2627 = vpop.xlane.xlu0 %2626
        %2628 = vmax.xlane.f32.xlu0 %v2607
        %v2629 = vpop.xlane.xlu0 %2628
        %2630 = vmax.xlane.f32.xlu0 %v2608
        %v2631 = vpop.xlane.xlu0 %2630
        %2632 = vmax.xlane.f32.xlu0 %v2609
        %v2633 = vpop.xlane.xlu0 %2632
        %2634 = vmax.xlane.f32.xlu0 %v2610
        %v2635 = vpop.xlane.xlu0 %2634
        %2636 = vmax.xlane.f32.xlu0 %v2611
        %v2637 = vpop.xlane.xlu0 %2636
        %2638 = vmax.xlane.f32.xlu0 %v2612
        %v2639 = vpop.xlane.xlu0 %2638
        %2640 = vmax.xlane.f32.xlu0 %v2613
        %v2641 = vpop.xlane.xlu0 %2640
        %2642 = vmax.xlane.f32.xlu0 %v2614
        %v2643 = vpop.xlane.xlu0 %2642
        %2644 = vmax.xlane.f32.xlu0 %v2615
        %v2645 = vpop.xlane.xlu0 %2644
        %2646 = vmax.xlane.f32.xlu0 %v2616
        %v2647 = vpop.xlane.xlu0 %2646
        %2648 = vmax.xlane.f32.xlu0 %v2617
        %v2649 = vpop.xlane.xlu0 %2648
        %v2650 = vsub.f32 %v2602, %v2619
        %v2651 = vsub.f32 %v2603, %v2621
        %v2652 = vsub.f32 %v2604, %v2623
        %v2653 = vsub.f32 %v2605, %v2625
        %v2654 = vsub.f32 %v2606, %v2627
        %v2655 = vsub.f32 %v2607, %v2629
        %v2656 = vsub.f32 %v2608, %v2631
        %v2657 = vsub.f32 %v2609, %v2633
        %v2658 = vsub.f32 %v2610, %v2635
        %v2659 = vsub.f32 %v2611, %v2637
        %v2660 = vsub.f32 %v2612, %v2639
        %v2661 = vsub.f32 %v2613, %v2641
        %v2662 = vsub.f32 %v2614, %v2643
        %v2663 = vsub.f32 %v2615, %v2645
        %v2664 = vsub.f32 %v2616, %v2647
        %v2665 = vsub.f32 %v2617, %v2649
        %v2666 = vmul.f32 %v2650, 1.442695
        %v2667 = vpow.pop %v2666
        %v2668 = vmul.f32 %v2651, 1.442695
        %v2669 = vpow.pop %v2668
        %v2670 = vmul.f32 %v2652, 1.442695
        %v2671 = vpow.pop %v2670
        %v2672 = vmul.f32 %v2653, 1.442695
        %v2673 = vpow.pop %v2672
        %v2674 = vmul.f32 %v2654, 1.442695
        %v2675 = vpow.pop %v2674
        %v2676 = vmul.f32 %v2655, 1.442695
        %v2677 = vpow.pop %v2676
        %v2678 = vmul.f32 %v2656, 1.442695
        %v2679 = vpow.pop %v2678
        %v2680 = vmul.f32 %v2657, 1.442695
        %v2681 = vpow.pop %v2680
        %v2682 = vmul.f32 %v2658, 1.442695
        %v2683 = vpow.pop %v2682
        %v2684 = vmul.f32 %v2659, 1.442695
        %v2685 = vpow.pop %v2684
        %v2686 = vmul.f32 %v2660, 1.442695
        %v2687 = vpow.pop %v2686
        %v2688 = vmul.f32 %v2661, 1.442695
        %v2689 = vpow.pop %v2688
        %v2690 = vmul.f32 %v2662, 1.442695
        %v2691 = vpow.pop %v2690
        %v2692 = vmul.f32 %v2663, 1.442695
        %v2693 = vpow.pop %v2692
        %v2694 = vmul.f32 %v2664, 1.442695
        %v2695 = vpow.pop %v2694
        %v2696 = vmul.f32 %v2665, 1.442695
        %v2697 = vpow.pop %v2696
        %v2698 = vsel %vm940, %v2667, 0.0
        %v2699 = vsel %vm941, %v2669, 0.0
        %v2700 = vsel %vm942, %v2671, 0.0
        %v2701 = vsel %vm943, %v2673, 0.0
        %v2702 = vsel %vm944, %v2675, 0.0
        %v2703 = vsel %vm945, %v2677, 0.0
        %v2704 = vsel %vm946, %v2679, 0.0
        %v2705 = vsel %vm947, %v2681, 0.0
        %v2706 = vsel %vm948, %v2683, 0.0
        %v2707 = vsel %vm949, %v2685, 0.0
        %v2708 = vsel %vm950, %v2687, 0.0
        %v2709 = vsel %vm951, %v2689, 0.0
        %v2710 = vsel %vm952, %v2691, 0.0
        %v2711 = vsel %vm953, %v2693, 0.0
        %v2712 = vsel %vm954, %v2695, 0.0
        %v2713 = vsel %vm955, %v2697, 0.0
        %2714 = vadd.xlane.f32.xlu0 %v2698
        %v2715 = vpop.xlane.xlu0 %2714
        %2716 = vadd.xlane.f32.xlu0 %v2699
        %v2717 = vpop.xlane.xlu0 %2716
        %2718 = vadd.xlane.f32.xlu0 %v2700
        %v2719 = vpop.xlane.xlu0 %2718
        %2720 = vadd.xlane.f32.xlu0 %v2701
        %v2721 = vpop.xlane.xlu0 %2720
        %2722 = vadd.xlane.f32.xlu0 %v2702
        %v2723 = vpop.xlane.xlu0 %2722
        %2724 = vadd.xlane.f32.xlu0 %v2703
        %v2725 = vpop.xlane.xlu0 %2724
        %2726 = vadd.xlane.f32.xlu0 %v2704
        %v2727 = vpop.xlane.xlu0 %2726
        %2728 = vadd.xlane.f32.xlu0 %v2705
        %v2729 = vpop.xlane.xlu0 %2728
        %2730 = vadd.xlane.f32.xlu0 %v2706
        %v2731 = vpop.xlane.xlu0 %2730
        %2732 = vadd.xlane.f32.xlu0 %v2707
        %v2733 = vpop.xlane.xlu0 %2732
        %2734 = vadd.xlane.f32.xlu0 %v2708
        %v2735 = vpop.xlane.xlu0 %2734
        %2736 = vadd.xlane.f32.xlu0 %v2709
        %v2737 = vpop.xlane.xlu0 %2736
        %2738 = vadd.xlane.f32.xlu0 %v2710
        %v2739 = vpop.xlane.xlu0 %2738
        %2740 = vadd.xlane.f32.xlu0 %v2711
        %v2741 = vpop.xlane.xlu0 %2740
        %2742 = vadd.xlane.f32.xlu0 %v2712
        %v2743 = vpop.xlane.xlu0 %2742
        %2744 = vadd.xlane.f32.xlu0 %v2713
        %v2745 = vpop.xlane.xlu0 %2744
        %vm2746 = vcmp.eq.f32.partialorder %v2715, 0.0
        %vm2747 = vcmp.eq.f32.partialorder %v2717, 0.0
        %vm2748 = vcmp.eq.f32.partialorder %v2719, 0.0
        %vm2749 = vcmp.eq.f32.partialorder %v2721, 0.0
        %vm2750 = vcmp.eq.f32.partialorder %v2723, 0.0
        %vm2751 = vcmp.eq.f32.partialorder %v2725, 0.0
        %vm2752 = vcmp.eq.f32.partialorder %v2727, 0.0
        %vm2753 = vcmp.eq.f32.partialorder %v2729, 0.0
        %vm2754 = vcmp.eq.f32.partialorder %v2731, 0.0
        %vm2755 = vcmp.eq.f32.partialorder %v2733, 0.0
        %vm2756 = vcmp.eq.f32.partialorder %v2735, 0.0
        %vm2757 = vcmp.eq.f32.partialorder %v2737, 0.0
        %vm2758 = vcmp.eq.f32.partialorder %v2739, 0.0
        %vm2759 = vcmp.eq.f32.partialorder %v2741, 0.0
        %vm2760 = vcmp.eq.f32.partialorder %v2743, 0.0
        %vm2761 = vcmp.eq.f32.partialorder %v2745, 0.0
        %v2762 = vsel %vm2746, 1.0, %v2715
        %v2763 = vsel %vm2747, 1.0, %v2717
        %v2764 = vsel %vm2748, 1.0, %v2719
        %v2765 = vsel %vm2749, 1.0, %v2721
        %v2766 = vsel %vm2750, 1.0, %v2723
        %v2767 = vsel %vm2751, 1.0, %v2725
        %v2768 = vsel %vm2752, 1.0, %v2727
        %v2769 = vsel %vm2753, 1.0, %v2729
        %v2770 = vsel %vm2754, 1.0, %v2731
        %v2771 = vsel %vm2755, 1.0, %v2733
        %v2772 = vsel %vm2756, 1.0, %v2735
        %v2773 = vsel %vm2757, 1.0, %v2737
        %v2774 = vsel %vm2758, 1.0, %v2739
        %v2775 = vsel %vm2759, 1.0, %v2741
        %v2776 = vsel %vm2760, 1.0, %v2743
        %v2777 = vsel %vm2761, 1.0, %v2745
        %v2778 = vrcp.pop %v2762
        %v2779 = vrcp.pop %v2763
        %v2780 = vrcp.pop %v2764
        %v2781 = vrcp.pop %v2765
        %v2782 = vrcp.pop %v2766
        %v2783 = vrcp.pop %v2767
        %v2784 = vrcp.pop %v2768
        %v2785 = vrcp.pop %v2769
        %v2786 = vrcp.pop %v2770
        %v2787 = vrcp.pop %v2771
        %v2788 = vrcp.pop %v2772
        %v2789 = vrcp.pop %v2773
        %v2790 = vrcp.pop %v2774
        %v2791 = vrcp.pop %v2775
        %v2792 = vrcp.pop %v2776
        %v2793 = vrcp.pop %v2777
        %v2794 = vmul.f32 %v2698, %v2778
        %v2795 = vmul.f32 %v2699, %v2779
        %v2796 = vmul.f32 %v2700, %v2780
        %v2797 = vmul.f32 %v2701, %v2781
        %v2798 = vmul.f32 %v2702, %v2782
        %v2799 = vmul.f32 %v2703, %v2783
        %v2800 = vmul.f32 %v2704, %v2784
        %v2801 = vmul.f32 %v2705, %v2785
        %v2802 = vmul.f32 %v2706, %v2786
        %v2803 = vmul.f32 %v2707, %v2787
        %v2804 = vmul.f32 %v2708, %v2788
        %v2805 = vmul.f32 %v2709, %v2789
        %v2806 = vmul.f32 %v2710, %v2790
        %v2807 = vmul.f32 %v2711, %v2791
        %v2808 = vmul.f32 %v2712, %v2792
        %v2809 = vmul.f32 %v2713, %v2793
        %v2810 = vlaneseq
        %v2811 = vshrl.u32 %v2810, 7
        %v2812 = vsub.s32 0, %v2811
        %v2813 = vrot.slane %v262, %v2812
        %2814 = vmatprep.subr.mxu0 0.0
        %2815 = vmatpush1.msra.mxu0 %v2267
        %2816 = vmatprep.subr.mxu0 0.0
        %2817 = vmatpush1.msra.mxu0 %v2272
        %2818 = vmatprep.subr.mxu0 0.0
        %2819 = vmatpush1.msra.mxu0 %v2277
        %2820 = vmatprep.subr.mxu0 0.0
        %2821 = vmatpush1.msra.mxu0 %v2282
        %2822 = vmatprep.subr.mxu0 0.0
        %2823 = vmatpush1.msra.mxu0 %v2287
        %2824 = vmatprep.subr.mxu0 0.0
        %2825 = vmatpush1.msra.mxu0 %v2292
        %2826 = vmatprep.subr.mxu0 0.0
        %2827 = vmatpush1.msra.mxu0 %v2297
        %2828 = vmatprep.subr.mxu0 0.0
        %2829 = vmatpush1.msra.mxu0 %v2302
        %2830 = vmatprep.subr.mxu0 0.0
        %2831 = vmatpush1.msra.mxu0 %v2307
        %2832 = vmatprep.subr.mxu0 0.0
        %2833 = vmatpush1.msra.mxu0 %v2312
        %2834 = vmatprep.subr.mxu0 0.0
        %2835 = vmatpush1.msra.mxu0 %v2317
        %2836 = vmatprep.subr.mxu0 0.0
        %2837 = vmatpush1.msra.mxu0 %v2322
        %2838 = vmatprep.subr.mxu0 0.0
        %2839 = vmatpush1.msra.mxu0 %v2327
        %2840 = vmatprep.subr.mxu0 0.0
        %2841 = vmatpush1.msra.mxu0 %v2332
        %2842 = vmatprep.subr.mxu0 0.0
        %2843 = vmatpush1.msra.mxu0 %v2337
        %2844 = vmatprep.subr.mxu0 0.0
        %2845 = vmatpush1.msra.mxu0 %v2342
        %2846 = vmatprep.subr.mxu0 0.0
        %2847 = vmatpush1.msra.mxu0 0.0
        %2848 = vmatprep.subr.mxu0 0.0
        %2849 = vmatpush1.msra.mxu0 0.0
        %2850 = vmatprep.subr.mxu0 0.0
        %2851 = vmatpush1.msra.mxu0 0.0
        %2852 = vmatprep.subr.mxu0 0.0
        %2853 = vmatpush1.msra.mxu0 0.0
        %2854 = vmatprep.subr.mxu0 0.0
        %2855 = vmatpush1.msra.mxu0 0.0
        %2856 = vmatprep.subr.mxu0 0.0
        %2857 = vmatpush1.msra.mxu0 0.0
        %2858 = vmatprep.subr.mxu0 0.0
        %2859 = vmatpush1.msra.mxu0 0.0
        %2860 = vmatprep.subr.mxu0 0.0
        %2861 = vmatpush1.msra.mxu0 0.0
        %2862 = vmatprep.subr.mxu0 0.0
        %2863 = vmatpush1.msra.mxu0 0.0
        %2864 = vmatprep.subr.mxu0 0.0
        %2865 = vmatpush1.msra.mxu0 0.0
        %2866 = vmatprep.subr.mxu0 0.0
        %2867 = vmatpush1.msra.mxu0 0.0
        %2868 = vmatprep.subr.mxu0 0.0
        %2869 = vmatpush1.msra.mxu0 0.0
        %2870 = vmatprep.subr.mxu0 0.0
        %2871 = vmatpush1.msra.mxu0 0.0
        %2872 = vmatprep.subr.mxu0 0.0
        %2873 = vmatpush1.msra.mxu0 0.0
        %2874 = vmatprep.subr.mxu0 0.0
        %2875 = vmatpush1.msra.mxu0 0.0
        %2876 = vmatprep.subr.mxu0 0.0
        %2877 = vmatpush1.msra.mxu0 0.0
        %2878 = vmatprep.mubr.f32.mxu0 0.0
        %2879 = vmatmul.mubr.f32.gmra.mrb[0].mxu0 %v2794
        %v2880 = vpop.f32.mrb[0].mxu0
        %v2881 = vadd.f32 %v2813, %v2880
        %v2882 = vpop.f32.mrb[0].mxu0
        %2883 = vmatprep.mubr.f32.mxu0 0.0
        %2884 = vmatmul.mubr.f32.gmra.mrb[0].mxu0 %v2795
        %v2885 = vpop.f32.mrb[0].mxu0
        %v2886 = vadd.f32 %v2813, %v2885
        %v2887 = vpop.f32.mrb[0].mxu0
        %2888 = vmatprep.mubr.f32.mxu0 0.0
        %2889 = vmatmul.mubr.f32.gmra.mrb[0].mxu0 %v2796
        %v2890 = vpop.f32.mrb[0].mxu0
        %v2891 = vadd.f32 %v2813, %v2890
        %v2892 = vpop.f32.mrb[0].mxu0
        %2893 = vmatprep.mubr.f32.mxu0 0.0
        %2894 = vmatmul.mubr.f32.gmra.mrb[0].mxu0 %v2797
        %v2895 = vpop.f32.mrb[0].mxu0
        %v2896 = vadd.f32 %v2813, %v2895
        %v2897 = vpop.f32.mrb[0].mxu0
        %2898 = vmatprep.mubr.f32.mxu0 0.0
        %2899 = vmatmul.mubr.f32.gmra.mrb[0].mxu0 %v2798
        %v2900 = vpop.f32.mrb[0].mxu0
        %v2901 = vadd.f32 %v2813, %v2900
        %v2902 = vpop.f32.mrb[0].mxu0
        %2903 = vmatprep.mubr.f32.mxu0 0.0
        %2904 = vmatmul.mubr.f32.gmra.mrb[0].mxu0 %v2799
        %v2905 = vpop.f32.mrb[0].mxu0
        %v2906 = vadd.f32 %v2813, %v2905
        %v2907 = vpop.f32.mrb[0].mxu0
        %2908 = vmatprep.mubr.f32.mxu0 0.0
        %2909 = vmatmul.mubr.f32.gmra.mrb[0].mxu0 %v2800
        %v2910 = vpop.f32.mrb[0].mxu0
        %v2911 = vadd.f32 %v2813, %v2910
        %v2912 = vpop.f32.mrb[0].mxu0
        %2913 = vmatprep.mubr.f32.mxu0 0.0
        %2914 = vmatmul.mubr.f32.gmra.mrb[0].mxu0 %v2801
        %v2915 = vpop.f32.mrb[0].mxu0
        %v2916 = vadd.f32 %v2813, %v2915
        %v2917 = vpop.f32.mrb[0].mxu0
        %2918 = vmatprep.mubr.f32.mxu0 0.0
        %2919 = vmatmul.mubr.f32.gmra.mrb[0].mxu0 %v2802
        %v2920 = vpop.f32.mrb[0].mxu0
        %v2921 = vadd.f32 %v2813, %v2920
        %v2922 = vpop.f32.mrb[0].mxu0
        %2923 = vmatprep.mubr.f32.mxu0 0.0
        %2924 = vmatmul.mubr.f32.gmra.mrb[0].mxu0 %v2803
        %v2925 = vpop.f32.mrb[0].mxu0
        %v2926 = vadd.f32 %v2813, %v2925
        %v2927 = vpop.f32.mrb[0].mxu0
        %2928 = vmatprep.mubr.f32.mxu0 0.0
        %2929 = vmatmul.mubr.f32.gmra.mrb[0].mxu0 %v2804
        %v2930 = vpop.f32.mrb[0].mxu0
        %v2931 = vadd.f32 %v2813, %v2930
        %v2932 = vpop.f32.mrb[0].mxu0
        %2933 = vmatprep.mubr.f32.mxu0 0.0
        %2934 = vmatmul.mubr.f32.gmra.mrb[0].mxu0 %v2805
        %v2935 = vpop.f32.mrb[0].mxu0
        %v2936 = vadd.f32 %v2813, %v2935
        %v2937 = vpop.f32.mrb[0].mxu0
        %2938 = vmatprep.mubr.f32.mxu0 0.0
        %2939 = vmatmul.mubr.f32.gmra.mrb[0].mxu0 %v2806
        %v2940 = vpop.f32.mrb[0].mxu0
        %v2941 = vadd.f32 %v2813, %v2940
        %v2942 = vpop.f32.mrb[0].mxu0
        %2943 = vmatprep.mubr.f32.mxu0 0.0
        %2944 = vmatmul.mubr.f32.gmra.mrb[0].mxu0 %v2807
        %v2945 = vpop.f32.mrb[0].mxu0
        %v2946 = vadd.f32 %v2813, %v2945
        %v2947 = vpop.f32.mrb[0].mxu0
        %2948 = vmatprep.mubr.f32.mxu0 0.0
        %2949 = vmatmul.mubr.f32.gmra.mrb[0].mxu0 %v2808
        %v2950 = vpop.f32.mrb[0].mxu0
        %v2951 = vadd.f32 %v2813, %v2950
        %v2952 = vpop.f32.mrb[0].mxu0
        %2953 = vmatprep.mubr.f32.mxu0 0.0
        %2954 = vmatmul.mubr.f32.gmra.mrb[0].mxu0 %v2809
        %v2955 = vpop.f32.mrb[0].mxu0
        %v2956 = vadd.f32 %v2813, %v2955
        %v2957 = vpop.f32.mrb[0].mxu0
        %2958 = vdwg.mxu0
        %2975 = vrot.lane.b32.xlu0 %v2058, 32
        %v2976 = vpop.permute.xlu0 %2975
        %2977 = vrot.lane.b32.xlu0 %v2063, 32
        %v2978 = vpop.permute.xlu0 %2977
        %2979 = vrot.lane.b32.xlu0 %v2068, 32
        %v2980 = vpop.permute.xlu0 %2979
        %2981 = vrot.lane.b32.xlu0 %v2073, 32
        %v2982 = vpop.permute.xlu0 %2981
        %2983 = vrot.lane.b32.xlu0 %v2078, 32
        %v2984 = vpop.permute.xlu0 %2983
        %2985 = vrot.lane.b32.xlu0 %v2083, 32
        %v2986 = vpop.permute.xlu0 %2985
        %2987 = vrot.lane.b32.xlu0 %v2088, 32
        %v2988 = vpop.permute.xlu0 %2987
        %2989 = vrot.lane.b32.xlu0 %v2093, 32
        %v2990 = vpop.permute.xlu0 %2989
        %2991 = vrot.lane.b32.xlu0 %v2098, 32
        %v2992 = vpop.permute.xlu0 %2991
        %2993 = vrot.lane.b32.xlu0 %v2103, 32
        %v2994 = vpop.permute.xlu0 %2993
        %2995 = vrot.lane.b32.xlu0 %v2108, 32
        %v2996 = vpop.permute.xlu0 %2995
        %2997 = vrot.lane.b32.xlu0 %v2113, 32
        %v2998 = vpop.permute.xlu0 %2997
        %2999 = vrot.lane.b32.xlu0 %v2118, 32
        %v3000 = vpop.permute.xlu0 %2999
        %3001 = vrot.lane.b32.xlu0 %v2123, 32
        %v3002 = vpop.permute.xlu0 %3001
        %3003 = vrot.lane.b32.xlu0 %v2128, 32
        %v3004 = vpop.permute.xlu0 %3003
        %3005 = vrot.lane.b32.xlu0 %v2133, 32
        %v3006 = vpop.permute.xlu0 %3005
        %3039 = vrot.lane.b32.xlu0 %v2881, 64
        %v3040 = vpop.permute.xlu0 %3039
        %3041 = vrot.lane.b32.xlu0 %v2886, 64
        %v3042 = vpop.permute.xlu0 %3041
        %3043 = vrot.lane.b32.xlu0 %v2891, 64
        %v3044 = vpop.permute.xlu0 %3043
        %3045 = vrot.lane.b32.xlu0 %v2896, 64
        %v3046 = vpop.permute.xlu0 %3045
        %3047 = vrot.lane.b32.xlu0 %v2901, 64
        %v3048 = vpop.permute.xlu0 %3047
        %3049 = vrot.lane.b32.xlu0 %v2906, 64
        %v3050 = vpop.permute.xlu0 %3049
        %3051 = vrot.lane.b32.xlu0 %v2911, 64
        %v3052 = vpop.permute.xlu0 %3051
        %3053 = vrot.lane.b32.xlu0 %v2916, 64
        %v3054 = vpop.permute.xlu0 %3053
        %3055 = vrot.lane.b32.xlu0 %v2921, 64
        %v3056 = vpop.permute.xlu0 %3055
        %3057 = vrot.lane.b32.xlu0 %v2926, 64
        %v3058 = vpop.permute.xlu0 %3057
        %3059 = vrot.lane.b32.xlu0 %v2931, 64
        %v3060 = vpop.permute.xlu0 %3059
        %3061 = vrot.lane.b32.xlu0 %v2936, 64
        %v3062 = vpop.permute.xlu0 %3061
        %3063 = vrot.lane.b32.xlu0 %v2941, 64
        %v3064 = vpop.permute.xlu0 %3063
        %3065 = vrot.lane.b32.xlu0 %v2946, 64
        %v3066 = vpop.permute.xlu0 %3065
        %3067 = vrot.lane.b32.xlu0 %v2951, 64
        %v3068 = vpop.permute.xlu0 %3067
        %3069 = vrot.lane.b32.xlu0 %v2956, 64
        %v3070 = vpop.permute.xlu0 %3069
        %v3087 = vsel %vm489, %v1235, %v2976
        %v3088 = vsel %vm489, %v1240, %v2978
        %v3089 = vsel %vm489, %v1245, %v2980
        %v3090 = vsel %vm489, %v1250, %v2982
        %v3091 = vsel %vm489, %v1255, %v2984
        %v3092 = vsel %vm489, %v1260, %v2986
        %v3093 = vsel %vm489, %v1265, %v2988
        %v3094 = vsel %vm489, %v1270, %v2990
        %v3095 = vsel %vm489, %v1275, %v2992
        %v3096 = vsel %vm489, %v1280, %v2994
        %v3097 = vsel %vm489, %v1285, %v2996
        %v3098 = vsel %vm489, %v1290, %v2998
        %v3099 = vsel %vm489, %v1295, %v3000
        %v3100 = vsel %vm489, %v1300, %v3002
        %v3101 = vsel %vm489, %v1305, %v3004
        %v3102 = vsel %vm489, %v1310, %v3006
        %vm3103 = vcmask 523264
        %v3104 = vsel %vm3103, %v3087, %v3040
        %v3105 = vsel %vm3103, %v3088, %v3042
        %v3106 = vsel %vm3103, %v3089, %v3044
        %v3107 = vsel %vm3103, %v3090, %v3046
        %v3108 = vsel %vm3103, %v3091, %v3048
        %v3109 = vsel %vm3103, %v3092, %v3050
        %v3110 = vsel %vm3103, %v3093, %v3052
        %v3111 = vsel %vm3103, %v3094, %v3054
        %v3112 = vsel %vm3103, %v3095, %v3056
        %v3113 = vsel %vm3103, %v3096, %v3058
        %v3114 = vsel %vm3103, %v3097, %v3060
        %v3115 = vsel %vm3103, %v3098, %v3062
        %v3116 = vsel %vm3103, %v3099, %v3064
        %v3117 = vsel %vm3103, %v3100, %v3066
        %v3118 = vsel %vm3103, %v3101, %v3068
        %v3119 = vsel %vm3103, %v3102, %v3070
        %v3120 = vld [vmem:[%s3] sm:$0xff]
        %v3121 = vld [vmem:[%s3 + $0x8] sm:$0xff]
        %v3122 = vld [vmem:[%s3 + $0x10] sm:$0xff]
        %v3123 = vld [vmem:[%s3 + $0x18] sm:$0xff]
        %v3124 = vld [vmem:[%s3 + $0x20] sm:$0xff]
        %v3125 = vld [vmem:[%s3 + $0x28] sm:$0xff]
        %v3126 = vld [vmem:[%s3 + $0x30] sm:$0xff]
        %v3127 = vld [vmem:[%s3 + $0x38] sm:$0xff]
        %v3128 = vld [vmem:[%s3 + $0x40] sm:$0xff]
        %v3129 = vld [vmem:[%s3 + $0x48] sm:$0xff]
        %v3130 = vld [vmem:[%s3 + $0x50] sm:$0xff]
        %v3131 = vld [vmem:[%s3 + $0x58] sm:$0xff]
        %v3132 = vld [vmem:[%s3 + $0x60] sm:$0x1]
        %v3133 = vlaneseq
        %v3134 = vshrl.u32 %v3133, 7
        %v3135 = vsub.s32 0, %v3134
        %v3136 = vrot.slane %v3132, %v3135
        %vm3137 = vcmask 785408
        %v3139 = vsel %vm3137, %v3104, 0
        %v3142 = vsel %vm3137, %v3105, 0
        %v3145 = vsel %vm3137, %v3106, 0
        %v3148 = vsel %vm3137, %v3107, 0
        %v3151 = vsel %vm3137, %v3108, 0
        %v3154 = vsel %vm3137, %v3109, 0
        %v3157 = vsel %vm3137, %v3110, 0
        %v3160 = vsel %vm3137, %v3111, 0
        %v3163 = vsel %vm3137, %v3112, 0
        %v3166 = vsel %vm3137, %v3113, 0
        %v3169 = vsel %vm3137, %v3114, 0
        %v3172 = vsel %vm3137, %v3115, 0
        %v3175 = vsel %vm3137, %v3116, 0
        %v3178 = vsel %vm3137, %v3117, 0
        %v3181 = vsel %vm3137, %v3118, 0
        %v3184 = vsel %vm3137, %v3119, 0
        %3186 = vmatprep.subr.mxu0 0.0
        %3187 = vmatpush1.msra.mxu0 %v3120
        %3188 = vmatprep.subr.mxu0 0.0
        %3189 = vmatpush1.msra.mxu0 %v3121
        %3190 = vmatprep.subr.mxu0 0.0
        %3191 = vmatpush1.msra.mxu0 %v3122
        %3192 = vmatprep.subr.mxu0 0.0
        %3193 = vmatpush1.msra.mxu0 %v3123
        %3194 = vmatprep.subr.mxu0 0.0
        %3195 = vmatpush1.msra.mxu0 %v3124
        %3196 = vmatprep.subr.mxu0 0.0
        %3197 = vmatpush1.msra.mxu0 %v3125
        %3198 = vmatprep.subr.mxu0 0.0
        %3199 = vmatpush1.msra.mxu0 %v3126
        %3200 = vmatprep.subr.mxu0 0.0
        %3201 = vmatpush1.msra.mxu0 %v3127
        %3202 = vmatprep.subr.mxu0 0.0
        %3203 = vmatpush1.msra.mxu0 %v3128
        %3204 = vmatprep.subr.mxu0 0.0
        %3205 = vmatpush1.msra.mxu0 %v3129
        %3206 = vmatprep.subr.mxu0 0.0
        %3207 = vmatpush1.msra.mxu0 %v3130
        %3208 = vmatprep.subr.mxu0 0.0
        %3209 = vmatpush1.msra.mxu0 %v3131
        %3210 = vmatprep.subr.mxu0 0.0
        %3211 = vmatpush1.msra.mxu0 0.0
        %3212 = vmatprep.subr.mxu0 0.0
        %3213 = vmatpush1.msra.mxu0 0.0
        %3214 = vmatprep.subr.mxu0 0.0
        %3215 = vmatpush1.msra.mxu0 0.0
        %3216 = vmatprep.subr.mxu0 0.0
        %3217 = vmatpush1.msra.mxu0 0.0
        %3218 = vmatprep.subr.mxu0 0.0
        %3219 = vmatpush1.msra.mxu0 0.0
        %3220 = vmatprep.subr.mxu0 0.0
        %3221 = vmatpush1.msra.mxu0 0.0
        %3222 = vmatprep.subr.mxu0 0.0
        %3223 = vmatpush1.msra.mxu0 0.0
        %3224 = vmatprep.subr.mxu0 0.0
        %3225 = vmatpush1.msra.mxu0 0.0
        %3226 = vmatprep.subr.mxu0 0.0
        %3227 = vmatpush1.msra.mxu0 0.0
        %3228 = vmatprep.subr.mxu0 0.0
        %3229 = vmatpush1.msra.mxu0 0.0
        %3230 = vmatprep.subr.mxu0 0.0
        %3231 = vmatpush1.msra.mxu0 0.0
        %3232 = vmatprep.subr.mxu0 0.0
        %3233 = vmatpush1.msra.mxu0 0.0
        %3234 = vmatprep.subr.mxu0 0.0
        %3235 = vmatpush1.msra.mxu0 0.0
        %3236 = vmatprep.subr.mxu0 0.0
        %3237 = vmatpush1.msra.mxu0 0.0
        %3238 = vmatprep.subr.mxu0 0.0
        %3239 = vmatpush1.msra.mxu0 0.0
        %3240 = vmatprep.subr.mxu0 0.0
        %3241 = vmatpush1.msra.mxu0 0.0
        %3242 = vmatprep.subr.mxu0 0.0
        %3243 = vmatpush1.msra.mxu0 0.0
        %3244 = vmatprep.subr.mxu0 0.0
        %3245 = vmatpush1.msra.mxu0 0.0
        %3246 = vmatprep.subr.mxu0 0.0
        %3247 = vmatpush1.msra.mxu0 0.0
        %3248 = vmatprep.subr.mxu0 0.0
        %3249 = vmatpush1.msra.mxu0 0.0
        %3250 = vmatprep.mubr.f32.mxu0 0.0
        %3251 = vmatmul.mubr.f32.gmra.mrb[0].mxu0 %v3139
        %v3252 = vpop.f32.mrb[0].mxu0
        %v3253 = vadd.f32 %v3136, %v3252
        %v3254 = vpop.f32.mrb[0].mxu0
        %3255 = vmatprep.mubr.f32.mxu0 0.0
        %3256 = vmatmul.mubr.f32.gmra.mrb[0].mxu0 %v3142
        %v3257 = vpop.f32.mrb[0].mxu0
        %v3258 = vadd.f32 %v3136, %v3257
        %v3259 = vpop.f32.mrb[0].mxu0
        %3260 = vmatprep.mubr.f32.mxu0 0.0
        %3261 = vmatmul.mubr.f32.gmra.mrb[0].mxu0 %v3145
        %v3262 = vpop.f32.mrb[0].mxu0
        %v3263 = vadd.f32 %v3136, %v3262
        %v3264 = vpop.f32.mrb[0].mxu0
        %3265 = vmatprep.mubr.f32.mxu0 0.0
        %3266 = vmatmul.mubr.f32.gmra.mrb[0].mxu0 %v3148
        %v3267 = vpop.f32.mrb[0].mxu0
        %v3268 = vadd.f32 %v3136, %v3267
        %v3269 = vpop.f32.mrb[0].mxu0
        %3270 = vmatprep.mubr.f32.mxu0 0.0
        %3271 = vmatmul.mubr.f32.gmra.mrb[0].mxu0 %v3151
        %v3272 = vpop.f32.mrb[0].mxu0
        %v3273 = vadd.f32 %v3136, %v3272
        %v3274 = vpop.f32.mrb[0].mxu0
        %3275 = vmatprep.mubr.f32.mxu0 0.0
        %3276 = vmatmul.mubr.f32.gmra.mrb[0].mxu0 %v3154
        %v3277 = vpop.f32.mrb[0].mxu0
        %v3278 = vadd.f32 %v3136, %v3277
        %v3279 = vpop.f32.mrb[0].mxu0
        %3280 = vmatprep.mubr.f32.mxu0 0.0
        %3281 = vmatmul.mubr.f32.gmra.mrb[0].mxu0 %v3157
        %v3282 = vpop.f32.mrb[0].mxu0
        %v3283 = vadd.f32 %v3136, %v3282
        %v3284 = vpop.f32.mrb[0].mxu0
        %3285 = vmatprep.mubr.f32.mxu0 0.0
        %3286 = vmatmul.mubr.f32.gmra.mrb[0].mxu0 %v3160
        %v3287 = vpop.f32.mrb[0].mxu0
        %v3288 = vadd.f32 %v3136, %v3287
        %v3289 = vpop.f32.mrb[0].mxu0
        %3290 = vmatprep.mubr.f32.mxu0 0.0
        %3291 = vmatmul.mubr.f32.gmra.mrb[0].mxu0 %v3163
        %v3292 = vpop.f32.mrb[0].mxu0
        %v3293 = vadd.f32 %v3136, %v3292
        %v3294 = vpop.f32.mrb[0].mxu0
        %3295 = vmatprep.mubr.f32.mxu0 0.0
        %3296 = vmatmul.mubr.f32.gmra.mrb[0].mxu0 %v3166
        %v3297 = vpop.f32.mrb[0].mxu0
        %v3298 = vadd.f32 %v3136, %v3297
        %v3299 = vpop.f32.mrb[0].mxu0
        %3300 = vmatprep.mubr.f32.mxu0 0.0
        %3301 = vmatmul.mubr.f32.gmra.mrb[0].mxu0 %v3169
        %v3302 = vpop.f32.mrb[0].mxu0
        %v3303 = vadd.f32 %v3136, %v3302
        %v3304 = vpop.f32.mrb[0].mxu0
        %3305 = vmatprep.mubr.f32.mxu0 0.0
        %3306 = vmatmul.mubr.f32.gmra.mrb[0].mxu0 %v3172
        %v3307 = vpop.f32.mrb[0].mxu0
        %v3308 = vadd.f32 %v3136, %v3307
        %v3309 = vpop.f32.mrb[0].mxu0
        %3310 = vmatprep.mubr.f32.mxu0 0.0
        %3311 = vmatmul.mubr.f32.gmra.mrb[0].mxu0 %v3175
        %v3312 = vpop.f32.mrb[0].mxu0
        %v3313 = vadd.f32 %v3136, %v3312
        %v3314 = vpop.f32.mrb[0].mxu0
        %3315 = vmatprep.mubr.f32.mxu0 0.0
        %3316 = vmatmul.mubr.f32.gmra.mrb[0].mxu0 %v3178
        %v3317 = vpop.f32.mrb[0].mxu0
        %v3318 = vadd.f32 %v3136, %v3317
        %v3319 = vpop.f32.mrb[0].mxu0
        %3320 = vmatprep.mubr.f32.mxu0 0.0
        %3321 = vmatmul.mubr.f32.gmra.mrb[0].mxu0 %v3181
        %v3322 = vpop.f32.mrb[0].mxu0
        %v3323 = vadd.f32 %v3136, %v3322
        %v3324 = vpop.f32.mrb[0].mxu0
        %3325 = vmatprep.mubr.f32.mxu0 0.0
        %3326 = vmatmul.mubr.f32.gmra.mrb[0].mxu0 %v3184
        %v3327 = vpop.f32.mrb[0].mxu0
        %v3328 = vadd.f32 %v3136, %v3327
        %v3329 = vpop.f32.mrb[0].mxu0
        %3330 = vdwg.mxu0
        %v3331 = vxor.u32 %v3253, 2147483648
        %v3332 = vxor.u32 %v3258, 2147483648
        %v3333 = vxor.u32 %v3263, 2147483648
        %v3334 = vxor.u32 %v3268, 2147483648
        %v3335 = vxor.u32 %v3273, 2147483648
        %v3336 = vxor.u32 %v3278, 2147483648
        %v3337 = vxor.u32 %v3283, 2147483648
        %v3338 = vxor.u32 %v3288, 2147483648
        %v3339 = vxor.u32 %v3293, 2147483648
        %v3340 = vxor.u32 %v3298, 2147483648
        %v3341 = vxor.u32 %v3303, 2147483648
        %v3342 = vxor.u32 %v3308, 2147483648
        %v3343 = vxor.u32 %v3313, 2147483648
        %v3344 = vxor.u32 %v3318, 2147483648
        %v3345 = vxor.u32 %v3323, 2147483648
        %v3346 = vxor.u32 %v3328, 2147483648
        %v3347 = vmul.f32 %v3331, 1.442695
        %v3348 = vpow.pop %v3347
        %v3349 = vmul.f32 %v3332, 1.442695
        %v3350 = vpow.pop %v3349
        %v3351 = vmul.f32 %v3333, 1.442695
        %v3352 = vpow.pop %v3351
        %v3353 = vmul.f32 %v3334, 1.442695
        %v3354 = vpow.pop %v3353
        %v3355 = vmul.f32 %v3335, 1.442695
        %v3356 = vpow.pop %v3355
        %v3357 = vmul.f32 %v3336, 1.442695
        %v3358 = vpow.pop %v3357
        %v3359 = vmul.f32 %v3337, 1.442695
        %v3360 = vpow.pop %v3359
        %v3361 = vmul.f32 %v3338, 1.442695
        %v3362 = vpow.pop %v3361
        %v3363 = vmul.f32 %v3339, 1.442695
        %v3364 = vpow.pop %v3363
        %v3365 = vmul.f32 %v3340, 1.442695
        %v3366 = vpow.pop %v3365
        %v3367 = vmul.f32 %v3341, 1.442695
        %v3368 = vpow.pop %v3367
        %v3369 = vmul.f32 %v3342, 1.442695
        %v3370 = vpow.pop %v3369
        %v3371 = vmul.f32 %v3343, 1.442695
        %v3372 = vpow.pop %v3371
        %v3373 = vmul.f32 %v3344, 1.442695
        %v3374 = vpow.pop %v3373
        %v3375 = vmul.f32 %v3345, 1.442695
        %v3376 = vpow.pop %v3375
        %v3377 = vmul.f32 %v3346, 1.442695
        %v3378 = vpow.pop %v3377
        %v3379 = vadd.f32 %v3348, 1.0
        %v3380 = vadd.f32 %v3350, 1.0
        %v3381 = vadd.f32 %v3352, 1.0
        %v3382 = vadd.f32 %v3354, 1.0
        %v3383 = vadd.f32 %v3356, 1.0
        %v3384 = vadd.f32 %v3358, 1.0
        %v3385 = vadd.f32 %v3360, 1.0
        %v3386 = vadd.f32 %v3362, 1.0
        %v3387 = vadd.f32 %v3364, 1.0
        %v3388 = vadd.f32 %v3366, 1.0
        %v3389 = vadd.f32 %v3368, 1.0
        %v3390 = vadd.f32 %v3370, 1.0
        %v3391 = vadd.f32 %v3372, 1.0
        %v3392 = vadd.f32 %v3374, 1.0
        %v3393 = vadd.f32 %v3376, 1.0
        %v3394 = vadd.f32 %v3378, 1.0
        %v3395 = vrcp.pop %v3379
        %v3396 = vmul.f32 1.0, %v3395
        %v3397 = vrcp.pop %v3380
        %v3398 = vmul.f32 1.0, %v3397
        %v3399 = vrcp.pop %v3381
        %v3400 = vmul.f32 1.0, %v3399
        %v3401 = vrcp.pop %v3382
        %v3402 = vmul.f32 1.0, %v3401
        %v3403 = vrcp.pop %v3383
        %v3404 = vmul.f32 1.0, %v3403
        %v3405 = vrcp.pop %v3384
        %v3406 = vmul.f32 1.0, %v3405
        %v3407 = vrcp.pop %v3385
        %v3408 = vmul.f32 1.0, %v3407
        %v3409 = vrcp.pop %v3386
        %v3410 = vmul.f32 1.0, %v3409
        %v3411 = vrcp.pop %v3387
        %v3412 = vmul.f32 1.0, %v3411
        %v3413 = vrcp.pop %v3388
        %v3414 = vmul.f32 1.0, %v3413
        %v3415 = vrcp.pop %v3389
        %v3416 = vmul.f32 1.0, %v3415
        %v3417 = vrcp.pop %v3390
        %v3418 = vmul.f32 1.0, %v3417
        %v3419 = vrcp.pop %v3391
        %v3420 = vmul.f32 1.0, %v3419
        %v3421 = vrcp.pop %v3392
        %v3422 = vmul.f32 1.0, %v3421
        %v3423 = vrcp.pop %v3393
        %v3424 = vmul.f32 1.0, %v3423
        %v3425 = vrcp.pop %v3394
        %v3426 = vmul.f32 1.0, %v3425
        %3427 = vst [vmem:[%s206] sm:$0xff] %v3396
        %3428 = vst [vmem:[%s206 + $0x8] sm:$0xff] %v3398
        %3429 = vst [vmem:[%s206 + $0x10] sm:$0xff] %v3400
        %3430 = vst [vmem:[%s206 + $0x18] sm:$0xff] %v3402
        %3431 = vst [vmem:[%s206 + $0x20] sm:$0xff] %v3404
        %3432 = vst [vmem:[%s206 + $0x28] sm:$0xff] %v3406
        %3433 = vst [vmem:[%s206 + $0x30] sm:$0xff] %v3408
        %3434 = vst [vmem:[%s206 + $0x38] sm:$0xff] %v3410
        %3435 = vst [vmem:[%s206 + $0x40] sm:$0xff] %v3412
        %3436 = vst [vmem:[%s206 + $0x48] sm:$0xff] %v3414
        %3437 = vst [vmem:[%s206 + $0x50] sm:$0xff] %v3416
        %3438 = vst [vmem:[%s206 + $0x58] sm:$0xff] %v3418
        %3439 = vst [vmem:[%s206 + $0x60] sm:$0xff] %v3420
        %3440 = vst [vmem:[%s206 + $0x68] sm:$0xff] %v3422
        %3441 = vst [vmem:[%s206 + $0x70] sm:$0xff] %v3424
        %3442 = vst [vmem:[%s206 + $0x78] sm:$0xff] %v3426
        %s3443 = sand.u32 %s120, 1
        %s3444 = scalar_lea.sflag [#allocation3], %s3443
        %s3445 = sand.u32 %s120, 1
        %s3446 = smul.addr %s3445, 128
        %s3447 = scalar_lea.vmem [#allocation2], %s3446
        // Predicated region
        $region37: #{tpu_custom_call.1} parent=35 // pred_check
          %p3448 = pneg %p130
        $region38: #{tpu_custom_call.1} parent=35 // pred_check_branch
          %3450 = sbr.rel (%p3448) target = $region40
        $region39: #{tpu_custom_call.1} parent=35 // pred_region
          %s3451 = smul.u32 16, %s18
          %s3453 = ssub.s32 2048, 2048
          %3454 = vsyncadd %s3444, %s3453
          %s3455 = smul.addr %s3451, 128
          %s3456 = scalar_lea.hbm %s4, %s3455
          %s3457 = sshll.u32 %s3447, 4
          %s3458 = int_to_ptr.vmem [resolvable:$true] %s3457
          %3463 = dma.vmem_to_hbm [thread:$0]  %s3458, 2048, %s3456, %s3444, 128, 128, 8
        $region40: #{tpu_custom_call.1} parent=35 // pred_fallthru
          _
      $region36: #{tpu_custom_call.1} parent=5 // pred_fallthru
        _
      %p3464 = scmp.le.s32.totalorder 2, %s13
      // Predicated region
      $region41: #{tpu_custom_call.1} parent=5 // pred_check
        %p3465 = pneg %p3464
      $region42: #{tpu_custom_call.1} parent=5 // pred_check_branch
        %3467 = sbr.rel (%p3465) target = $region44
      $region43: #{tpu_custom_call.1} parent=5 // pred_region
        %s3468 = ssub.s32 %s13, 2
        // Predicated region
        $region45: #{tpu_custom_call.1} parent=43 // pred_check
          %p3469 = pneg %p136
        $region46: #{tpu_custom_call.1} parent=43 // pred_check_branch
          %3471 = sbr.rel (%p3469) target = $region48
        $region47: #{tpu_custom_call.1} parent=43 // pred_region
          %s3472 = sand.u32 %s121, 1
          %s3473 = scalar_lea.sflag [#allocation3], %s3472
          %s3474 = sand.u32 %s121, 1
          %s3475 = smul.addr %s3474, 128
          %s3476 = scalar_lea.vmem [#allocation2], %s3475
          %3477 = dma.done %s3473, 2048
        $region48: #{tpu_custom_call.1} parent=43 // pred_fallthru
          _
      $region44: #{tpu_custom_call.1} parent=5 // pred_fallthru
        _
    $region6: #{tpu_custom_call.1} parent=1 // loop_footer
      %s17 = sadd.s32 1, %s13
    $region7: #{tpu_custom_call.1} parent=1 // loop_footer_branch
      %12 = sbr.rel target = $region3
    $region8: #{tpu_custom_call.1} parent=1 // loop_exit
      _
    %3478 = vsyncpa [#allocation3], 1
    %s3479 = scalar_lea.sflag [#allocation3], 1
    %3480 = vsyncpa %s3479, 1

</llo_original>
